<compile_context>
chip_gen: v6e
topology: v6e:2x2x1
jax: 0.10.0
libtpu: 0.0.40
codegen_flags: <defaults>
</compile_context>

<pallas_src>
import functools

import jax
import jax.numpy as jnp
from jax.experimental import pallas as pl
from jax.experimental.pallas import tpu as pltpu

M = 20
N = 64
in_size = 2 * M          # 40
out_size = 2 * N         # 128
widths = [in_size, int(M * N / 2), int(M * N / 2), out_size]  # [40, 640, 640, 128]

# Cached capability probe: does this JAX build accept pl.Buffered(1)?
_WEIGHT_SINGLE_BUF_OK = None


def _round_up(x, m):
    return ((x + m - 1) // m) * m


def _choose_batch_tile(B, max_tile=1024):
    """Balanced, 8-aligned batch tiles.

    Prefers >= 2 tiles (and an even tile count) whenever the batch permits so
    dimension_semantics=("parallel",) can put work on both v7x TensorCores,
    and sizes the tile from the tile count so zero-padding waste stays small
    (e.g. B=300 -> 2 tiles of 152 rows instead of 2x256)."""
    b8 = _round_up(max(B, 1), 8)
    if b8 <= 8:
        return 8
    nt = pl.cdiv(b8, max_tile)   # minimum tile count under the cap
    nt = max(nt, 2)              # >= 2 tiles -> both TCs get work on v7x
    if nt % 2:
        nt += 1                  # even tile count -> balanced 2-TC split
    return min(_round_up(pl.cdiv(b8, nt), 8), max_tile)


def _bf16_epilogue_default():
    """bf16 bias-add/ReLU epilogue on v6e/v7x (bf16 VPU); keep f32 on v5e."""
    try:
        kind = jax.devices()[0].device_kind.lower()
    except Exception:
        return True
    return not any(t in kind for t in ("v5 lite", "v5lite", "v5e"))


def _mlp_kernel(x_ref, w1_ref, b1_ref, w2_ref, b2_ref, w3_ref, b3_ref, o_ref,
                *, bf16_epi):
    # Layer 1: (TB,40)bf16 @ (40,640)bf16 -> f32 acc, +bias, ReLU.
    x = x_ref[...].astype(jnp.bfloat16)
    h = jnp.dot(x, w1_ref[...], preferred_element_type=jnp.float32)
    if bf16_epi:
        # bf16 epilogue halves vreg/VMEM-spill traffic between the matmuls.
        h = jnp.maximum(h.astype(jnp.bfloat16) + b1_ref[...].astype(jnp.bfloat16), 0)
    else:
        h = jnp.maximum(h + b1_ref[...], 0.0).astype(jnp.bfloat16)
    # dropout(p=0) is the identity -> skipped

    # Layer 2: (TB,640) @ (640,640), +bias, ReLU.
    h = jnp.dot(h, w2_ref[...], preferred_element_type=jnp.float32)
    if bf16_epi:
        h = jnp.maximum(h.astype(jnp.bfloat16) + b2_ref[...].astype(jnp.bfloat16), 0)
    else:
        h = jnp.maximum(h + b2_ref[...], 0.0).astype(jnp.bfloat16)

    # Layer 3: final linear (no activation); bias add kept in f32.
    o = jnp.dot(h, w3_ref[...], preferred_element_type=jnp.float32) + b3_ref[...]
    o_ref[...] = o.astype(o_ref.dtype)


def net_ce_forward(x, params, *, max_batch_tile=1024, bf16_epilogue=None,
                   single_buffer_weights=True):
    """x: (B, in_size) f32.  params: list of (W_in_out[bf16], b[(1,out) f32])."""
    global _WEIGHT_SINGLE_BUF_OK
    (w1, b1), (w2, b2), (w3, b3) = params
    B = x.shape[0]
    d0, d1, d2, d3 = widths
    if bf16_epilogue is None:
        bf16_epilogue = _bf16_epilogue_default()

    tb = _choose_batch_tile(B, max_tile=max_batch_tile)
    n_tiles = pl.cdiv(B, tb)
    b_pad = n_tiles * tb
    if b_pad != B:
        x = jnp.pad(x, ((0, b_pad - B), (0, 0)))

    flops = 2 * b_pad * (d0 * d1 + d1 * d2 + d2 * d3)
    bytes_accessed = (b_pad * d0 * 4                         # x (f32)
                      + (d0 * d1 + d1 * d2 + d2 * d3) * 2    # weights (bf16)
                      + (d1 + d2 + d3) * 4                   # biases (f32)
                      + b_pad * d3 * 4)                      # out (f32)

    kernel = functools.partial(_mlp_kernel, bf16_epi=bf16_epilogue)
    const2 = lambda i: (0, 0)  # weights/biases: same block every step -> VMEM-resident

    def build_call(single_buf):
        if single_buf:
            # Constant index_map -> a single buffer suffices; frees ~1 MB VMEM.
            wspec = lambda shape: pl.BlockSpec(shape, const2,
                                               pipeline_mode=pl.Buffered(1))
        else:
            wspec = lambda shape: pl.BlockSpec(shape, const2)
        return pl.pallas_call(
            kernel,
            out_shape=jax.ShapeDtypeStruct((b_pad, d3), jnp.float32),
            grid=(n_tiles,),
            in_specs=[
                pl.BlockSpec((tb, d0), lambda i: (i, 0)),
                wspec((d0, d1)), wspec((1, d1)),
                wspec((d1, d2)), wspec((1, d2)),
                wspec((d2, d3)), wspec((1, d3)),
            ],
            out_specs=pl.BlockSpec((tb, d3), lambda i: (i, 0)),
            compiler_params=pltpu.CompilerParams(
                # Independent batch tiles -> v7x shards across both TCs;
                # no-op on single-TC v5e/v6e.
                dimension_semantics=("parallel",),
                # Generous but safe on all chips (<= physical VMEM everywhere);
                # matters if max_batch_tile is swept upward on v5e (16 MiB
                # scoped default).
                vmem_limit_bytes=32 * 1024 * 1024),
            cost_estimate=pl.CostEstimate(flops=flops, transcendentals=0,
                                          bytes_accessed=bytes_accessed),
        )

    args = (x, w1, b1, w2, b2, w3, b3)
    if single_buffer_weights and _WEIGHT_SINGLE_BUF_OK is None:
        try:
            out = jax.block_until_ready(build_call(True)(*args))
            _WEIGHT_SINGLE_BUF_OK = True
            return out[:B]
        except Exception:
            # This JAX build rejects single-buffered specs -> default buffering.
            _WEIGHT_SINGLE_BUF_OK = False
    use_single = single_buffer_weights and bool(_WEIGHT_SINGLE_BUF_OK)
    out = build_call(use_single)(*args)
    return out[:B]


def init_params(key):
    """Deterministic init mirroring nn.Linear's U(-1/sqrt(fan_in), 1/sqrt(fan_in)).

    Weights stored as (in, out) bf16 (transpose of torch's (out, in)); biases
    as (1, out) f32 rows.  bf16 weights feed the MXU directly; accumulation is
    f32.  (True f32-weight torch numerics would require f32 MXU passes.)"""
    params = []
    for fan_in, fan_out in zip(widths, widths[1:]):
        key, kw, kb = jax.random.split(key, 3)
        bound = 1.0 / jnp.sqrt(fan_in)
        w = jax.random.uniform(kw, (fan_in, fan_out), jnp.float32, -bound, bound)
        b = jax.random.uniform(kb, (1, fan_out), jnp.float32, -bound, bound)
        params.append((w.astype(jnp.bfloat16), b))
    return params


def net_ce_reference(x, params, *, bf16_epilogue=None):
    """Pure-JAX reference mirroring the kernel's numerics (bf16 matmul inputs,
    f32 accumulation, bf16-or-f32 epilogue matching the kernel)."""
    if bf16_epilogue is None:
        bf16_epilogue = _bf16_epilogue_default()
    h = x.astype(jnp.bfloat16)
    L = len(params)
    for l, (w, b) in enumerate(params):
        y = jnp.dot(h, w, preferred_element_type=jnp.float32)
        if l < L - 1:
            if bf16_epilogue:
                h = jnp.maximum(y.astype(jnp.bfloat16) + b.astype(jnp.bfloat16), 0)
            else:
                h = jnp.maximum(y + b, 0.0).astype(jnp.bfloat16)
        else:
            return y + b


if __name__ == "__main__":
    key = jax.random.PRNGKey(0)
    kx, kx2, kx3, kp = jax.random.split(key, 4)
    params = init_params(kp)

    # Small batch (single 8-row tile).
    batch = 8
    x = jax.random.normal(kx, (batch, in_size), jnp.float32)
    out = jax.block_until_ready(net_ce_forward(x, params))
    ref = net_ce_reference(x, params)
    assert out.shape == (batch, out_size), out.shape
    assert jnp.allclose(out, ref, atol=1e-2, rtol=1e-2), \
        float(jnp.max(jnp.abs(out - ref)))

    # Awkward batch (balanced 2x152 tiles, <3% pad waste, 2-tile grid for v7x).
    batch2 = 300
    x2 = jax.random.normal(kx2, (batch2, in_size), jnp.float32)
    out2 = jax.block_until_ready(net_ce_forward(x2, params))
    ref2 = net_ce_reference(x2, params)
    assert out2.shape == (batch2, out_size), out2.shape
    assert jnp.allclose(out2, ref2, atol=1e-2, rtol=1e-2), \
        float(jnp.max(jnp.abs(out2 - ref2)))

    # Larger batch (exercises the big 752-row tiles).
    batch3 = 1500
    x3 = jax.random.normal(kx3, (batch3, in_size), jnp.float32)
    out3 = jax.block_until_ready(net_ce_forward(x3, params))
    ref3 = net_ce_reference(x3, params)
    assert out3.shape == (batch3, out_size), out3.shape
    assert jnp.allclose(out3, ref3, atol=1e-2, rtol=1e-2), \
        float(jnp.max(jnp.abs(out3 - ref3)))

    print("KERNEL_OK")
</pallas_src>

<mosaic_0001>
module attributes {stable_mosaic.version = 11 : i64} {
  func.func @_mlp_kernel(%arg0: i32, %arg1: memref<8x40xf32, #tpu.memory_space<vmem>>, %arg2: memref<40x640xbf16, #tpu.memory_space<vmem>>, %arg3: memref<1x640xf32, #tpu.memory_space<vmem>>, %arg4: memref<640x640xbf16, #tpu.memory_space<vmem>>, %arg5: memref<1x640xf32, #tpu.memory_space<vmem>>, %arg6: memref<640x128xbf16, #tpu.memory_space<vmem>>, %arg7: memref<1x128xf32, #tpu.memory_space<vmem>>, %arg8: memref<8x128xf32, #tpu.memory_space<vmem>>) attributes {dimension_semantics = [#tpu.dimension_semantics<parallel>], iteration_bounds = array<i64: 1>, scalar_prefetch = 0 : i64, scratch_operands = 0 : i64, tpu.core_type = #tpu.core_type<tc>, window_params = [{transform_indices = @transform_0, window_bounds = array<i64: 8, 40>}, {pipeline_mode = #tpu.pipeline_mode<synchronous>, transform_indices = @transform_1, window_bounds = array<i64: 40, 640>}, {pipeline_mode = #tpu.pipeline_mode<synchronous>, transform_indices = @transform_2, window_bounds = array<i64: 1, 640>}, {pipeline_mode = #tpu.pipeline_mode<synchronous>, transform_indices = @transform_3, window_bounds = array<i64: 640, 640>}, {pipeline_mode = #tpu.pipeline_mode<synchronous>, transform_indices = @transform_4, window_bounds = array<i64: 1, 640>}, {pipeline_mode = #tpu.pipeline_mode<synchronous>, transform_indices = @transform_5, window_bounds = array<i64: 640, 128>}, {pipeline_mode = #tpu.pipeline_mode<synchronous>, transform_indices = @transform_6, window_bounds = array<i64: 1, 128>}, {transform_indices = @transform_7, window_bounds = array<i64: 8, 128>}]} {
    %c0 = arith.constant 0 : index
    %c0_0 = arith.constant 0 : index
    %0 = vector.load %arg1[%c0, %c0_0] : memref<8x40xf32, #tpu.memory_space<vmem>>, vector<8x40xf32>
    %1 = arith.truncf %0 : vector<8x40xf32> to vector<8x40xbf16>
    %c0_1 = arith.constant 0 : index
    %c0_2 = arith.constant 0 : index
    %2 = vector.load %arg2[%c0_1, %c0_2] : memref<40x640xbf16, #tpu.memory_space<vmem>>, vector<40x640xbf16>
    %cst = arith.constant dense<0.000000e+00> : vector<8x640xf32>
    %3 = tpu.matmul %1, %2, %cst {dimension_numbers = #tpu.dot_dimension_numbers<[1], [0], [0], [1], [0, 0, 1, 1], [], []>} : vector<8x40xbf16>, vector<40x640xbf16>, vector<8x640xf32> -> vector<8x640xf32>
    %4 = arith.truncf %3 : vector<8x640xf32> to vector<8x640xbf16>
    %c0_3 = arith.constant 0 : index
    %c0_4 = arith.constant 0 : index
    %5 = vector.load %arg3[%c0_3, %c0_4] : memref<1x640xf32, #tpu.memory_space<vmem>>, vector<1x640xf32>
    %6 = arith.truncf %5 : vector<1x640xf32> to vector<1x640xbf16>
    %7 = vector.broadcast %6 : vector<1x640xbf16> to vector<8x640xbf16>
    %8 = arith.addf %4, %7 : vector<8x640xbf16>
    %cst_5 = arith.constant 0.000000e+00 : bf16
    %9 = vector.broadcast %cst_5 : bf16 to vector<8x640xbf16>
    %10 = arith.maximumf %8, %9 : vector<8x640xbf16>
    %c0_6 = arith.constant 0 : index
    %c0_7 = arith.constant 0 : index
    %11 = vector.load %arg4[%c0_6, %c0_7] : memref<640x640xbf16, #tpu.memory_space<vmem>>, vector<640x640xbf16>
    %cst_8 = arith.constant dense<0.000000e+00> : vector<8x640xf32>
    %12 = tpu.matmul %10, %11, %cst_8 {dimension_numbers = #tpu.dot_dimension_numbers<[1], [0], [0], [1], [0, 0, 1, 1], [], []>} : vector<8x640xbf16>, vector<640x640xbf16>, vector<8x640xf32> -> vector<8x640xf32>
    %13 = arith.truncf %12 : vector<8x640xf32> to vector<8x640xbf16>
    %c0_9 = arith.constant 0 : index
    %c0_10 = arith.constant 0 : index
    %14 = vector.load %arg5[%c0_9, %c0_10] : memref<1x640xf32, #tpu.memory_space<vmem>>, vector<1x640xf32>
    %15 = arith.truncf %14 : vector<1x640xf32> to vector<1x640xbf16>
    %16 = vector.broadcast %15 : vector<1x640xbf16> to vector<8x640xbf16>
    %17 = arith.addf %13, %16 : vector<8x640xbf16>
    %cst_11 = arith.constant 0.000000e+00 : bf16
    %18 = vector.broadcast %cst_11 : bf16 to vector<8x640xbf16>
    %19 = arith.maximumf %17, %18 : vector<8x640xbf16>
    %c0_12 = arith.constant 0 : index
    %c0_13 = arith.constant 0 : index
    %20 = vector.load %arg6[%c0_12, %c0_13] : memref<640x128xbf16, #tpu.memory_space<vmem>>, vector<640x128xbf16>
    %cst_14 = arith.constant dense<0.000000e+00> : vector<8x128xf32>
    %21 = tpu.matmul %19, %20, %cst_14 {dimension_numbers = #tpu.dot_dimension_numbers<[1], [0], [0], [1], [0, 0, 1, 1], [], []>} : vector<8x640xbf16>, vector<640x128xbf16>, vector<8x128xf32> -> vector<8x128xf32>
    %c0_15 = arith.constant 0 : index
    %c0_16 = arith.constant 0 : index
    %22 = vector.load %arg7[%c0_15, %c0_16] : memref<1x128xf32, #tpu.memory_space<vmem>>, vector<1x128xf32>
    %23 = vector.broadcast %22 : vector<1x128xf32> to vector<8x128xf32>
    %24 = arith.addf %21, %23 : vector<8x128xf32>
    %c0_17 = arith.constant 0 : index
    %c0_18 = arith.constant 0 : index
    %25 = vector.load %arg8[%c0_17, %c0_18] : memref<8x128xf32, #tpu.memory_space<vmem>>, vector<8x128xf32>
    tpu.vector_store %arg8[%c0_17, %c0_18], %24 {strides = array<i32>} : memref<8x128xf32, #tpu.memory_space<vmem>>, vector<8x128xf32>,
    return
  }
  func.func @transform_0(%arg0: i32) -> (i32, i32) {
    %c0_i32 = arith.constant 0 : i32
    %c0_i32_0 = arith.constant 0 : i32
    return %arg0, %c0_i32 : i32, i32
  }
  func.func @transform_1(%arg0: i32) -> (i32, i32) {
    %c0_i32 = arith.constant 0 : i32
    %c0_i32_0 = arith.constant 0 : i32
    %c0_i32_1 = arith.constant 0 : i32
    return %c0_i32, %c0_i32_0 : i32, i32
  }
  func.func @transform_2(%arg0: i32) -> (i32, i32) {
    %c0_i32 = arith.constant 0 : i32
    %c0_i32_0 = arith.constant 0 : i32
    %c0_i32_1 = arith.constant 0 : i32
    return %c0_i32, %c0_i32_0 : i32, i32
  }
  func.func @transform_3(%arg0: i32) -> (i32, i32) {
    %c0_i32 = arith.constant 0 : i32
    %c0_i32_0 = arith.constant 0 : i32
    %c0_i32_1 = arith.constant 0 : i32
    return %c0_i32, %c0_i32_0 : i32, i32
  }
  func.func @transform_4(%arg0: i32) -> (i32, i32) {
    %c0_i32 = arith.constant 0 : i32
    %c0_i32_0 = arith.constant 0 : i32
    %c0_i32_1 = arith.constant 0 : i32
    return %c0_i32, %c0_i32_0 : i32, i32
  }
  func.func @transform_5(%arg0: i32) -> (i32, i32) {
    %c0_i32 = arith.constant 0 : i32
    %c0_i32_0 = arith.constant 0 : i32
    %c0_i32_1 = arith.constant 0 : i32
    return %c0_i32, %c0_i32_0 : i32, i32
  }
  func.func @transform_6(%arg0: i32) -> (i32, i32) {
    %c0_i32 = arith.constant 0 : i32
    %c0_i32_0 = arith.constant 0 : i32
    %c0_i32_1 = arith.constant 0 : i32
    return %c0_i32, %c0_i32_0 : i32, i32
  }
  func.func @transform_7(%arg0: i32) -> (i32, i32) {
    %c0_i32 = arith.constant 0 : i32
    %c0_i32_0 = arith.constant 0 : i32
    return %arg0, %c0_i32 : i32, i32
  }
}

module attributes {stable_mosaic.version = 11 : i64} {
  func.func @_mlp_kernel(%arg0: i32, %arg1: memref<8x40xf32, #tpu.memory_space<vmem>>, %arg2: memref<40x640xbf16, #tpu.memory_space<vmem>>, %arg3: memref<1x640xf32, #tpu.memory_space<vmem>>, %arg4: memref<640x640xbf16, #tpu.memory_space<vmem>>, %arg5: memref<1x640xf32, #tpu.memory_space<vmem>>, %arg6: memref<640x128xbf16, #tpu.memory_space<vmem>>, %arg7: memref<1x128xf32, #tpu.memory_space<vmem>>, %arg8: memref<8x128xf32, #tpu.memory_space<vmem>>) attributes {dimension_semantics = [#tpu.dimension_semantics<parallel>], iteration_bounds = array<i64: 1>, scalar_prefetch = 0 : i64, scratch_operands = 0 : i64, tpu.core_type = #tpu.core_type<tc>, window_params = [{transform_indices = @transform_0, window_bounds = array<i64: 8, 40>}, {pipeline_mode = #tpu.pipeline_mode<synchronous>, transform_indices = @transform_1, window_bounds = array<i64: 40, 640>}, {pipeline_mode = #tpu.pipeline_mode<synchronous>, transform_indices = @transform_2, window_bounds = array<i64: 1, 640>}, {pipeline_mode = #tpu.pipeline_mode<synchronous>, transform_indices = @transform_3, window_bounds = array<i64: 640, 640>}, {pipeline_mode = #tpu.pipeline_mode<synchronous>, transform_indices = @transform_4, window_bounds = array<i64: 1, 640>}, {pipeline_mode = #tpu.pipeline_mode<synchronous>, transform_indices = @transform_5, window_bounds = array<i64: 640, 128>}, {pipeline_mode = #tpu.pipeline_mode<synchronous>, transform_indices = @transform_6, window_bounds = array<i64: 1, 128>}, {transform_indices = @transform_7, window_bounds = array<i64: 8, 128>}]} {
    %c0 = arith.constant 0 : index
    %c0_0 = arith.constant 0 : index
    %0 = vector.load %arg1[%c0, %c0_0] : memref<8x40xf32, #tpu.memory_space<vmem>>, vector<8x40xf32>
    %1 = arith.truncf %0 : vector<8x40xf32> to vector<8x40xbf16>
    %c0_1 = arith.constant 0 : index
    %c0_2 = arith.constant 0 : index
    %2 = vector.load %arg2[%c0_1, %c0_2] : memref<40x640xbf16, #tpu.memory_space<vmem>>, vector<40x640xbf16>
    %cst = arith.constant dense<0.000000e+00> : vector<8x640xf32>
    %3 = tpu.matmul %1, %2, %cst {dimension_numbers = #tpu.dot_dimension_numbers<[1], [0], [0], [1], [0, 0, 1, 1], [], []>} : vector<8x40xbf16>, vector<40x640xbf16>, vector<8x640xf32> -> vector<8x640xf32>
    %4 = arith.truncf %3 : vector<8x640xf32> to vector<8x640xbf16>
    %c0_3 = arith.constant 0 : index
    %c0_4 = arith.constant 0 : index
    %5 = vector.load %arg3[%c0_3, %c0_4] : memref<1x640xf32, #tpu.memory_space<vmem>>, vector<1x640xf32>
    %6 = arith.truncf %5 : vector<1x640xf32> to vector<1x640xbf16>
    %7 = vector.broadcast %6 : vector<1x640xbf16> to vector<8x640xbf16>
    %8 = arith.addf %4, %7 : vector<8x640xbf16>
    %cst_5 = arith.constant 0.000000e+00 : bf16
    %9 = vector.broadcast %cst_5 : bf16 to vector<8x640xbf16>
    %10 = arith.maximumf %8, %9 : vector<8x640xbf16>
    %c0_6 = arith.constant 0 : index
    %c0_7 = arith.constant 0 : index
    %11 = vector.load %arg4[%c0_6, %c0_7] : memref<640x640xbf16, #tpu.memory_space<vmem>>, vector<640x640xbf16>
    %cst_8 = arith.constant dense<0.000000e+00> : vector<8x640xf32>
    %12 = tpu.matmul %10, %11, %cst_8 {dimension_numbers = #tpu.dot_dimension_numbers<[1], [0], [0], [1], [0, 0, 1, 1], [], []>} : vector<8x640xbf16>, vector<640x640xbf16>, vector<8x640xf32> -> vector<8x640xf32>
    %13 = arith.truncf %12 : vector<8x640xf32> to vector<8x640xbf16>
    %c0_9 = arith.constant 0 : index
    %c0_10 = arith.constant 0 : index
    %14 = vector.load %arg5[%c0_9, %c0_10] : memref<1x640xf32, #tpu.memory_space<vmem>>, vector<1x640xf32>
    %15 = arith.truncf %14 : vector<1x640xf32> to vector<1x640xbf16>
    %16 = vector.broadcast %15 : vector<1x640xbf16> to vector<8x640xbf16>
    %17 = arith.addf %13, %16 : vector<8x640xbf16>
    %cst_11 = arith.constant 0.000000e+00 : bf16
    %18 = vector.broadcast %cst_11 : bf16 to vector<8x640xbf16>
    %19 = arith.maximumf %17, %18 : vector<8x640xbf16>
    %c0_12 = arith.constant 0 : index
    %c0_13 = arith.constant 0 : index
    %20 = vector.load %arg6[%c0_12, %c0_13] : memref<640x128xbf16, #tpu.memory_space<vmem>>, vector<640x128xbf16>
    %cst_14 = arith.constant dense<0.000000e+00> : vector<8x128xf32>
    %21 = tpu.matmul %19, %20, %cst_14 {dimension_numbers = #tpu.dot_dimension_numbers<[1], [0], [0], [1], [0, 0, 1, 1], [], []>} : vector<8x640xbf16>, vector<640x128xbf16>, vector<8x128xf32> -> vector<8x128xf32>
    %c0_15 = arith.constant 0 : index
    %c0_16 = arith.constant 0 : index
    %22 = vector.load %arg7[%c0_15, %c0_16] : memref<1x128xf32, #tpu.memory_space<vmem>>, vector<1x128xf32>
    %23 = vector.broadcast %22 : vector<1x128xf32> to vector<8x128xf32>
    %24 = arith.addf %21, %23 : vector<8x128xf32>
    %c0_17 = arith.constant 0 : index
    %c0_18 = arith.constant 0 : index
    %25 = vector.load %arg8[%c0_17, %c0_18] : memref<8x128xf32, #tpu.memory_space<vmem>>, vector<8x128xf32>
    tpu.vector_store %arg8[%c0_17, %c0_18], %24 {strides = array<i32>} : memref<8x128xf32, #tpu.memory_space<vmem>>, vector<8x128xf32>,
    return
  }
  func.func @transform_0(%arg0: i32) -> (i32, i32) {
    %c0_i32 = arith.constant 0 : i32
    %c0_i32_0 = arith.constant 0 : i32
    return %arg0, %c0_i32 : i32, i32
  }
  func.func @transform_1(%arg0: i32) -> (i32, i32) {
    %c0_i32 = arith.constant 0 : i32
    %c0_i32_0 = arith.constant 0 : i32
    %c0_i32_1 = arith.constant 0 : i32
    return %c0_i32, %c0_i32_0 : i32, i32
  }
  func.func @transform_2(%arg0: i32) -> (i32, i32) {
    %c0_i32 = arith.constant 0 : i32
    %c0_i32_0 = arith.constant 0 : i32
    %c0_i32_1 = arith.constant 0 : i32
    return %c0_i32, %c0_i32_0 : i32, i32
  }
  func.func @transform_3(%arg0: i32) -> (i32, i32) {
    %c0_i32 = arith.constant 0 : i32
    %c0_i32_0 = arith.constant 0 : i32
    %c0_i32_1 = arith.constant 0 : i32
    return %c0_i32, %c0_i32_0 : i32, i32
  }
  func.func @transform_4(%arg0: i32) -> (i32, i32) {
    %c0_i32 = arith.constant 0 : i32
    %c0_i32_0 = arith.constant 0 : i32
    %c0_i32_1 = arith.constant 0 : i32
    return %c0_i32, %c0_i32_0 : i32, i32
  }
  func.func @transform_5(%arg0: i32) -> (i32, i32) {
    %c0_i32 = arith.constant 0 : i32
    %c0_i32_0 = arith.constant 0 : i32
    %c0_i32_1 = arith.constant 0 : i32
    return %c0_i32, %c0_i32_0 : i32, i32
  }
  func.func @transform_6(%arg0: i32) -> (i32, i32) {
    %c0_i32 = arith.constant 0 : i32
    %c0_i32_0 = arith.constant 0 : i32
    %c0_i32_1 = arith.constant 0 : i32
    return %c0_i32, %c0_i32_0 : i32, i32
  }
  func.func @transform_7(%arg0: i32) -> (i32, i32) {
    %c0_i32 = arith.constant 0 : i32
    %c0_i32_0 = arith.constant 0 : i32
    return %arg0, %c0_i32 : i32, i32
  }
}

</mosaic_0001>

<llo_original>
// kernel: tpu_custom_call.1
$region0: #{tpu_custom_call.1}
  #allocation0 [shape = 'u32[]', space=smem, size = 0x4, offset = 0x4, fixed_abs, tag = 'smem constant byte address 0x4 - core index']
  #allocation1 [shape = 'u32[144,128]{1,0:T(1,128)}', space=vmem, size = 0x12000, scoped, tag = 'internal scratch']
  %s0 = inlined_call_operand.hbm [shape: f32[8,40], index: 0, kind: input, shape index: {}]
  %s1 = inlined_call_operand.hbm [shape: bf16[40,640], index: 1, kind: input, shape index: {}]
  %s2 = inlined_call_operand.hbm [shape: f32[1,640], index: 2, kind: input, shape index: {}]
  %s3 = inlined_call_operand.hbm [shape: bf16[640,640], index: 3, kind: input, shape index: {}]
  %s4 = inlined_call_operand.vmem [shape: f32[1,640], index: 4, kind: input, shape index: {}]
  %s5 = inlined_call_operand.hbm [shape: bf16[640,128], index: 5, kind: input, shape index: {}]
  %s6 = inlined_call_operand.vmem [shape: f32[1,128], index: 6, kind: input, shape index: {}]
  %s7 = inlined_call_operand.hbm [shape: f32[8,128], index: 7, kind: output, shape index: {}]
  %s8 = sld [smem:[#allocation0]]
  $region58: #{tpu_custom_call.1} parent=0
    _
  %s10 = ssub.s32 1, %s8
  %s11 = scalar_select 0, %s10, %s8
  $region1: #{tpu_custom_call.1} parent=0
    #allocation2 [shape = 'u8[4096]{0}', space=vmem, size = 0x1000, scoped, tag = 'input window, operand 0, single buffered']
    #allocation3 [shape = 's32[1]{0}', space=sflag, size = 0x4, scoped, tag = 'scoped memory for tpu_custom_call.1']
    #allocation4 [shape = 's32[1]{0}', space=sflag, size = 0x4, scoped, tag = 'scoped memory for tpu_custom_call.1']
    #allocation5 [shape = 'u8[51200]{0}', space=vmem, size = 0xc800, scoped, tag = 'input window, operand 1, single buffered']
    #allocation6 [shape = 's32[1]{0}', space=sflag, size = 0x4, scoped, tag = 'scoped memory for tpu_custom_call.1']
    #allocation7 [shape = 'u8[2560]{0}', space=vmem, size = 0xc00, scoped, tag = 'input window, operand 2, single buffered']
    #allocation8 [shape = 'u8[819200]{0}', space=vmem, size = 0xc8000, scoped, tag = 'input window, operand 3, single buffered']
    #allocation9 [shape = 's32[1]{0}', space=sflag, size = 0x4, scoped, tag = 'scoped memory for tpu_custom_call.1']
    #allocation10 [shape = 'u8[163840]{0}', space=vmem, size = 0x28000, scoped, tag = 'input window, operand 5, single buffered']
    #allocation11 [shape = 'u8[4096]{0}', space=vmem, size = 0x1000, scoped, tag = 'output window, operand 0, single buffered']
    %12 = vsyncpa [#allocation3], 0
    %13 = vsyncpa [#allocation6], 0
    %14 = vsyncpa [#allocation9], 0
    %15 = vsyncpa [#allocation4], 0
    // Predicated region
    $region2: #{tpu_custom_call.1} parent=1 // pred_check
      _
    $region3: #{tpu_custom_call.1} parent=1 // pred_check_branch
      %17 = sbr.rel (0) target = $region5
    $region4: #{tpu_custom_call.1} parent=1 // pred_region
      %s19 = ssub.s32 128, 128
      %20 = vsyncadd [#allocation3], %s19
      %s22 = sshll.u32 [#allocation2], 4
      %s23 = int_to_ptr.vmem [resolvable:$true] %s22
      %25 = dma.hbm_to_vmem [thread:$0]  %s0, 128, %s23, [#allocation3]
    $region5: #{tpu_custom_call.1} parent=1 // pred_fallthru
      _
    // Predicated region
    $region6: #{tpu_custom_call.1} parent=1 // pred_check
      _
    $region7: #{tpu_custom_call.1} parent=1 // pred_check_branch
      %27 = sbr.rel (0) target = $region9
    $region8: #{tpu_custom_call.1} parent=1 // pred_region
      %s29 = ssub.s32 1600, 1600
      %30 = vsyncadd [#allocation6], %s29
      %s31 = sshll.u32 [#allocation5], 4
      %s32 = int_to_ptr.vmem [resolvable:$true] %s31
      %37 = dma.hbm_to_vmem [thread:$0]  %s1, 1600, %s32, [#allocation6], 320, 320, 20
    $region9: #{tpu_custom_call.1} parent=1 // pred_fallthru
      _
    // Predicated region
    $region10: #{tpu_custom_call.1} parent=1 // pred_check
      _
    $region11: #{tpu_custom_call.1} parent=1 // pred_check_branch
      %39 = sbr.rel (0) target = $region13
    $region12: #{tpu_custom_call.1} parent=1 // pred_region
      %s41 = ssub.s32 80, 80
      %42 = vsyncadd [#allocation6], %s41
      %s44 = sshll.u32 [#allocation7], 4
      %s45 = int_to_ptr.vmem [resolvable:$true] %s44
      %47 = dma.hbm_to_vmem [thread:$0]  %s2, 80, %s45, [#allocation6]
    $region13: #{tpu_custom_call.1} parent=1 // pred_fallthru
      _
    // Predicated region
    $region14: #{tpu_custom_call.1} parent=1 // pred_check
      _
    $region15: #{tpu_custom_call.1} parent=1 // pred_check_branch
      %49 = sbr.rel (0) target = $region17
    $region16: #{tpu_custom_call.1} parent=1 // pred_region
      %s51 = ssub.s32 25600, 25600
      %52 = vsyncadd [#allocation9], %s51
      %s53 = sshll.u32 [#allocation8], 4
      %s54 = int_to_ptr.vmem [resolvable:$true] %s53
      %59 = dma.hbm_to_vmem [thread:$0]  %s3, 25600, %s54, [#allocation9], 320, 320, 20
    $region17: #{tpu_custom_call.1} parent=1 // pred_fallthru
      _
    // Predicated region
    $region18: #{tpu_custom_call.1} parent=1 // pred_check
      _
    $region19: #{tpu_custom_call.1} parent=1 // pred_check_branch
      %61 = sbr.rel (0) target = $region21
    $region20: #{tpu_custom_call.1} parent=1 // pred_region
      _
    $region21: #{tpu_custom_call.1} parent=1 // pred_fallthru
      _
    // Predicated region
    $region22: #{tpu_custom_call.1} parent=1 // pred_check
      _
    $region23: #{tpu_custom_call.1} parent=1 // pred_check_branch
      %63 = sbr.rel (0) target = $region25
    $region24: #{tpu_custom_call.1} parent=1 // pred_region
      %s65 = ssub.s32 5120, 5120
      %66 = vsyncadd [#allocation9], %s65
      %s67 = sshll.u32 [#allocation10], 4
      %s68 = int_to_ptr.vmem [resolvable:$true] %s67
      %73 = dma.hbm_to_vmem [thread:$0]  %s5, 5120, %s68, [#allocation9], 64, 64, 4
    $region25: #{tpu_custom_call.1} parent=1 // pred_fallthru
      _
    // Predicated region
    $region26: #{tpu_custom_call.1} parent=1 // pred_check
      _
    $region27: #{tpu_custom_call.1} parent=1 // pred_check_branch
      %75 = sbr.rel (0) target = $region29
    $region28: #{tpu_custom_call.1} parent=1 // pred_region
      _
    $region29: #{tpu_custom_call.1} parent=1 // pred_fallthru
      _
    // Predicated region
    $region30: #{tpu_custom_call.1} parent=1 // pred_check
      _
    $region31: #{tpu_custom_call.1} parent=1 // pred_check_branch
      %77 = sbr.rel (0) target = $region33
    $region32: #{tpu_custom_call.1} parent=1 // pred_region
      %78 = dma.done [#allocation3], 128
    $region33: #{tpu_custom_call.1} parent=1 // pred_fallthru
      _
    // Predicated region
    $region34: #{tpu_custom_call.1} parent=1 // pred_check
      _
    $region35: #{tpu_custom_call.1} parent=1 // pred_check_branch
      %80 = sbr.rel (0) target = $region37
    $region36: #{tpu_custom_call.1} parent=1 // pred_region
      %81 = dma.done [#allocation6], 1600
    $region37: #{tpu_custom_call.1} parent=1 // pred_fallthru
      _
    // Predicated region
    $region38: #{tpu_custom_call.1} parent=1 // pred_check
      _
    $region39: #{tpu_custom_call.1} parent=1 // pred_check_branch
      %83 = sbr.rel (0) target = $region41
    $region40: #{tpu_custom_call.1} parent=1 // pred_region
      %84 = dma.done [#allocation6], 80
    $region41: #{tpu_custom_call.1} parent=1 // pred_fallthru
      _
    // Predicated region
    $region42: #{tpu_custom_call.1} parent=1 // pred_check
      _
    $region43: #{tpu_custom_call.1} parent=1 // pred_check_branch
      %86 = sbr.rel (0) target = $region45
    $region44: #{tpu_custom_call.1} parent=1 // pred_region
      %87 = dma.done [#allocation9], 25600
    $region45: #{tpu_custom_call.1} parent=1 // pred_fallthru
      _
    // Predicated region
    $region46: #{tpu_custom_call.1} parent=1 // pred_check
      _
    $region47: #{tpu_custom_call.1} parent=1 // pred_check_branch
      %89 = sbr.rel (0) target = $region49
    $region48: #{tpu_custom_call.1} parent=1 // pred_region
      %90 = dma.done [#allocation9], 5120
    $region49: #{tpu_custom_call.1} parent=1 // pred_fallthru
      _
    %v92 = vld [vmem:[#allocation2] sm:$0xff]
    %v93 = vpack.c.bf16 %v92, %v92
    %v94 = vld [vmem:[#allocation5] sm:$0xff]
    %v95 = vld [vmem:[#allocation5 + $0x8] sm:$0xff]
    %v96 = vld [vmem:[#allocation5 + $0x10] sm:$0xf]
    %v97 = vld [vmem:[#allocation5 + $0x14] sm:$0xff]
    %v98 = vld [vmem:[#allocation5 + $0x1c] sm:$0xff]
    %v99 = vld [vmem:[#allocation5 + $0x24] sm:$0xf]
    %v100 = vld [vmem:[#allocation5 + $0x28] sm:$0xff]
    %v101 = vld [vmem:[#allocation5 + $0x30] sm:$0xff]
    %v102 = vld [vmem:[#allocation5 + $0x38] sm:$0xf]
    %v103 = vld [vmem:[#allocation5 + $0x3c] sm:$0xff]
    %v104 = vld [vmem:[#allocation5 + $0x44] sm:$0xff]
    %v105 = vld [vmem:[#allocation5 + $0x4c] sm:$0xf]
    %v106 = vld [vmem:[#allocation5 + $0x50] sm:$0xff]
    %v107 = vld [vmem:[#allocation5 + $0x58] sm:$0xff]
    %v108 = vld [vmem:[#allocation5 + $0x60] sm:$0xf]
    %v124 = vunpack.c.l.b16 %v94
    %v125 = vunpack.c.h.b16 %v94
    %v126 = vunpack.c.l.b16 %v95
    %v127 = vunpack.c.h.b16 %v95
    %v128 = vunpack.c.l.b16 %v96
    %v129 = vunpack.c.l.b16 %v97
    %v130 = vunpack.c.h.b16 %v97
    %v131 = vunpack.c.l.b16 %v98
    %v132 = vunpack.c.h.b16 %v98
    %v133 = vunpack.c.l.b16 %v99
    %v134 = vunpack.c.l.b16 %v100
    %v135 = vunpack.c.h.b16 %v100
    %v136 = vunpack.c.l.b16 %v101
    %v137 = vunpack.c.h.b16 %v101
    %v138 = vunpack.c.l.b16 %v102
    %v139 = vunpack.c.l.b16 %v103
    %v140 = vunpack.c.h.b16 %v103
    %v141 = vunpack.c.l.b16 %v104
    %v142 = vunpack.c.h.b16 %v104
    %v143 = vunpack.c.l.b16 %v105
    %v144 = vunpack.c.l.b16 %v106
    %v145 = vunpack.c.h.b16 %v106
    %v146 = vunpack.c.l.b16 %v107
    %v147 = vunpack.c.h.b16 %v107
    %v148 = vunpack.c.l.b16 %v108
    %v149 = vpack.c.b16 %v129, %v124
    %v150 = vpack.c.b16 %v130, %v125
    %v151 = vpack.c.b16 %v131, %v126
    %v152 = vpack.c.b16 %v132, %v127
    %v153 = vpack.c.b16 %v133, %v128
    %v154 = vpack.c.b16 %v139, %v134
    %v155 = vpack.c.b16 %v140, %v135
    %v156 = vpack.c.b16 %v141, %v136
    %v157 = vpack.c.b16 %v142, %v137
    %v158 = vpack.c.b16 %v143, %v138
    %v159 = vpack.c.b16 %v144, %v144
    %v160 = vpack.c.b16 %v145, %v145
    %v161 = vpack.c.b16 %v146, %v146
    %v162 = vpack.c.b16 %v147, %v147
    %v163 = vpack.c.b16 %v148, %v148
    %vm174 = vcmask 326656
    %v176 = vsel %vm174, %v93, 0
    %vm178 = vcmask 1043456
    %v180 = vsel %vm178, %v159, 0
    %v183 = vsel %vm178, %v160, 0
    %v186 = vsel %vm178, %v161, 0
    %v189 = vsel %vm178, %v162, 0
    %v192 = vsel %vm178, %v163, 0
    %194 = vmatprep.subr.bf16.mxu0 0
    %195 = vmatpush1.bf16.msra.mxu0 0
    %196 = vmatprep.subr.bf16.mxu0 0
    %197 = vmatpush1.bf16.msra.mxu0 0
    %198 = vmatprep.subr.bf16.mxu0 0
    %199 = vmatpush1.bf16.msra.mxu0 0
    %200 = vmatprep.subr.bf16.mxu0 0
    %201 = vmatpush1.bf16.msra.mxu0 0
    %202 = vmatprep.subr.bf16.mxu0 0
    %203 = vmatpush1.bf16.msra.mxu0 0
    %204 = vmatprep.subr.bf16.mxu0 %v183
    %205 = vmatpush1.bf16.msra.mxu0 %v180
    %206 = vmatprep.subr.bf16.mxu0 %v155
    %207 = vmatpush1.bf16.msra.mxu0 %v154
    %208 = vmatprep.subr.bf16.mxu0 %v150
    %209 = vmatpush1.bf16.msra.mxu0 %v149
    %210 = vmatprep.subr.bf16.mxu0 0
    %211 = vmatpush2.bf16.msra.mxu0 0
    %212 = vmatprep.subr.bf16.mxu0 0
    %213 = vmatpush2.bf16.msra.mxu0 0
    %214 = vmatprep.subr.bf16.mxu0 0
    %215 = vmatpush2.bf16.msra.mxu0 0
    %216 = vmatprep.subr.bf16.mxu0 0
    %217 = vmatpush2.bf16.msra.mxu0 0
    %218 = vmatprep.subr.bf16.mxu0 0
    %219 = vmatpush2.bf16.msra.mxu0 0
    %220 = vmatprep.subr.bf16.mxu0 0
    %221 = vmatpush2.bf16.msra.mxu0 0
    %222 = vmatprep.subr.bf16.mxu0 0
    %223 = vmatpush2.bf16.msra.mxu0 0
    %224 = vmatprep.subr.bf16.mxu0 0
    %225 = vmatpush2.bf16.msra.mxu0 0
    %226 = vmatprep.mubr.bf16.mxu0 0
    %227 = vmatmul.mubr.bf16.gmra.mxu0 %v176
    %v228 = vpop.f32.mrf.mxu0
    %v229 = vadd.f32 0.0, %v228
    %v230 = vpop.f32.mrf.mxu0
    %v231 = vadd.f32 0.0, %v230
    %v232 = vpop.f32.mrf.mxu0
    %v233 = vpop.f32.mrf.mxu0
    %234 = vdwg.mxu0
    %235 = vmatprep.subr.bf16.mxu0 0
    %236 = vmatpush1.bf16.msra.mxu0 0
    %237 = vmatprep.subr.bf16.mxu0 0
    %238 = vmatpush1.bf16.msra.mxu0 0
    %239 = vmatprep.subr.bf16.mxu0 0
    %240 = vmatpush1.bf16.msra.mxu0 0
    %241 = vmatprep.subr.bf16.mxu0 0
    %242 = vmatpush1.bf16.msra.mxu0 0
    %243 = vmatprep.subr.bf16.mxu0 0
    %244 = vmatpush1.bf16.msra.mxu0 0
    %245 = vmatprep.subr.bf16.mxu0 %v189
    %246 = vmatpush1.bf16.msra.mxu0 %v186
    %247 = vmatprep.subr.bf16.mxu0 %v157
    %248 = vmatpush1.bf16.msra.mxu0 %v156
    %249 = vmatprep.subr.bf16.mxu0 %v152
    %250 = vmatpush1.bf16.msra.mxu0 %v151
    %251 = vmatprep.subr.bf16.mxu0 0
    %252 = vmatpush2.bf16.msra.mxu0 0
    %253 = vmatprep.subr.bf16.mxu0 0
    %254 = vmatpush2.bf16.msra.mxu0 0
    %255 = vmatprep.subr.bf16.mxu0 0
    %256 = vmatpush2.bf16.msra.mxu0 0
    %257 = vmatprep.subr.bf16.mxu0 0
    %258 = vmatpush2.bf16.msra.mxu0 0
    %259 = vmatprep.subr.bf16.mxu0 0
    %260 = vmatpush2.bf16.msra.mxu0 0
    %261 = vmatprep.subr.bf16.mxu0 0
    %262 = vmatpush2.bf16.msra.mxu0 0
    %263 = vmatprep.subr.bf16.mxu0 0
    %264 = vmatpush2.bf16.msra.mxu0 0
    %265 = vmatprep.subr.bf16.mxu0 0
    %266 = vmatpush2.bf16.msra.mxu0 0
    %267 = vmatprep.mubr.bf16.mxu0 0
    %268 = vmatmul.mubr.bf16.gmra.mxu0 %v176
    %v269 = vpop.f32.mrf.mxu0
    %v270 = vadd.f32 0.0, %v269
    %v271 = vpop.f32.mrf.mxu0
    %v272 = vadd.f32 0.0, %v271
    %v273 = vpop.f32.mrf.mxu0
    %v274 = vpop.f32.mrf.mxu0
    %275 = vdwg.mxu0
    %276 = vmatprep.subr.bf16.mxu0 0
    %277 = vmatpush1.bf16.msra.mxu0 0
    %278 = vmatprep.subr.bf16.mxu0 0
    %279 = vmatpush1.bf16.msra.mxu0 0
    %280 = vmatprep.subr.bf16.mxu0 0
    %281 = vmatpush1.bf16.msra.mxu0 0
    %282 = vmatprep.subr.bf16.mxu0 0
    %283 = vmatpush1.bf16.msra.mxu0 0
    %284 = vmatprep.subr.bf16.mxu0 0
    %285 = vmatpush1.bf16.msra.mxu0 0
    %286 = vmatprep.subr.bf16.mxu0 0
    %287 = vmatpush1.bf16.msra.mxu0 %v192
    %288 = vmatprep.subr.bf16.mxu0 0
    %289 = vmatpush1.bf16.msra.mxu0 %v158
    %290 = vmatprep.subr.bf16.mxu0 0
    %291 = vmatpush1.bf16.msra.mxu0 %v153
    %292 = vmatprep.subr.bf16.mxu0 0
    %293 = vmatpush2.bf16.msra.mxu0 0
    %294 = vmatprep.subr.bf16.mxu0 0
    %295 = vmatpush2.bf16.msra.mxu0 0
    %296 = vmatprep.subr.bf16.mxu0 0
    %297 = vmatpush2.bf16.msra.mxu0 0
    %298 = vmatprep.subr.bf16.mxu0 0
    %299 = vmatpush2.bf16.msra.mxu0 0
    %300 = vmatprep.subr.bf16.mxu0 0
    %301 = vmatpush2.bf16.msra.mxu0 0
    %302 = vmatprep.subr.bf16.mxu0 0
    %303 = vmatpush2.bf16.msra.mxu0 0
    %304 = vmatprep.subr.bf16.mxu0 0
    %305 = vmatpush2.bf16.msra.mxu0 0
    %306 = vmatprep.subr.bf16.mxu0 0
    %307 = vmatpush2.bf16.msra.mxu0 0
    %308 = vmatprep.mubr.bf16.mxu0 0
    %309 = vmatmul.mubr.bf16.gmra.mxu0 %v176
    %v310 = vpop.f32.mrf.mxu0
    %v311 = vadd.f32 0.0, %v310
    %v312 = vpop.f32.mrf.mxu0
    %v313 = vpop.f32.mrf.mxu0
    %v314 = vpop.f32.mrf.mxu0
    %315 = vdwg.mxu0
    %v316 = vpack.c.bf16 %v229, %v229
    %v317 = vpack.c.bf16 %v231, %v231
    %v318 = vpack.c.bf16 %v270, %v270
    %v319 = vpack.c.bf16 %v272, %v272
    %v320 = vpack.c.bf16 %v311, %v311
    %v321 = vld [vmem:[#allocation7] sm:$0x1f]
    %v323 = vlaneseq
    %v324 = vshrl.u32 %v323, 7
    %v325 = vsub.s32 0, %v324
    %v326 = vrot.slane %v321, %v325
    %v327 = vlaneseq
    %v328 = vshrl.u32 %v327, 7
    %v329 = vsub.s32 1, %v328
    %v330 = vrot.slane %v321, %v329
    %v331 = vlaneseq
    %v332 = vshrl.u32 %v331, 7
    %v333 = vsub.s32 2, %v332
    %v334 = vrot.slane %v321, %v333
    %v335 = vlaneseq
    %v336 = vshrl.u32 %v335, 7
    %v337 = vsub.s32 3, %v336
    %v338 = vrot.slane %v321, %v337
    %v339 = vlaneseq
    %v340 = vshrl.u32 %v339, 7
    %v341 = vsub.s32 4, %v340
    %v342 = vrot.slane %v321, %v341
    %v348 = vpack.c.bf16 %v326, %v326
    %v349 = vpack.c.bf16 %v330, %v330
    %v350 = vpack.c.bf16 %v334, %v334
    %v351 = vpack.c.bf16 %v338, %v338
    %v352 = vpack.c.bf16 %v342, %v342
    %v354 = vpack.i.b16 %v348, %v348
    %v356 = vlaneseq
    %v357 = vshrl.u32 %v356, 7
    %v358 = vsub.s32 0, %v357
    %v359 = vrot.slane %v354, %v358
    %v361 = vpack.i.b16 %v349, %v349
    %v363 = vlaneseq
    %v364 = vshrl.u32 %v363, 7
    %v365 = vsub.s32 0, %v364
    %v366 = vrot.slane %v361, %v365
    %v368 = vpack.i.b16 %v350, %v350
    %v370 = vlaneseq
    %v371 = vshrl.u32 %v370, 7
    %v372 = vsub.s32 0, %v371
    %v373 = vrot.slane %v368, %v372
    %v375 = vpack.i.b16 %v351, %v351
    %v377 = vlaneseq
    %v378 = vshrl.u32 %v377, 7
    %v379 = vsub.s32 0, %v378
    %v380 = vrot.slane %v375, %v379
    %v382 = vpack.i.b16 %v352, %v352
    %v384 = vlaneseq
    %v385 = vshrl.u32 %v384, 7
    %v386 = vsub.s32 0, %v385
    %v387 = vrot.slane %v382, %v386
    %v388 = vadd.bf16 %v316, %v359
    %v389 = vadd.bf16 %v317, %v366
    %v390 = vadd.bf16 %v318, %v373
    %v391 = vadd.bf16 %v319, %v380
    %v392 = vadd.bf16 %v320, %v387
    %v393 = vmax.bf16 %v388, 0
    %v394 = vmax.bf16 %v389, 0
    %v395 = vmax.bf16 %v390, 0
    %v396 = vmax.bf16 %v391, 0
    %v397 = vmax.bf16 %v392, 0
    %v398 = vld [vmem:[#allocation8] sm:$0xff]
    %v399 = vld [vmem:[#allocation8 + $0x8] sm:$0xff]
    %v400 = vld [vmem:[#allocation8 + $0x10] sm:$0xf]
    %v401 = vld [vmem:[#allocation8 + $0x14] sm:$0xff]
    %v402 = vld [vmem:[#allocation8 + $0x1c] sm:$0xff]
    %v403 = vld [vmem:[#allocation8 + $0x24] sm:$0xf]
    %v404 = vld [vmem:[#allocation8 + $0x28] sm:$0xff]
    %v405 = vld [vmem:[#allocation8 + $0x30] sm:$0xff]
    %v406 = vld [vmem:[#allocation8 + $0x38] sm:$0xf]
    %v407 = vld [vmem:[#allocation8 + $0x3c] sm:$0xff]
    %v408 = vld [vmem:[#allocation8 + $0x44] sm:$0xff]
    %v409 = vld [vmem:[#allocation8 + $0x4c] sm:$0xf]
    %v410 = vld [vmem:[#allocation8 + $0x50] sm:$0xff]
    %v411 = vld [vmem:[#allocation8 + $0x58] sm:$0xff]
    %v412 = vld [vmem:[#allocation8 + $0x60] sm:$0xf]
    %v413 = vld [vmem:[#allocation8 + $0x64] sm:$0xff]
    %v414 = vld [vmem:[#allocation8 + $0x6c] sm:$0xff]
    %v415 = vld [vmem:[#allocation8 + $0x74] sm:$0xf]
    %v416 = vld [vmem:[#allocation8 + $0x78] sm:$0xff]
    %v417 = vld [vmem:[#allocation8 + $0x80] sm:$0xff]
    %v418 = vld [vmem:[#allocation8 + $0x88] sm:$0xf]
    %v419 = vld [vmem:[#allocation8 + $0x8c] sm:$0xff]
    %v420 = vld [vmem:[#allocation8 + $0x94] sm:$0xff]
    %v421 = vld [vmem:[#allocation8 + $0x9c] sm:$0xf]
    %v422 = vld [vmem:[#allocation8 + $0xa0] sm:$0xff]
    %v423 = vld [vmem:[#allocation8 + $0xa8] sm:$0xff]
    %v424 = vld [vmem:[#allocation8 + $0xb0] sm:$0xf]
    %v425 = vld [vmem:[#allocation8 + $0xb4] sm:$0xff]
    %v426 = vld [vmem:[#allocation8 + $0xbc] sm:$0xff]
    %v427 = vld [vmem:[#allocation8 + $0xc4] sm:$0xf]
    %v428 = vld [vmem:[#allocation8 + $0xc8] sm:$0xff]
    %v429 = vld [vmem:[#allocation8 + $0xd0] sm:$0xff]
    %v430 = vld [vmem:[#allocation8 + $0xd8] sm:$0xf]
    %v431 = vld [vmem:[#allocation8 + $0xdc] sm:$0xff]
    %v432 = vld [vmem:[#allocation8 + $0xe4] sm:$0xff]
    %v433 = vld [vmem:[#allocation8 + $0xec] sm:$0xf]
    %v434 = vld [vmem:[#allocation8 + $0xf0] sm:$0xff]
    %v435 = vld [vmem:[#allocation8 + $0xf8] sm:$0xff]
    %v436 = vld [vmem:[#allocation8 + $0x100] sm:$0xf]
    %v437 = vld [vmem:[#allocation8 + $0x104] sm:$0xff]
    %v438 = vld [vmem:[#allocation8 + $0x10c] sm:$0xff]
    %v439 = vld [vmem:[#allocation8 + $0x114] sm:$0xf]
    %v440 = vld [vmem:[#allocation8 + $0x118] sm:$0xff]
    %v441 = vld [vmem:[#allocation8 + $0x120] sm:$0xff]
    %v442 = vld [vmem:[#allocation8 + $0x128] sm:$0xf]
    %v443 = vld [vmem:[#allocation8 + $0x12c] sm:$0xff]
    %v444 = vld [vmem:[#allocation8 + $0x134] sm:$0xff]
    %v445 = vld [vmem:[#allocation8 + $0x13c] sm:$0xf]
    %v446 = vld [vmem:[#allocation8 + $0x140] sm:$0xff]
    %v447 = vld [vmem:[#allocation8 + $0x148] sm:$0xff]
    %v448 = vld [vmem:[#allocation8 + $0x150] sm:$0xf]
    %v449 = vld [vmem:[#allocation8 + $0x154] sm:$0xff]
    %v450 = vld [vmem:[#allocation8 + $0x15c] sm:$0xff]
    %v451 = vld [vmem:[#allocation8 + $0x164] sm:$0xf]
    %v452 = vld [vmem:[#allocation8 + $0x168] sm:$0xff]
    %v453 = vld [vmem:[#allocation8 + $0x170] sm:$0xff]
    %v454 = vld [vmem:[#allocation8 + $0x178] sm:$0xf]
    %v455 = vld [vmem:[#allocation8 + $0x17c] sm:$0xff]
    %v456 = vld [vmem:[#allocation8 + $0x184] sm:$0xff]
    %v457 = vld [vmem:[#allocation8 + $0x18c] sm:$0xf]
    %v458 = vld [vmem:[#allocation8 + $0x190] sm:$0xff]
    %v459 = vld [vmem:[#allocation8 + $0x198] sm:$0xff]
    %v460 = vld [vmem:[#allocation8 + $0x1a0] sm:$0xf]
    %v461 = vld [vmem:[#allocation8 + $0x1a4] sm:$0xff]
    %v462 = vld [vmem:[#allocation8 + $0x1ac] sm:$0xff]
    %v463 = vld [vmem:[#allocation8 + $0x1b4] sm:$0xf]
    %v464 = vld [vmem:[#allocation8 + $0x1b8] sm:$0xff]
    %v465 = vld [vmem:[#allocation8 + $0x1c0] sm:$0xff]
    %v466 = vld [vmem:[#allocation8 + $0x1c8] sm:$0xf]
    %v467 = vld [vmem:[#allocation8 + $0x1cc] sm:$0xff]
    %v468 = vld [vmem:[#allocation8 + $0x1d4] sm:$0xff]
    %v469 = vld [vmem:[#allocation8 + $0x1dc] sm:$0xf]
    %v470 = vld [vmem:[#allocation8 + $0x1e0] sm:$0xff]
    %v471 = vld [vmem:[#allocation8 + $0x1e8] sm:$0xff]
    %v472 = vld [vmem:[#allocation8 + $0x1f0] sm:$0xf]
    %v473 = vld [vmem:[#allocation8 + $0x1f4] sm:$0xff]
    %v474 = vld [vmem:[#allocation8 + $0x1fc] sm:$0xff]
    %v475 = vld [vmem:[#allocation8 + $0x204] sm:$0xf]
    %v476 = vld [vmem:[#allocation8 + $0x208] sm:$0xff]
    %v477 = vld [vmem:[#allocation8 + $0x210] sm:$0xff]
    %v478 = vld [vmem:[#allocation8 + $0x218] sm:$0xf]
    %v479 = vld [vmem:[#allocation8 + $0x21c] sm:$0xff]
    %v480 = vld [vmem:[#allocation8 + $0x224] sm:$0xff]
    %v481 = vld [vmem:[#allocation8 + $0x22c] sm:$0xf]
    %v482 = vld [vmem:[#allocation8 + $0x230] sm:$0xff]
    %v483 = vld [vmem:[#allocation8 + $0x238] sm:$0xff]
    %v484 = vld [vmem:[#allocation8 + $0x240] sm:$0xf]
    %v485 = vld [vmem:[#allocation8 + $0x244] sm:$0xff]
    %v486 = vld [vmem:[#allocation8 + $0x24c] sm:$0xff]
    %v487 = vld [vmem:[#allocation8 + $0x254] sm:$0xf]
    %v488 = vld [vmem:[#allocation8 + $0x258] sm:$0xff]
    %v489 = vld [vmem:[#allocation8 + $0x260] sm:$0xff]
    %v490 = vld [vmem:[#allocation8 + $0x268] sm:$0xf]
    %v491 = vld [vmem:[#allocation8 + $0x26c] sm:$0xff]
    %v492 = vld [vmem:[#allocation8 + $0x274] sm:$0xff]
    %v493 = vld [vmem:[#allocation8 + $0x27c] sm:$0xf]
    %v494 = vld [vmem:[#allocation8 + $0x280] sm:$0xff]
    %v495 = vld [vmem:[#allocation8 + $0x288] sm:$0xff]
    %v496 = vld [vmem:[#allocation8 + $0x290] sm:$0xf]
    %v497 = vld [vmem:[#allocation8 + $0x294] sm:$0xff]
    %v498 = vld [vmem:[#allocation8 + $0x29c] sm:$0xff]
    %v499 = vld [vmem:[#allocation8 + $0x2a4] sm:$0xf]
    %v500 = vld [vmem:[#allocation8 + $0x2a8] sm:$0xff]
    %v501 = vld [vmem:[#allocation8 + $0x2b0] sm:$0xff]
    %v502 = vld [vmem:[#allocation8 + $0x2b8] sm:$0xf]
    %v503 = vld [vmem:[#allocation8 + $0x2bc] sm:$0xff]
    %v504 = vld [vmem:[#allocation8 + $0x2c4] sm:$0xff]
    %v505 = vld [vmem:[#allocation8 + $0x2cc] sm:$0xf]
    %v506 = vld [vmem:[#allocation8 + $0x2d0] sm:$0xff]
    %v507 = vld [vmem:[#allocation8 + $0x2d8] sm:$0xff]
    %v508 = vld [vmem:[#allocation8 + $0x2e0] sm:$0xf]
    %v509 = vld [vmem:[#allocation8 + $0x2e4] sm:$0xff]
    %v510 = vld [vmem:[#allocation8 + $0x2ec] sm:$0xff]
    %v511 = vld [vmem:[#allocation8 + $0x2f4] sm:$0xf]
    %v512 = vld [vmem:[#allocation8 + $0x2f8] sm:$0xff]
    %v513 = vld [vmem:[#allocation8 + $0x300] sm:$0xff]
    %v514 = vld [vmem:[#allocation8 + $0x308] sm:$0xf]
    %v515 = vld [vmem:[#allocation8 + $0x30c] sm:$0xff]
    %v516 = vld [vmem:[#allocation8 + $0x314] sm:$0xff]
    %v517 = vld [vmem:[#allocation8 + $0x31c] sm:$0xf]
    %v518 = vld [vmem:[#allocation8 + $0x320] sm:$0xff]
    %v519 = vld [vmem:[#allocation8 + $0x328] sm:$0xff]
    %v520 = vld [vmem:[#allocation8 + $0x330] sm:$0xf]
    %v521 = vld [vmem:[#allocation8 + $0x334] sm:$0xff]
    %v522 = vld [vmem:[#allocation8 + $0x33c] sm:$0xff]
    %v523 = vld [vmem:[#allocation8 + $0x344] sm:$0xf]
    %v524 = vld [vmem:[#allocation8 + $0x348] sm:$0xff]
    %v525 = vld [vmem:[#allocation8 + $0x350] sm:$0xff]
    %v526 = vld [vmem:[#allocation8 + $0x358] sm:$0xf]
    %v527 = vld [vmem:[#allocation8 + $0x35c] sm:$0xff]
    %v528 = vld [vmem:[#allocation8 + $0x364] sm:$0xff]
    %v529 = vld [vmem:[#allocation8 + $0x36c] sm:$0xf]
    %v530 = vld [vmem:[#allocation8 + $0x370] sm:$0xff]
    %v531 = vld [vmem:[#allocation8 + $0x378] sm:$0xff]
    %v532 = vld [vmem:[#allocation8 + $0x380] sm:$0xf]
    %v533 = vld [vmem:[#allocation8 + $0x384] sm:$0xff]
    %v534 = vld [vmem:[#allocation8 + $0x38c] sm:$0xff]
    %v535 = vld [vmem:[#allocation8 + $0x394] sm:$0xf]
    %v536 = vld [vmem:[#allocation8 + $0x398] sm:$0xff]
    %v537 = vld [vmem:[#allocation8 + $0x3a0] sm:$0xff]
    %v538 = vld [vmem:[#allocation8 + $0x3a8] sm:$0xf]
    %v539 = vld [vmem:[#allocation8 + $0x3ac] sm:$0xff]
    %v540 = vld [vmem:[#allocation8 + $0x3b4] sm:$0xff]
    %v541 = vld [vmem:[#allocation8 + $0x3bc] sm:$0xf]
    %v542 = vld [vmem:[#allocation8 + $0x3c0] sm:$0xff]
    %v543 = vld [vmem:[#allocation8 + $0x3c8] sm:$0xff]
    %v544 = vld [vmem:[#allocation8 + $0x3d0] sm:$0xf]
    %v545 = vld [vmem:[#allocation8 + $0x3d4] sm:$0xff]
    %v546 = vld [vmem:[#allocation8 + $0x3dc] sm:$0xff]
    %v547 = vld [vmem:[#allocation8 + $0x3e4] sm:$0xf]
    %v548 = vld [vmem:[#allocation8 + $0x3e8] sm:$0xff]
    %v549 = vld [vmem:[#allocation8 + $0x3f0] sm:$0xff]
    %v550 = vld [vmem:[#allocation8 + $0x3f8] sm:$0xf]
    %v551 = vld [vmem:[#allocation8 + $0x3fc] sm:$0xff]
    %v552 = vld [vmem:[#allocation8 + $0x404] sm:$0xff]
    %v553 = vld [vmem:[#allocation8 + $0x40c] sm:$0xf]
    %v554 = vld [vmem:[#allocation8 + $0x410] sm:$0xff]
    %v555 = vld [vmem:[#allocation8 + $0x418] sm:$0xff]
    %v556 = vld [vmem:[#allocation8 + $0x420] sm:$0xf]
    %v557 = vld [vmem:[#allocation8 + $0x424] sm:$0xff]
    %v558 = vld [vmem:[#allocation8 + $0x42c] sm:$0xff]
    %v559 = vld [vmem:[#allocation8 + $0x434] sm:$0xf]
    %v560 = vld [vmem:[#allocation8 + $0x438] sm:$0xff]
    %v561 = vld [vmem:[#allocation8 + $0x440] sm:$0xff]
    %v562 = vld [vmem:[#allocation8 + $0x448] sm:$0xf]
    %v563 = vld [vmem:[#allocation8 + $0x44c] sm:$0xff]
    %v564 = vld [vmem:[#allocation8 + $0x454] sm:$0xff]
    %v565 = vld [vmem:[#allocation8 + $0x45c] sm:$0xf]
    %v566 = vld [vmem:[#allocation8 + $0x460] sm:$0xff]
    %v567 = vld [vmem:[#allocation8 + $0x468] sm:$0xff]
    %v568 = vld [vmem:[#allocation8 + $0x470] sm:$0xf]
    %v569 = vld [vmem:[#allocation8 + $0x474] sm:$0xff]
    %v570 = vld [vmem:[#allocation8 + $0x47c] sm:$0xff]
    %v571 = vld [vmem:[#allocation8 + $0x484] sm:$0xf]
    %v572 = vld [vmem:[#allocation8 + $0x488] sm:$0xff]
    %v573 = vld [vmem:[#allocation8 + $0x490] sm:$0xff]
    %v574 = vld [vmem:[#allocation8 + $0x498] sm:$0xf]
    %v575 = vld [vmem:[#allocation8 + $0x49c] sm:$0xff]
    %v576 = vld [vmem:[#allocation8 + $0x4a4] sm:$0xff]
    %v577 = vld [vmem:[#allocation8 + $0x4ac] sm:$0xf]
    %v578 = vld [vmem:[#allocation8 + $0x4b0] sm:$0xff]
    %v579 = vld [vmem:[#allocation8 + $0x4b8] sm:$0xff]
    %v580 = vld [vmem:[#allocation8 + $0x4c0] sm:$0xf]
    %v581 = vld [vmem:[#allocation8 + $0x4c4] sm:$0xff]
    %v582 = vld [vmem:[#allocation8 + $0x4cc] sm:$0xff]
    %v583 = vld [vmem:[#allocation8 + $0x4d4] sm:$0xf]
    %v584 = vld [vmem:[#allocation8 + $0x4d8] sm:$0xff]
    %v585 = vld [vmem:[#allocation8 + $0x4e0] sm:$0xff]
    %v586 = vld [vmem:[#allocation8 + $0x4e8] sm:$0xf]
    %v587 = vld [vmem:[#allocation8 + $0x4ec] sm:$0xff]
    %v588 = vld [vmem:[#allocation8 + $0x4f4] sm:$0xff]
    %v589 = vld [vmem:[#allocation8 + $0x4fc] sm:$0xf]
    %v590 = vld [vmem:[#allocation8 + $0x500] sm:$0xff]
    %v591 = vld [vmem:[#allocation8 + $0x508] sm:$0xff]
    %v592 = vld [vmem:[#allocation8 + $0x510] sm:$0xf]
    %v593 = vld [vmem:[#allocation8 + $0x514] sm:$0xff]
    %v594 = vld [vmem:[#allocation8 + $0x51c] sm:$0xff]
    %v595 = vld [vmem:[#allocation8 + $0x524] sm:$0xf]
    %v596 = vld [vmem:[#allocation8 + $0x528] sm:$0xff]
    %v597 = vld [vmem:[#allocation8 + $0x530] sm:$0xff]
    %v598 = vld [vmem:[#allocation8 + $0x538] sm:$0xf]
    %v599 = vld [vmem:[#allocation8 + $0x53c] sm:$0xff]
    %v600 = vld [vmem:[#allocation8 + $0x544] sm:$0xff]
    %v601 = vld [vmem:[#allocation8 + $0x54c] sm:$0xf]
    %v602 = vld [vmem:[#allocation8 + $0x550] sm:$0xff]
    %v603 = vld [vmem:[#allocation8 + $0x558] sm:$0xff]
    %v604 = vld [vmem:[#allocation8 + $0x560] sm:$0xf]
    %v605 = vld [vmem:[#allocation8 + $0x564] sm:$0xff]
    %v606 = vld [vmem:[#allocation8 + $0x56c] sm:$0xff]
    %v607 = vld [vmem:[#allocation8 + $0x574] sm:$0xf]
    %v608 = vld [vmem:[#allocation8 + $0x578] sm:$0xff]
    %v609 = vld [vmem:[#allocation8 + $0x580] sm:$0xff]
    %v610 = vld [vmem:[#allocation8 + $0x588] sm:$0xf]
    %v611 = vld [vmem:[#allocation8 + $0x58c] sm:$0xff]
    %v612 = vld [vmem:[#allocation8 + $0x594] sm:$0xff]
    %v613 = vld [vmem:[#allocation8 + $0x59c] sm:$0xf]
    %v614 = vld [vmem:[#allocation8 + $0x5a0] sm:$0xff]
    %v615 = vld [vmem:[#allocation8 + $0x5a8] sm:$0xff]
    %v616 = vld [vmem:[#allocation8 + $0x5b0] sm:$0xf]
    %v617 = vld [vmem:[#allocation8 + $0x5b4] sm:$0xff]
    %v618 = vld [vmem:[#allocation8 + $0x5bc] sm:$0xff]
    %v619 = vld [vmem:[#allocation8 + $0x5c4] sm:$0xf]
    %v620 = vld [vmem:[#allocation8 + $0x5c8] sm:$0xff]
    %v621 = vld [vmem:[#allocation8 + $0x5d0] sm:$0xff]
    %v622 = vld [vmem:[#allocation8 + $0x5d8] sm:$0xf]
    %v623 = vld [vmem:[#allocation8 + $0x5dc] sm:$0xff]
    %v624 = vld [vmem:[#allocation8 + $0x5e4] sm:$0xff]
    %v625 = vld [vmem:[#allocation8 + $0x5ec] sm:$0xf]
    %v626 = vld [vmem:[#allocation8 + $0x5f0] sm:$0xff]
    %v627 = vld [vmem:[#allocation8 + $0x5f8] sm:$0xff]
    %v628 = vld [vmem:[#allocation8 + $0x600] sm:$0xf]
    %v629 = vld [vmem:[#allocation8 + $0x604] sm:$0xff]
    %v630 = vld [vmem:[#allocation8 + $0x60c] sm:$0xff]
    %v631 = vld [vmem:[#allocation8 + $0x614] sm:$0xf]
    %v632 = vld [vmem:[#allocation8 + $0x618] sm:$0xff]
    %v633 = vld [vmem:[#allocation8 + $0x620] sm:$0xff]
    %v634 = vld [vmem:[#allocation8 + $0x628] sm:$0xf]
    %v635 = vld [vmem:[#allocation8 + $0x62c] sm:$0xff]
    %v636 = vld [vmem:[#allocation8 + $0x634] sm:$0xff]
    %v637 = vld [vmem:[#allocation8 + $0x63c] sm:$0xf]
    %v878 = vunpack.c.l.b16 %v398
    %v879 = vunpack.c.h.b16 %v398
    %v880 = vunpack.c.l.b16 %v399
    %v881 = vunpack.c.h.b16 %v399
    %v882 = vunpack.c.l.b16 %v400
    %v883 = vunpack.c.l.b16 %v401
    %v884 = vunpack.c.h.b16 %v401
    %v885 = vunpack.c.l.b16 %v402
    %v886 = vunpack.c.h.b16 %v402
    %v887 = vunpack.c.l.b16 %v403
    %v888 = vunpack.c.l.b16 %v404
    %v889 = vunpack.c.h.b16 %v404
    %v890 = vunpack.c.l.b16 %v405
    %v891 = vunpack.c.h.b16 %v405
    %v892 = vunpack.c.l.b16 %v406
    %v893 = vunpack.c.l.b16 %v407
    %v894 = vunpack.c.h.b16 %v407
    %v895 = vunpack.c.l.b16 %v408
    %v896 = vunpack.c.h.b16 %v408
    %v897 = vunpack.c.l.b16 %v409
    %v898 = vunpack.c.l.b16 %v410
    %v899 = vunpack.c.h.b16 %v410
    %v900 = vunpack.c.l.b16 %v411
    %v901 = vunpack.c.h.b16 %v411
    %v902 = vunpack.c.l.b16 %v412
    %v903 = vunpack.c.l.b16 %v413
    %v904 = vunpack.c.h.b16 %v413
    %v905 = vunpack.c.l.b16 %v414
    %v906 = vunpack.c.h.b16 %v414
    %v907 = vunpack.c.l.b16 %v415
    %v908 = vunpack.c.l.b16 %v416
    %v909 = vunpack.c.h.b16 %v416
    %v910 = vunpack.c.l.b16 %v417
    %v911 = vunpack.c.h.b16 %v417
    %v912 = vunpack.c.l.b16 %v418
    %v913 = vunpack.c.l.b16 %v419
    %v914 = vunpack.c.h.b16 %v419
    %v915 = vunpack.c.l.b16 %v420
    %v916 = vunpack.c.h.b16 %v420
    %v917 = vunpack.c.l.b16 %v421
    %v918 = vunpack.c.l.b16 %v422
    %v919 = vunpack.c.h.b16 %v422
    %v920 = vunpack.c.l.b16 %v423
    %v921 = vunpack.c.h.b16 %v423
    %v922 = vunpack.c.l.b16 %v424
    %v923 = vunpack.c.l.b16 %v425
    %v924 = vunpack.c.h.b16 %v425
    %v925 = vunpack.c.l.b16 %v426
    %v926 = vunpack.c.h.b16 %v426
    %v927 = vunpack.c.l.b16 %v427
    %v928 = vunpack.c.l.b16 %v428
    %v929 = vunpack.c.h.b16 %v428
    %v930 = vunpack.c.l.b16 %v429
    %v931 = vunpack.c.h.b16 %v429
    %v932 = vunpack.c.l.b16 %v430
    %v933 = vunpack.c.l.b16 %v431
    %v934 = vunpack.c.h.b16 %v431
    %v935 = vunpack.c.l.b16 %v432
    %v936 = vunpack.c.h.b16 %v432
    %v937 = vunpack.c.l.b16 %v433
    %v938 = vunpack.c.l.b16 %v434
    %v939 = vunpack.c.h.b16 %v434
    %v940 = vunpack.c.l.b16 %v435
    %v941 = vunpack.c.h.b16 %v435
    %v942 = vunpack.c.l.b16 %v436
    %v943 = vunpack.c.l.b16 %v437
    %v944 = vunpack.c.h.b16 %v437
    %v945 = vunpack.c.l.b16 %v438
    %v946 = vunpack.c.h.b16 %v438
    %v947 = vunpack.c.l.b16 %v439
    %v948 = vunpack.c.l.b16 %v440
    %v949 = vunpack.c.h.b16 %v440
    %v950 = vunpack.c.l.b16 %v441
    %v951 = vunpack.c.h.b16 %v441
    %v952 = vunpack.c.l.b16 %v442
    %v953 = vunpack.c.l.b16 %v443
    %v954 = vunpack.c.h.b16 %v443
    %v955 = vunpack.c.l.b16 %v444
    %v956 = vunpack.c.h.b16 %v444
    %v957 = vunpack.c.l.b16 %v445
    %v958 = vunpack.c.l.b16 %v446
    %v959 = vunpack.c.h.b16 %v446
    %v960 = vunpack.c.l.b16 %v447
    %v961 = vunpack.c.h.b16 %v447
    %v962 = vunpack.c.l.b16 %v448
    %v963 = vunpack.c.l.b16 %v449
    %v964 = vunpack.c.h.b16 %v449
    %v965 = vunpack.c.l.b16 %v450
    %v966 = vunpack.c.h.b16 %v450
    %v967 = vunpack.c.l.b16 %v451
    %v968 = vunpack.c.l.b16 %v452
    %v969 = vunpack.c.h.b16 %v452
    %v970 = vunpack.c.l.b16 %v453
    %v971 = vunpack.c.h.b16 %v453
    %v972 = vunpack.c.l.b16 %v454
    %v973 = vunpack.c.l.b16 %v455
    %v974 = vunpack.c.h.b16 %v455
    %v975 = vunpack.c.l.b16 %v456
    %v976 = vunpack.c.h.b16 %v456
    %v977 = vunpack.c.l.b16 %v457
    %v978 = vunpack.c.l.b16 %v458
    %v979 = vunpack.c.h.b16 %v458
    %v980 = vunpack.c.l.b16 %v459
    %v981 = vunpack.c.h.b16 %v459
    %v982 = vunpack.c.l.b16 %v460
    %v983 = vunpack.c.l.b16 %v461
    %v984 = vunpack.c.h.b16 %v461
    %v985 = vunpack.c.l.b16 %v462
    %v986 = vunpack.c.h.b16 %v462
    %v987 = vunpack.c.l.b16 %v463
    %v988 = vunpack.c.l.b16 %v464
    %v989 = vunpack.c.h.b16 %v464
    %v990 = vunpack.c.l.b16 %v465
    %v991 = vunpack.c.h.b16 %v465
    %v992 = vunpack.c.l.b16 %v466
    %v993 = vunpack.c.l.b16 %v467
    %v994 = vunpack.c.h.b16 %v467
    %v995 = vunpack.c.l.b16 %v468
    %v996 = vunpack.c.h.b16 %v468
    %v997 = vunpack.c.l.b16 %v469
    %v998 = vunpack.c.l.b16 %v470
    %v999 = vunpack.c.h.b16 %v470
    %v1000 = vunpack.c.l.b16 %v471
    %v1001 = vunpack.c.h.b16 %v471
    %v1002 = vunpack.c.l.b16 %v472
    %v1003 = vunpack.c.l.b16 %v473
    %v1004 = vunpack.c.h.b16 %v473
    %v1005 = vunpack.c.l.b16 %v474
    %v1006 = vunpack.c.h.b16 %v474
    %v1007 = vunpack.c.l.b16 %v475
    %v1008 = vunpack.c.l.b16 %v476
    %v1009 = vunpack.c.h.b16 %v476
    %v1010 = vunpack.c.l.b16 %v477
    %v1011 = vunpack.c.h.b16 %v477
    %v1012 = vunpack.c.l.b16 %v478
    %v1013 = vunpack.c.l.b16 %v479
    %v1014 = vunpack.c.h.b16 %v479
    %v1015 = vunpack.c.l.b16 %v480
    %v1016 = vunpack.c.h.b16 %v480
    %v1017 = vunpack.c.l.b16 %v481
    %v1018 = vunpack.c.l.b16 %v482
    %v1019 = vunpack.c.h.b16 %v482
    %v1020 = vunpack.c.l.b16 %v483
    %v1021 = vunpack.c.h.b16 %v483
    %v1022 = vunpack.c.l.b16 %v484
    %v1023 = vunpack.c.l.b16 %v485
    %v1024 = vunpack.c.h.b16 %v485
    %v1025 = vunpack.c.l.b16 %v486
    %v1026 = vunpack.c.h.b16 %v486
    %v1027 = vunpack.c.l.b16 %v487
    %v1028 = vunpack.c.l.b16 %v488
    %v1029 = vunpack.c.h.b16 %v488
    %v1030 = vunpack.c.l.b16 %v489
    %v1031 = vunpack.c.h.b16 %v489
    %v1032 = vunpack.c.l.b16 %v490
    %v1033 = vunpack.c.l.b16 %v491
    %v1034 = vunpack.c.h.b16 %v491
    %v1035 = vunpack.c.l.b16 %v492
    %v1036 = vunpack.c.h.b16 %v492
    %v1037 = vunpack.c.l.b16 %v493
    %v1038 = vunpack.c.l.b16 %v494
    %v1039 = vunpack.c.h.b16 %v494
    %v1040 = vunpack.c.l.b16 %v495
    %v1041 = vunpack.c.h.b16 %v495
    %v1042 = vunpack.c.l.b16 %v496
    %v1043 = vunpack.c.l.b16 %v497
    %v1044 = vunpack.c.h.b16 %v497
    %v1045 = vunpack.c.l.b16 %v498
    %v1046 = vunpack.c.h.b16 %v498
    %v1047 = vunpack.c.l.b16 %v499
    %v1048 = vunpack.c.l.b16 %v500
    %v1049 = vunpack.c.h.b16 %v500
    %v1050 = vunpack.c.l.b16 %v501
    %v1051 = vunpack.c.h.b16 %v501
    %v1052 = vunpack.c.l.b16 %v502
    %v1053 = vunpack.c.l.b16 %v503
    %v1054 = vunpack.c.h.b16 %v503
    %v1055 = vunpack.c.l.b16 %v504
    %v1056 = vunpack.c.h.b16 %v504
    %v1057 = vunpack.c.l.b16 %v505
    %v1058 = vunpack.c.l.b16 %v506
    %v1059 = vunpack.c.h.b16 %v506
    %v1060 = vunpack.c.l.b16 %v507
    %v1061 = vunpack.c.h.b16 %v507
    %v1062 = vunpack.c.l.b16 %v508
    %v1063 = vunpack.c.l.b16 %v509
    %v1064 = vunpack.c.h.b16 %v509
    %v1065 = vunpack.c.l.b16 %v510
    %v1066 = vunpack.c.h.b16 %v510
    %v1067 = vunpack.c.l.b16 %v511
    %v1068 = vunpack.c.l.b16 %v512
    %v1069 = vunpack.c.h.b16 %v512
    %v1070 = vunpack.c.l.b16 %v513
    %v1071 = vunpack.c.h.b16 %v513
    %v1072 = vunpack.c.l.b16 %v514
    %v1073 = vunpack.c.l.b16 %v515
    %v1074 = vunpack.c.h.b16 %v515
    %v1075 = vunpack.c.l.b16 %v516
    %v1076 = vunpack.c.h.b16 %v516
    %v1077 = vunpack.c.l.b16 %v517
    %v1078 = vunpack.c.l.b16 %v518
    %v1079 = vunpack.c.h.b16 %v518
    %v1080 = vunpack.c.l.b16 %v519
    %v1081 = vunpack.c.h.b16 %v519
    %v1082 = vunpack.c.l.b16 %v520
    %v1083 = vunpack.c.l.b16 %v521
    %v1084 = vunpack.c.h.b16 %v521
    %v1085 = vunpack.c.l.b16 %v522
    %v1086 = vunpack.c.h.b16 %v522
    %v1087 = vunpack.c.l.b16 %v523
    %v1088 = vunpack.c.l.b16 %v524
    %v1089 = vunpack.c.h.b16 %v524
    %v1090 = vunpack.c.l.b16 %v525
    %v1091 = vunpack.c.h.b16 %v525
    %v1092 = vunpack.c.l.b16 %v526
    %v1093 = vunpack.c.l.b16 %v527
    %v1094 = vunpack.c.h.b16 %v527
    %v1095 = vunpack.c.l.b16 %v528
    %v1096 = vunpack.c.h.b16 %v528
    %v1097 = vunpack.c.l.b16 %v529
    %v1098 = vunpack.c.l.b16 %v530
    %v1099 = vunpack.c.h.b16 %v530
    %v1100 = vunpack.c.l.b16 %v531
    %v1101 = vunpack.c.h.b16 %v531
    %v1102 = vunpack.c.l.b16 %v532
    %v1103 = vunpack.c.l.b16 %v533
    %v1104 = vunpack.c.h.b16 %v533
    %v1105 = vunpack.c.l.b16 %v534
    %v1106 = vunpack.c.h.b16 %v534
    %v1107 = vunpack.c.l.b16 %v535
    %v1108 = vunpack.c.l.b16 %v536
    %v1109 = vunpack.c.h.b16 %v536
    %v1110 = vunpack.c.l.b16 %v537
    %v1111 = vunpack.c.h.b16 %v537
    %v1112 = vunpack.c.l.b16 %v538
    %v1113 = vunpack.c.l.b16 %v539
    %v1114 = vunpack.c.h.b16 %v539
    %v1115 = vunpack.c.l.b16 %v540
    %v1116 = vunpack.c.h.b16 %v540
    %v1117 = vunpack.c.l.b16 %v541
    %v1118 = vunpack.c.l.b16 %v542
    %v1119 = vunpack.c.h.b16 %v542
    %v1120 = vunpack.c.l.b16 %v543
    %v1121 = vunpack.c.h.b16 %v543
    %v1122 = vunpack.c.l.b16 %v544
    %v1123 = vunpack.c.l.b16 %v545
    %v1124 = vunpack.c.h.b16 %v545
    %v1125 = vunpack.c.l.b16 %v546
    %v1126 = vunpack.c.h.b16 %v546
    %v1127 = vunpack.c.l.b16 %v547
    %v1128 = vunpack.c.l.b16 %v548
    %v1129 = vunpack.c.h.b16 %v548
    %v1130 = vunpack.c.l.b16 %v549
    %v1131 = vunpack.c.h.b16 %v549
    %v1132 = vunpack.c.l.b16 %v550
    %v1133 = vunpack.c.l.b16 %v551
    %v1134 = vunpack.c.h.b16 %v551
    %v1135 = vunpack.c.l.b16 %v552
    %v1136 = vunpack.c.h.b16 %v552
    %v1137 = vunpack.c.l.b16 %v553
    %v1138 = vunpack.c.l.b16 %v554
    %v1139 = vunpack.c.h.b16 %v554
    %v1140 = vunpack.c.l.b16 %v555
    %v1141 = vunpack.c.h.b16 %v555
    %v1142 = vunpack.c.l.b16 %v556
    %v1143 = vunpack.c.l.b16 %v557
    %v1144 = vunpack.c.h.b16 %v557
    %v1145 = vunpack.c.l.b16 %v558
    %v1146 = vunpack.c.h.b16 %v558
    %v1147 = vunpack.c.l.b16 %v559
    %v1148 = vunpack.c.l.b16 %v560
    %v1149 = vunpack.c.h.b16 %v560
    %v1150 = vunpack.c.l.b16 %v561
    %v1151 = vunpack.c.h.b16 %v561
    %v1152 = vunpack.c.l.b16 %v562
    %v1153 = vunpack.c.l.b16 %v563
    %v1154 = vunpack.c.h.b16 %v563
    %v1155 = vunpack.c.l.b16 %v564
    %v1156 = vunpack.c.h.b16 %v564
    %v1157 = vunpack.c.l.b16 %v565
    %v1158 = vunpack.c.l.b16 %v566
    %v1159 = vunpack.c.h.b16 %v566
    %v1160 = vunpack.c.l.b16 %v567
    %v1161 = vunpack.c.h.b16 %v567
    %v1162 = vunpack.c.l.b16 %v568
    %v1163 = vunpack.c.l.b16 %v569
    %v1164 = vunpack.c.h.b16 %v569
    %v1165 = vunpack.c.l.b16 %v570
    %v1166 = vunpack.c.h.b16 %v570
    %v1167 = vunpack.c.l.b16 %v571
    %v1168 = vunpack.c.l.b16 %v572
    %v1169 = vunpack.c.h.b16 %v572
    %v1170 = vunpack.c.l.b16 %v573
    %v1171 = vunpack.c.h.b16 %v573
    %v1172 = vunpack.c.l.b16 %v574
    %v1173 = vunpack.c.l.b16 %v575
    %v1174 = vunpack.c.h.b16 %v575
    %v1175 = vunpack.c.l.b16 %v576
    %v1176 = vunpack.c.h.b16 %v576
    %v1177 = vunpack.c.l.b16 %v577
    %v1178 = vunpack.c.l.b16 %v578
    %v1179 = vunpack.c.h.b16 %v578
    %v1180 = vunpack.c.l.b16 %v579
    %v1181 = vunpack.c.h.b16 %v579
    %v1182 = vunpack.c.l.b16 %v580
    %v1183 = vunpack.c.l.b16 %v581
    %v1184 = vunpack.c.h.b16 %v581
    %v1185 = vunpack.c.l.b16 %v582
    %v1186 = vunpack.c.h.b16 %v582
    %v1187 = vunpack.c.l.b16 %v583
    %v1188 = vunpack.c.l.b16 %v584
    %v1189 = vunpack.c.h.b16 %v584
    %v1190 = vunpack.c.l.b16 %v585
    %v1191 = vunpack.c.h.b16 %v585
    %v1192 = vunpack.c.l.b16 %v586
    %v1193 = vunpack.c.l.b16 %v587
    %v1194 = vunpack.c.h.b16 %v587
    %v1195 = vunpack.c.l.b16 %v588
    %v1196 = vunpack.c.h.b16 %v588
    %v1197 = vunpack.c.l.b16 %v589
    %v1198 = vunpack.c.l.b16 %v590
    %v1199 = vunpack.c.h.b16 %v590
    %v1200 = vunpack.c.l.b16 %v591
    %v1201 = vunpack.c.h.b16 %v591
    %v1202 = vunpack.c.l.b16 %v592
    %v1203 = vunpack.c.l.b16 %v593
    %v1204 = vunpack.c.h.b16 %v593
    %v1205 = vunpack.c.l.b16 %v594
    %v1206 = vunpack.c.h.b16 %v594
    %v1207 = vunpack.c.l.b16 %v595
    %v1208 = vunpack.c.l.b16 %v596
    %v1209 = vunpack.c.h.b16 %v596
    %v1210 = vunpack.c.l.b16 %v597
    %v1211 = vunpack.c.h.b16 %v597
    %v1212 = vunpack.c.l.b16 %v598
    %v1213 = vunpack.c.l.b16 %v599
    %v1214 = vunpack.c.h.b16 %v599
    %v1215 = vunpack.c.l.b16 %v600
    %v1216 = vunpack.c.h.b16 %v600
    %v1217 = vunpack.c.l.b16 %v601
    %v1218 = vunpack.c.l.b16 %v602
    %v1219 = vunpack.c.h.b16 %v602
    %v1220 = vunpack.c.l.b16 %v603
    %v1221 = vunpack.c.h.b16 %v603
    %v1222 = vunpack.c.l.b16 %v604
    %v1223 = vunpack.c.l.b16 %v605
    %v1224 = vunpack.c.h.b16 %v605
    %v1225 = vunpack.c.l.b16 %v606
    %v1226 = vunpack.c.h.b16 %v606
    %v1227 = vunpack.c.l.b16 %v607
    %v1228 = vunpack.c.l.b16 %v608
    %v1229 = vunpack.c.h.b16 %v608
    %v1230 = vunpack.c.l.b16 %v609
    %v1231 = vunpack.c.h.b16 %v609
    %v1232 = vunpack.c.l.b16 %v610
    %v1233 = vunpack.c.l.b16 %v611
    %v1234 = vunpack.c.h.b16 %v611
    %v1235 = vunpack.c.l.b16 %v612
    %v1236 = vunpack.c.h.b16 %v612
    %v1237 = vunpack.c.l.b16 %v613
    %v1238 = vunpack.c.l.b16 %v614
    %v1239 = vunpack.c.h.b16 %v614
    %v1240 = vunpack.c.l.b16 %v615
    %v1241 = vunpack.c.h.b16 %v615
    %v1242 = vunpack.c.l.b16 %v616
    %v1243 = vunpack.c.l.b16 %v617
    %v1244 = vunpack.c.h.b16 %v617
    %v1245 = vunpack.c.l.b16 %v618
    %v1246 = vunpack.c.h.b16 %v618
    %v1247 = vunpack.c.l.b16 %v619
    %v1248 = vunpack.c.l.b16 %v620
    %v1249 = vunpack.c.h.b16 %v620
    %v1250 = vunpack.c.l.b16 %v621
    %v1251 = vunpack.c.h.b16 %v621
    %v1252 = vunpack.c.l.b16 %v622
    %v1253 = vunpack.c.l.b16 %v623
    %v1254 = vunpack.c.h.b16 %v623
    %v1255 = vunpack.c.l.b16 %v624
    %v1256 = vunpack.c.h.b16 %v624
    %v1257 = vunpack.c.l.b16 %v625
    %v1258 = vunpack.c.l.b16 %v626
    %v1259 = vunpack.c.h.b16 %v626
    %v1260 = vunpack.c.l.b16 %v627
    %v1261 = vunpack.c.h.b16 %v627
    %v1262 = vunpack.c.l.b16 %v628
    %v1263 = vunpack.c.l.b16 %v629
    %v1264 = vunpack.c.h.b16 %v629
    %v1265 = vunpack.c.l.b16 %v630
    %v1266 = vunpack.c.h.b16 %v630
    %v1267 = vunpack.c.l.b16 %v631
    %v1268 = vunpack.c.l.b16 %v632
    %v1269 = vunpack.c.h.b16 %v632
    %v1270 = vunpack.c.l.b16 %v633
    %v1271 = vunpack.c.h.b16 %v633
    %v1272 = vunpack.c.l.b16 %v634
    %v1273 = vunpack.c.l.b16 %v635
    %v1274 = vunpack.c.h.b16 %v635
    %v1275 = vunpack.c.l.b16 %v636
    %v1276 = vunpack.c.h.b16 %v636
    %v1277 = vunpack.c.l.b16 %v637
    %v1278 = vpack.c.b16 %v883, %v878
    %v1279 = vpack.c.b16 %v884, %v879
    %v1280 = vpack.c.b16 %v885, %v880
    %v1281 = vpack.c.b16 %v886, %v881
    %v1282 = vpack.c.b16 %v887, %v882
    %v1283 = vpack.c.b16 %v893, %v888
    %v1284 = vpack.c.b16 %v894, %v889
    %v1285 = vpack.c.b16 %v895, %v890
    %v1286 = vpack.c.b16 %v896, %v891
    %v1287 = vpack.c.b16 %v897, %v892
    %v1288 = vpack.c.b16 %v903, %v898
    %v1289 = vpack.c.b16 %v904, %v899
    %v1290 = vpack.c.b16 %v905, %v900
    %v1291 = vpack.c.b16 %v906, %v901
    %v1292 = vpack.c.b16 %v907, %v902
    %v1293 = vpack.c.b16 %v913, %v908
    %v1294 = vpack.c.b16 %v914, %v909
    %v1295 = vpack.c.b16 %v915, %v910
    %v1296 = vpack.c.b16 %v916, %v911
    %v1297 = vpack.c.b16 %v917, %v912
    %v1298 = vpack.c.b16 %v923, %v918
    %v1299 = vpack.c.b16 %v924, %v919
    %v1300 = vpack.c.b16 %v925, %v920
    %v1301 = vpack.c.b16 %v926, %v921
    %v1302 = vpack.c.b16 %v927, %v922
    %v1303 = vpack.c.b16 %v933, %v928
    %v1304 = vpack.c.b16 %v934, %v929
    %v1305 = vpack.c.b16 %v935, %v930
    %v1306 = vpack.c.b16 %v936, %v931
    %v1307 = vpack.c.b16 %v937, %v932
    %v1308 = vpack.c.b16 %v943, %v938
    %v1309 = vpack.c.b16 %v944, %v939
    %v1310 = vpack.c.b16 %v945, %v940
    %v1311 = vpack.c.b16 %v946, %v941
    %v1312 = vpack.c.b16 %v947, %v942
    %v1313 = vpack.c.b16 %v953, %v948
    %v1314 = vpack.c.b16 %v954, %v949
    %v1315 = vpack.c.b16 %v955, %v950
    %v1316 = vpack.c.b16 %v956, %v951
    %v1317 = vpack.c.b16 %v957, %v952
    %v1318 = vpack.c.b16 %v963, %v958
    %v1319 = vpack.c.b16 %v964, %v959
    %v1320 = vpack.c.b16 %v965, %v960
    %v1321 = vpack.c.b16 %v966, %v961
    %v1322 = vpack.c.b16 %v967, %v962
    %v1323 = vpack.c.b16 %v973, %v968
    %v1324 = vpack.c.b16 %v974, %v969
    %v1325 = vpack.c.b16 %v975, %v970
    %v1326 = vpack.c.b16 %v976, %v971
    %v1327 = vpack.c.b16 %v977, %v972
    %v1328 = vpack.c.b16 %v983, %v978
    %v1329 = vpack.c.b16 %v984, %v979
    %v1330 = vpack.c.b16 %v985, %v980
    %v1331 = vpack.c.b16 %v986, %v981
    %v1332 = vpack.c.b16 %v987, %v982
    %v1333 = vpack.c.b16 %v993, %v988
    %v1334 = vpack.c.b16 %v994, %v989
    %v1335 = vpack.c.b16 %v995, %v990
    %v1336 = vpack.c.b16 %v996, %v991
    %v1337 = vpack.c.b16 %v997, %v992
    %v1338 = vpack.c.b16 %v1003, %v998
    %v1339 = vpack.c.b16 %v1004, %v999
    %v1340 = vpack.c.b16 %v1005, %v1000
    %v1341 = vpack.c.b16 %v1006, %v1001
    %v1342 = vpack.c.b16 %v1007, %v1002
    %v1343 = vpack.c.b16 %v1013, %v1008
    %v1344 = vpack.c.b16 %v1014, %v1009
    %v1345 = vpack.c.b16 %v1015, %v1010
    %v1346 = vpack.c.b16 %v1016, %v1011
    %v1347 = vpack.c.b16 %v1017, %v1012
    %v1348 = vpack.c.b16 %v1023, %v1018
    %v1349 = vpack.c.b16 %v1024, %v1019
    %v1350 = vpack.c.b16 %v1025, %v1020
    %v1351 = vpack.c.b16 %v1026, %v1021
    %v1352 = vpack.c.b16 %v1027, %v1022
    %v1353 = vpack.c.b16 %v1033, %v1028
    %v1354 = vpack.c.b16 %v1034, %v1029
    %v1355 = vpack.c.b16 %v1035, %v1030
    %v1356 = vpack.c.b16 %v1036, %v1031
    %v1357 = vpack.c.b16 %v1037, %v1032
    %v1358 = vpack.c.b16 %v1043, %v1038
    %v1359 = vpack.c.b16 %v1044, %v1039
    %v1360 = vpack.c.b16 %v1045, %v1040
    %v1361 = vpack.c.b16 %v1046, %v1041
    %v1362 = vpack.c.b16 %v1047, %v1042
    %v1363 = vpack.c.b16 %v1053, %v1048
    %v1364 = vpack.c.b16 %v1054, %v1049
    %v1365 = vpack.c.b16 %v1055, %v1050
    %v1366 = vpack.c.b16 %v1056, %v1051
    %v1367 = vpack.c.b16 %v1057, %v1052
    %v1368 = vpack.c.b16 %v1063, %v1058
    %v1369 = vpack.c.b16 %v1064, %v1059
    %v1370 = vpack.c.b16 %v1065, %v1060
    %v1371 = vpack.c.b16 %v1066, %v1061
    %v1372 = vpack.c.b16 %v1067, %v1062
    %v1373 = vpack.c.b16 %v1073, %v1068
    %v1374 = vpack.c.b16 %v1074, %v1069
    %v1375 = vpack.c.b16 %v1075, %v1070
    %v1376 = vpack.c.b16 %v1076, %v1071
    %v1377 = vpack.c.b16 %v1077, %v1072
    %v1378 = vpack.c.b16 %v1083, %v1078
    %v1379 = vpack.c.b16 %v1084, %v1079
    %v1380 = vpack.c.b16 %v1085, %v1080
    %v1381 = vpack.c.b16 %v1086, %v1081
    %v1382 = vpack.c.b16 %v1087, %v1082
    %v1383 = vpack.c.b16 %v1093, %v1088
    %v1384 = vpack.c.b16 %v1094, %v1089
    %v1385 = vpack.c.b16 %v1095, %v1090
    %v1386 = vpack.c.b16 %v1096, %v1091
    %v1387 = vpack.c.b16 %v1097, %v1092
    %v1388 = vpack.c.b16 %v1103, %v1098
    %v1389 = vpack.c.b16 %v1104, %v1099
    %v1390 = vpack.c.b16 %v1105, %v1100
    %v1391 = vpack.c.b16 %v1106, %v1101
    %v1392 = vpack.c.b16 %v1107, %v1102
    %v1393 = vpack.c.b16 %v1113, %v1108
    %v1394 = vpack.c.b16 %v1114, %v1109
    %v1395 = vpack.c.b16 %v1115, %v1110
    %v1396 = vpack.c.b16 %v1116, %v1111
    %v1397 = vpack.c.b16 %v1117, %v1112
    %v1398 = vpack.c.b16 %v1123, %v1118
    %v1399 = vpack.c.b16 %v1124, %v1119
    %v1400 = vpack.c.b16 %v1125, %v1120
    %v1401 = vpack.c.b16 %v1126, %v1121
    %v1402 = vpack.c.b16 %v1127, %v1122
    %v1403 = vpack.c.b16 %v1133, %v1128
    %v1404 = vpack.c.b16 %v1134, %v1129
    %v1405 = vpack.c.b16 %v1135, %v1130
    %v1406 = vpack.c.b16 %v1136, %v1131
    %v1407 = vpack.c.b16 %v1137, %v1132
    %v1408 = vpack.c.b16 %v1143, %v1138
    %v1409 = vpack.c.b16 %v1144, %v1139
    %v1410 = vpack.c.b16 %v1145, %v1140
    %v1411 = vpack.c.b16 %v1146, %v1141
    %v1412 = vpack.c.b16 %v1147, %v1142
    %v1413 = vpack.c.b16 %v1153, %v1148
    %v1414 = vpack.c.b16 %v1154, %v1149
    %v1415 = vpack.c.b16 %v1155, %v1150
    %v1416 = vpack.c.b16 %v1156, %v1151
    %v1417 = vpack.c.b16 %v1157, %v1152
    %v1418 = vpack.c.b16 %v1163, %v1158
    %v1419 = vpack.c.b16 %v1164, %v1159
    %v1420 = vpack.c.b16 %v1165, %v1160
    %v1421 = vpack.c.b16 %v1166, %v1161
    %v1422 = vpack.c.b16 %v1167, %v1162
    %v1423 = vpack.c.b16 %v1173, %v1168
    %v1424 = vpack.c.b16 %v1174, %v1169
    %v1425 = vpack.c.b16 %v1175, %v1170
    %v1426 = vpack.c.b16 %v1176, %v1171
    %v1427 = vpack.c.b16 %v1177, %v1172
    %v1428 = vpack.c.b16 %v1183, %v1178
    %v1429 = vpack.c.b16 %v1184, %v1179
    %v1430 = vpack.c.b16 %v1185, %v1180
    %v1431 = vpack.c.b16 %v1186, %v1181
    %v1432 = vpack.c.b16 %v1187, %v1182
    %v1433 = vpack.c.b16 %v1193, %v1188
    %v1434 = vpack.c.b16 %v1194, %v1189
    %v1435 = vpack.c.b16 %v1195, %v1190
    %v1436 = vpack.c.b16 %v1196, %v1191
    %v1437 = vpack.c.b16 %v1197, %v1192
    %v1438 = vpack.c.b16 %v1203, %v1198
    %v1439 = vpack.c.b16 %v1204, %v1199
    %v1440 = vpack.c.b16 %v1205, %v1200
    %v1441 = vpack.c.b16 %v1206, %v1201
    %v1442 = vpack.c.b16 %v1207, %v1202
    %v1443 = vpack.c.b16 %v1213, %v1208
    %v1444 = vpack.c.b16 %v1214, %v1209
    %v1445 = vpack.c.b16 %v1215, %v1210
    %v1446 = vpack.c.b16 %v1216, %v1211
    %v1447 = vpack.c.b16 %v1217, %v1212
    %v1448 = vpack.c.b16 %v1223, %v1218
    %v1449 = vpack.c.b16 %v1224, %v1219
    %v1450 = vpack.c.b16 %v1225, %v1220
    %v1451 = vpack.c.b16 %v1226, %v1221
    %v1452 = vpack.c.b16 %v1227, %v1222
    %v1453 = vpack.c.b16 %v1233, %v1228
    %v1454 = vpack.c.b16 %v1234, %v1229
    %v1455 = vpack.c.b16 %v1235, %v1230
    %v1456 = vpack.c.b16 %v1236, %v1231
    %v1457 = vpack.c.b16 %v1237, %v1232
    %v1458 = vpack.c.b16 %v1243, %v1238
    %v1459 = vpack.c.b16 %v1244, %v1239
    %v1460 = vpack.c.b16 %v1245, %v1240
    %v1461 = vpack.c.b16 %v1246, %v1241
    %v1462 = vpack.c.b16 %v1247, %v1242
    %v1463 = vpack.c.b16 %v1253, %v1248
    %v1464 = vpack.c.b16 %v1254, %v1249
    %v1465 = vpack.c.b16 %v1255, %v1250
    %v1466 = vpack.c.b16 %v1256, %v1251
    %v1467 = vpack.c.b16 %v1257, %v1252
    %v1468 = vpack.c.b16 %v1263, %v1258
    %v1469 = vpack.c.b16 %v1264, %v1259
    %v1470 = vpack.c.b16 %v1265, %v1260
    %v1471 = vpack.c.b16 %v1266, %v1261
    %v1472 = vpack.c.b16 %v1267, %v1262
    %v1473 = vpack.c.b16 %v1273, %v1268
    %v1474 = vpack.c.b16 %v1274, %v1269
    %v1475 = vpack.c.b16 %v1275, %v1270
    %v1476 = vpack.c.b16 %v1276, %v1271
    %v1477 = vpack.c.b16 %v1277, %v1272
    %1678 = vmatprep.subr.bf16.mxu0 %v1314
    %1679 = vmatpush1.bf16.msra.mxu0 %v1313
    %1680 = vmatprep.subr.bf16.mxu0 %v1309
    %1681 = vmatpush1.bf16.msra.mxu0 %v1308
    %1682 = vmatprep.subr.bf16.mxu0 %v1304
    %1683 = vmatpush1.bf16.msra.mxu0 %v1303
    %1684 = vmatprep.subr.bf16.mxu0 %v1299
    %1685 = vmatpush1.bf16.msra.mxu0 %v1298
    %1686 = vmatprep.subr.bf16.mxu0 %v1294
    %1687 = vmatpush1.bf16.msra.mxu0 %v1293
    %1688 = vmatprep.subr.bf16.mxu0 %v1289
    %1689 = vmatpush1.bf16.msra.mxu0 %v1288
    %1690 = vmatprep.subr.bf16.mxu0 %v1284
    %1691 = vmatpush1.bf16.msra.mxu0 %v1283
    %1692 = vmatprep.subr.bf16.mxu0 %v1279
    %1693 = vmatpush1.bf16.msra.mxu0 %v1278
    %1694 = vmatprep.subr.bf16.mxu0 %v1354
    %1695 = vmatpush2.bf16.msra.mxu0 %v1353
    %1696 = vmatprep.subr.bf16.mxu0 %v1349
    %1697 = vmatpush2.bf16.msra.mxu0 %v1348
    %1698 = vmatprep.subr.bf16.mxu0 %v1344
    %1699 = vmatpush2.bf16.msra.mxu0 %v1343
    %1700 = vmatprep.subr.bf16.mxu0 %v1339
    %1701 = vmatpush2.bf16.msra.mxu0 %v1338
    %1702 = vmatprep.subr.bf16.mxu0 %v1334
    %1703 = vmatpush2.bf16.msra.mxu0 %v1333
    %1704 = vmatprep.subr.bf16.mxu0 %v1329
    %1705 = vmatpush2.bf16.msra.mxu0 %v1328
    %1706 = vmatprep.subr.bf16.mxu0 %v1324
    %1707 = vmatpush2.bf16.msra.mxu0 %v1323
    %1708 = vmatprep.subr.bf16.mxu0 %v1319
    %1709 = vmatpush2.bf16.msra.mxu0 %v1318
    %1710 = vmatprep.mubr.bf16.mxu0 %v394
    %1711 = vmatmul.mubr.bf16.gmra.mxu0 %v393
    %v1712 = vpop.f32.mrf.mxu0
    %v1713 = vadd.f32 0.0, %v1712
    %v1714 = vpop.f32.mrf.mxu0
    %v1715 = vadd.f32 0.0, %v1714
    %v1716 = vpop.f32.mrf.mxu0
    %v1717 = vpop.f32.mrf.mxu0
    %1718 = vdwg.mxu0
    %1719 = vmatprep.subr.bf16.mxu0 %v1394
    %1720 = vmatpush1.bf16.msra.mxu0 %v1393
    %1721 = vmatprep.subr.bf16.mxu0 %v1389
    %1722 = vmatpush1.bf16.msra.mxu0 %v1388
    %1723 = vmatprep.subr.bf16.mxu0 %v1384
    %1724 = vmatpush1.bf16.msra.mxu0 %v1383
    %1725 = vmatprep.subr.bf16.mxu0 %v1379
    %1726 = vmatpush1.bf16.msra.mxu0 %v1378
    %1727 = vmatprep.subr.bf16.mxu0 %v1374
    %1728 = vmatpush1.bf16.msra.mxu0 %v1373
    %1729 = vmatprep.subr.bf16.mxu0 %v1369
    %1730 = vmatpush1.bf16.msra.mxu0 %v1368
    %1731 = vmatprep.subr.bf16.mxu0 %v1364
    %1732 = vmatpush1.bf16.msra.mxu0 %v1363
    %1733 = vmatprep.subr.bf16.mxu0 %v1359
    %1734 = vmatpush1.bf16.msra.mxu0 %v1358
    %1735 = vmatprep.subr.bf16.mxu0 %v1434
    %1736 = vmatpush2.bf16.msra.mxu0 %v1433
    %1737 = vmatprep.subr.bf16.mxu0 %v1429
    %1738 = vmatpush2.bf16.msra.mxu0 %v1428
    %1739 = vmatprep.subr.bf16.mxu0 %v1424
    %1740 = vmatpush2.bf16.msra.mxu0 %v1423
    %1741 = vmatprep.subr.bf16.mxu0 %v1419
    %1742 = vmatpush2.bf16.msra.mxu0 %v1418
    %1743 = vmatprep.subr.bf16.mxu0 %v1414
    %1744 = vmatpush2.bf16.msra.mxu0 %v1413
    %1745 = vmatprep.subr.bf16.mxu0 %v1409
    %1746 = vmatpush2.bf16.msra.mxu0 %v1408
    %1747 = vmatprep.subr.bf16.mxu0 %v1404
    %1748 = vmatpush2.bf16.msra.mxu0 %v1403
    %1749 = vmatprep.subr.bf16.mxu0 %v1399
    %1750 = vmatpush2.bf16.msra.mxu0 %v1398
    %1751 = vmatprep.mubr.bf16.mxu0 %v396
    %1752 = vmatmul.mubr.bf16.gmra.mxu0 %v395
    %v1753 = vpop.f32.mrf.mxu0
    %v1754 = vadd.f32 %v1713, %v1753
    %v1755 = vpop.f32.mrf.mxu0
    %v1756 = vadd.f32 %v1715, %v1755
    %v1757 = vpop.f32.mrf.mxu0
    %v1758 = vpop.f32.mrf.mxu0
    %1759 = vdwg.mxu0
    %1760 = vmatprep.subr.bf16.mxu0 %v1474
    %1761 = vmatpush1.bf16.msra.mxu0 %v1473
    %1762 = vmatprep.subr.bf16.mxu0 %v1469
    %1763 = vmatpush1.bf16.msra.mxu0 %v1468
    %1764 = vmatprep.subr.bf16.mxu0 %v1464
    %1765 = vmatpush1.bf16.msra.mxu0 %v1463
    %1766 = vmatprep.subr.bf16.mxu0 %v1459
    %1767 = vmatpush1.bf16.msra.mxu0 %v1458
    %1768 = vmatprep.subr.bf16.mxu0 %v1454
    %1769 = vmatpush1.bf16.msra.mxu0 %v1453
    %1770 = vmatprep.subr.bf16.mxu0 %v1449
    %1771 = vmatpush1.bf16.msra.mxu0 %v1448
    %1772 = vmatprep.subr.bf16.mxu0 %v1444
    %1773 = vmatpush1.bf16.msra.mxu0 %v1443
    %1774 = vmatprep.subr.bf16.mxu0 %v1439
    %1775 = vmatpush1.bf16.msra.mxu0 %v1438
    %1776 = vmatprep.subr.bf16.mxu0 0
    %1777 = vmatpush2.bf16.msra.mxu0 0
    %1778 = vmatprep.subr.bf16.mxu0 0
    %1779 = vmatpush2.bf16.msra.mxu0 0
    %1780 = vmatprep.subr.bf16.mxu0 0
    %1781 = vmatpush2.bf16.msra.mxu0 0
    %1782 = vmatprep.subr.bf16.mxu0 0
    %1783 = vmatpush2.bf16.msra.mxu0 0
    %1784 = vmatprep.subr.bf16.mxu0 0
    %1785 = vmatpush2.bf16.msra.mxu0 0
    %1786 = vmatprep.subr.bf16.mxu0 0
    %1787 = vmatpush2.bf16.msra.mxu0 0
    %1788 = vmatprep.subr.bf16.mxu0 0
    %1789 = vmatpush2.bf16.msra.mxu0 0
    %1790 = vmatprep.subr.bf16.mxu0 0
    %1791 = vmatpush2.bf16.msra.mxu0 0
    %1792 = vmatprep.mubr.bf16.mxu0 0
    %1793 = vmatmul.mubr.bf16.gmra.mxu0 %v397
    %v1794 = vpop.f32.mrf.mxu0
    %v1795 = vadd.f32 %v1754, %v1794
    %v1796 = vpop.f32.mrf.mxu0
    %v1797 = vadd.f32 %v1756, %v1796
    %v1798 = vpop.f32.mrf.mxu0
    %v1799 = vpop.f32.mrf.mxu0
    %1800 = vdwg.mxu0
    %1801 = vmatprep.subr.bf16.mxu0 %v1316
    %1802 = vmatpush1.bf16.msra.mxu0 %v1315
    %1803 = vmatprep.subr.bf16.mxu0 %v1311
    %1804 = vmatpush1.bf16.msra.mxu0 %v1310
    %1805 = vmatprep.subr.bf16.mxu0 %v1306
    %1806 = vmatpush1.bf16.msra.mxu0 %v1305
    %1807 = vmatprep.subr.bf16.mxu0 %v1301
    %1808 = vmatpush1.bf16.msra.mxu0 %v1300
    %1809 = vmatprep.subr.bf16.mxu0 %v1296
    %1810 = vmatpush1.bf16.msra.mxu0 %v1295
    %1811 = vmatprep.subr.bf16.mxu0 %v1291
    %1812 = vmatpush1.bf16.msra.mxu0 %v1290
    %1813 = vmatprep.subr.bf16.mxu0 %v1286
    %1814 = vmatpush1.bf16.msra.mxu0 %v1285
    %1815 = vmatprep.subr.bf16.mxu0 %v1281
    %1816 = vmatpush1.bf16.msra.mxu0 %v1280
    %1817 = vmatprep.subr.bf16.mxu0 %v1356
    %1818 = vmatpush2.bf16.msra.mxu0 %v1355
    %1819 = vmatprep.subr.bf16.mxu0 %v1351
    %1820 = vmatpush2.bf16.msra.mxu0 %v1350
    %1821 = vmatprep.subr.bf16.mxu0 %v1346
    %1822 = vmatpush2.bf16.msra.mxu0 %v1345
    %1823 = vmatprep.subr.bf16.mxu0 %v1341
    %1824 = vmatpush2.bf16.msra.mxu0 %v1340
    %1825 = vmatprep.subr.bf16.mxu0 %v1336
    %1826 = vmatpush2.bf16.msra.mxu0 %v1335
    %1827 = vmatprep.subr.bf16.mxu0 %v1331
    %1828 = vmatpush2.bf16.msra.mxu0 %v1330
    %1829 = vmatprep.subr.bf16.mxu0 %v1326
    %1830 = vmatpush2.bf16.msra.mxu0 %v1325
    %1831 = vmatprep.subr.bf16.mxu0 %v1321
    %1832 = vmatpush2.bf16.msra.mxu0 %v1320
    %1833 = vmatprep.mubr.bf16.mxu0 %v394
    %1834 = vmatmul.mubr.bf16.gmra.mxu0 %v393
    %v1835 = vpop.f32.mrf.mxu0
    %v1836 = vadd.f32 0.0, %v1835
    %v1837 = vpop.f32.mrf.mxu0
    %v1838 = vadd.f32 0.0, %v1837
    %v1839 = vpop.f32.mrf.mxu0
    %v1840 = vpop.f32.mrf.mxu0
    %1841 = vdwg.mxu0
    %1842 = vmatprep.subr.bf16.mxu0 %v1396
    %1843 = vmatpush1.bf16.msra.mxu0 %v1395
    %1844 = vmatprep.subr.bf16.mxu0 %v1391
    %1845 = vmatpush1.bf16.msra.mxu0 %v1390
    %1846 = vmatprep.subr.bf16.mxu0 %v1386
    %1847 = vmatpush1.bf16.msra.mxu0 %v1385
    %1848 = vmatprep.subr.bf16.mxu0 %v1381
    %1849 = vmatpush1.bf16.msra.mxu0 %v1380
    %1850 = vmatprep.subr.bf16.mxu0 %v1376
    %1851 = vmatpush1.bf16.msra.mxu0 %v1375
    %1852 = vmatprep.subr.bf16.mxu0 %v1371
    %1853 = vmatpush1.bf16.msra.mxu0 %v1370
    %1854 = vmatprep.subr.bf16.mxu0 %v1366
    %1855 = vmatpush1.bf16.msra.mxu0 %v1365
    %1856 = vmatprep.subr.bf16.mxu0 %v1361
    %1857 = vmatpush1.bf16.msra.mxu0 %v1360
    %1858 = vmatprep.subr.bf16.mxu0 %v1436
    %1859 = vmatpush2.bf16.msra.mxu0 %v1435
    %1860 = vmatprep.subr.bf16.mxu0 %v1431
    %1861 = vmatpush2.bf16.msra.mxu0 %v1430
    %1862 = vmatprep.subr.bf16.mxu0 %v1426
    %1863 = vmatpush2.bf16.msra.mxu0 %v1425
    %1864 = vmatprep.subr.bf16.mxu0 %v1421
    %1865 = vmatpush2.bf16.msra.mxu0 %v1420
    %1866 = vmatprep.subr.bf16.mxu0 %v1416
    %1867 = vmatpush2.bf16.msra.mxu0 %v1415
    %1868 = vmatprep.subr.bf16.mxu0 %v1411
    %1869 = vmatpush2.bf16.msra.mxu0 %v1410
    %1870 = vmatprep.subr.bf16.mxu0 %v1406
    %1871 = vmatpush2.bf16.msra.mxu0 %v1405
    %1872 = vmatprep.subr.bf16.mxu0 %v1401
    %1873 = vmatpush2.bf16.msra.mxu0 %v1400
    %1874 = vmatprep.mubr.bf16.mxu0 %v396
    %1875 = vmatmul.mubr.bf16.gmra.mxu0 %v395
    %v1876 = vpop.f32.mrf.mxu0
    %v1877 = vadd.f32 %v1836, %v1876
    %v1878 = vpop.f32.mrf.mxu0
    %v1879 = vadd.f32 %v1838, %v1878
    %v1880 = vpop.f32.mrf.mxu0
    %v1881 = vpop.f32.mrf.mxu0
    %1882 = vdwg.mxu0
    %1883 = vmatprep.subr.bf16.mxu0 %v1476
    %1884 = vmatpush1.bf16.msra.mxu0 %v1475
    %1885 = vmatprep.subr.bf16.mxu0 %v1471
    %1886 = vmatpush1.bf16.msra.mxu0 %v1470
    %1887 = vmatprep.subr.bf16.mxu0 %v1466
    %1888 = vmatpush1.bf16.msra.mxu0 %v1465
    %1889 = vmatprep.subr.bf16.mxu0 %v1461
    %1890 = vmatpush1.bf16.msra.mxu0 %v1460
    %1891 = vmatprep.subr.bf16.mxu0 %v1456
    %1892 = vmatpush1.bf16.msra.mxu0 %v1455
    %1893 = vmatprep.subr.bf16.mxu0 %v1451
    %1894 = vmatpush1.bf16.msra.mxu0 %v1450
    %1895 = vmatprep.subr.bf16.mxu0 %v1446
    %1896 = vmatpush1.bf16.msra.mxu0 %v1445
    %1897 = vmatprep.subr.bf16.mxu0 %v1441
    %1898 = vmatpush1.bf16.msra.mxu0 %v1440
    %1899 = vmatprep.subr.bf16.mxu0 0
    %1900 = vmatpush2.bf16.msra.mxu0 0
    %1901 = vmatprep.subr.bf16.mxu0 0
    %1902 = vmatpush2.bf16.msra.mxu0 0
    %1903 = vmatprep.subr.bf16.mxu0 0
    %1904 = vmatpush2.bf16.msra.mxu0 0
    %1905 = vmatprep.subr.bf16.mxu0 0
    %1906 = vmatpush2.bf16.msra.mxu0 0
    %1907 = vmatprep.subr.bf16.mxu0 0
    %1908 = vmatpush2.bf16.msra.mxu0 0
    %1909 = vmatprep.subr.bf16.mxu0 0
    %1910 = vmatpush2.bf16.msra.mxu0 0
    %1911 = vmatprep.subr.bf16.mxu0 0
    %1912 = vmatpush2.bf16.msra.mxu0 0
    %1913 = vmatprep.subr.bf16.mxu0 0
    %1914 = vmatpush2.bf16.msra.mxu0 0
    %1915 = vmatprep.mubr.bf16.mxu0 0
    %1916 = vmatmul.mubr.bf16.gmra.mxu0 %v397
    %v1917 = vpop.f32.mrf.mxu0
    %v1918 = vadd.f32 %v1877, %v1917
    %v1919 = vpop.f32.mrf.mxu0
    %v1920 = vadd.f32 %v1879, %v1919
    %v1921 = vpop.f32.mrf.mxu0
    %v1922 = vpop.f32.mrf.mxu0
    %1923 = vdwg.mxu0
    %1924 = vmatprep.subr.bf16.mxu0 0
    %1925 = vmatpush1.bf16.msra.mxu0 %v1317
    %1926 = vmatprep.subr.bf16.mxu0 0
    %1927 = vmatpush1.bf16.msra.mxu0 %v1312
    %1928 = vmatprep.subr.bf16.mxu0 0
    %1929 = vmatpush1.bf16.msra.mxu0 %v1307
    %1930 = vmatprep.subr.bf16.mxu0 0
    %1931 = vmatpush1.bf16.msra.mxu0 %v1302
    %1932 = vmatprep.subr.bf16.mxu0 0
    %1933 = vmatpush1.bf16.msra.mxu0 %v1297
    %1934 = vmatprep.subr.bf16.mxu0 0
    %1935 = vmatpush1.bf16.msra.mxu0 %v1292
    %1936 = vmatprep.subr.bf16.mxu0 0
    %1937 = vmatpush1.bf16.msra.mxu0 %v1287
    %1938 = vmatprep.subr.bf16.mxu0 0
    %1939 = vmatpush1.bf16.msra.mxu0 %v1282
    %1940 = vmatprep.subr.bf16.mxu0 0
    %1941 = vmatpush2.bf16.msra.mxu0 %v1357
    %1942 = vmatprep.subr.bf16.mxu0 0
    %1943 = vmatpush2.bf16.msra.mxu0 %v1352
    %1944 = vmatprep.subr.bf16.mxu0 0
    %1945 = vmatpush2.bf16.msra.mxu0 %v1347
    %1946 = vmatprep.subr.bf16.mxu0 0
    %1947 = vmatpush2.bf16.msra.mxu0 %v1342
    %1948 = vmatprep.subr.bf16.mxu0 0
    %1949 = vmatpush2.bf16.msra.mxu0 %v1337
    %1950 = vmatprep.subr.bf16.mxu0 0
    %1951 = vmatpush2.bf16.msra.mxu0 %v1332
    %1952 = vmatprep.subr.bf16.mxu0 0
    %1953 = vmatpush2.bf16.msra.mxu0 %v1327
    %1954 = vmatprep.subr.bf16.mxu0 0
    %1955 = vmatpush2.bf16.msra.mxu0 %v1322
    %1956 = vmatprep.mubr.bf16.mxu0 %v394
    %1957 = vmatmul.mubr.bf16.gmra.mxu0 %v393
    %v1958 = vpop.f32.mrf.mxu0
    %v1959 = vadd.f32 0.0, %v1958
    %v1960 = vpop.f32.mrf.mxu0
    %v1961 = vpop.f32.mrf.mxu0
    %v1962 = vpop.f32.mrf.mxu0
    %1963 = vdwg.mxu0
    %1964 = vmatprep.subr.bf16.mxu0 0
    %1965 = vmatpush1.bf16.msra.mxu0 %v1397
    %1966 = vmatprep.subr.bf16.mxu0 0
    %1967 = vmatpush1.bf16.msra.mxu0 %v1392
    %1968 = vmatprep.subr.bf16.mxu0 0
    %1969 = vmatpush1.bf16.msra.mxu0 %v1387
    %1970 = vmatprep.subr.bf16.mxu0 0
    %1971 = vmatpush1.bf16.msra.mxu0 %v1382
    %1972 = vmatprep.subr.bf16.mxu0 0
    %1973 = vmatpush1.bf16.msra.mxu0 %v1377
    %1974 = vmatprep.subr.bf16.mxu0 0
    %1975 = vmatpush1.bf16.msra.mxu0 %v1372
    %1976 = vmatprep.subr.bf16.mxu0 0
    %1977 = vmatpush1.bf16.msra.mxu0 %v1367
    %1978 = vmatprep.subr.bf16.mxu0 0
    %1979 = vmatpush1.bf16.msra.mxu0 %v1362
    %1980 = vmatprep.subr.bf16.mxu0 0
    %1981 = vmatpush2.bf16.msra.mxu0 %v1437
    %1982 = vmatprep.subr.bf16.mxu0 0
    %1983 = vmatpush2.bf16.msra.mxu0 %v1432
    %1984 = vmatprep.subr.bf16.mxu0 0
    %1985 = vmatpush2.bf16.msra.mxu0 %v1427
    %1986 = vmatprep.subr.bf16.mxu0 0
    %1987 = vmatpush2.bf16.msra.mxu0 %v1422
    %1988 = vmatprep.subr.bf16.mxu0 0
    %1989 = vmatpush2.bf16.msra.mxu0 %v1417
    %1990 = vmatprep.subr.bf16.mxu0 0
    %1991 = vmatpush2.bf16.msra.mxu0 %v1412
    %1992 = vmatprep.subr.bf16.mxu0 0
    %1993 = vmatpush2.bf16.msra.mxu0 %v1407
    %1994 = vmatprep.subr.bf16.mxu0 0
    %1995 = vmatpush2.bf16.msra.mxu0 %v1402
    %1996 = vmatprep.mubr.bf16.mxu0 %v396
    %1997 = vmatmul.mubr.bf16.gmra.mxu0 %v395
    %v1998 = vpop.f32.mrf.mxu0
    %v1999 = vadd.f32 %v1959, %v1998
    %v2000 = vpop.f32.mrf.mxu0
    %v2001 = vpop.f32.mrf.mxu0
    %v2002 = vpop.f32.mrf.mxu0
    %2003 = vdwg.mxu0
    %2004 = vmatprep.subr.bf16.mxu0 0
    %2005 = vmatpush1.bf16.msra.mxu0 %v1477
    %2006 = vmatprep.subr.bf16.mxu0 0
    %2007 = vmatpush1.bf16.msra.mxu0 %v1472
    %2008 = vmatprep.subr.bf16.mxu0 0
    %2009 = vmatpush1.bf16.msra.mxu0 %v1467
    %2010 = vmatprep.subr.bf16.mxu0 0
    %2011 = vmatpush1.bf16.msra.mxu0 %v1462
    %2012 = vmatprep.subr.bf16.mxu0 0
    %2013 = vmatpush1.bf16.msra.mxu0 %v1457
    %2014 = vmatprep.subr.bf16.mxu0 0
    %2015 = vmatpush1.bf16.msra.mxu0 %v1452
    %2016 = vmatprep.subr.bf16.mxu0 0
    %2017 = vmatpush1.bf16.msra.mxu0 %v1447
    %2018 = vmatprep.subr.bf16.mxu0 0
    %2019 = vmatpush1.bf16.msra.mxu0 %v1442
    %2020 = vmatprep.subr.bf16.mxu0 0
    %2021 = vmatpush2.bf16.msra.mxu0 0
    %2022 = vmatprep.subr.bf16.mxu0 0
    %2023 = vmatpush2.bf16.msra.mxu0 0
    %2024 = vmatprep.subr.bf16.mxu0 0
    %2025 = vmatpush2.bf16.msra.mxu0 0
    %2026 = vmatprep.subr.bf16.mxu0 0
    %2027 = vmatpush2.bf16.msra.mxu0 0
    %2028 = vmatprep.subr.bf16.mxu0 0
    %2029 = vmatpush2.bf16.msra.mxu0 0
    %2030 = vmatprep.subr.bf16.mxu0 0
    %2031 = vmatpush2.bf16.msra.mxu0 0
    %2032 = vmatprep.subr.bf16.mxu0 0
    %2033 = vmatpush2.bf16.msra.mxu0 0
    %2034 = vmatprep.subr.bf16.mxu0 0
    %2035 = vmatpush2.bf16.msra.mxu0 0
    %2036 = vmatprep.mubr.bf16.mxu0 0
    %2037 = vmatmul.mubr.bf16.gmra.mxu0 %v397
    %v2038 = vpop.f32.mrf.mxu0
    %v2039 = vadd.f32 %v1999, %v2038
    %v2040 = vpop.f32.mrf.mxu0
    %v2041 = vpop.f32.mrf.mxu0
    %v2042 = vpop.f32.mrf.mxu0
    %2043 = vdwg.mxu0
    %v2044 = vpack.c.bf16 %v1795, %v1795
    %v2045 = vpack.c.bf16 %v1797, %v1797
    %v2046 = vpack.c.bf16 %v1918, %v1918
    %v2047 = vpack.c.bf16 %v1920, %v1920
    %v2048 = vpack.c.bf16 %v2039, %v2039
    %v2049 = vld [vmem:[%s4] sm:$0x1f]
    %v2051 = vlaneseq
    %v2052 = vshrl.u32 %v2051, 7
    %v2053 = vsub.s32 0, %v2052
    %v2054 = vrot.slane %v2049, %v2053
    %v2055 = vlaneseq
    %v2056 = vshrl.u32 %v2055, 7
    %v2057 = vsub.s32 1, %v2056
    %v2058 = vrot.slane %v2049, %v2057
    %v2059 = vlaneseq
    %v2060 = vshrl.u32 %v2059, 7
    %v2061 = vsub.s32 2, %v2060
    %v2062 = vrot.slane %v2049, %v2061
    %v2063 = vlaneseq
    %v2064 = vshrl.u32 %v2063, 7
    %v2065 = vsub.s32 3, %v2064
    %v2066 = vrot.slane %v2049, %v2065
    %v2067 = vlaneseq
    %v2068 = vshrl.u32 %v2067, 7
    %v2069 = vsub.s32 4, %v2068
    %v2070 = vrot.slane %v2049, %v2069
    %v2076 = vpack.c.bf16 %v2054, %v2054
    %v2077 = vpack.c.bf16 %v2058, %v2058
    %v2078 = vpack.c.bf16 %v2062, %v2062
    %v2079 = vpack.c.bf16 %v2066, %v2066
    %v2080 = vpack.c.bf16 %v2070, %v2070
    %v2082 = vpack.i.b16 %v2076, %v2076
    %v2084 = vlaneseq
    %v2085 = vshrl.u32 %v2084, 7
    %v2086 = vsub.s32 0, %v2085
    %v2087 = vrot.slane %v2082, %v2086
    %v2089 = vpack.i.b16 %v2077, %v2077
    %v2091 = vlaneseq
    %v2092 = vshrl.u32 %v2091, 7
    %v2093 = vsub.s32 0, %v2092
    %v2094 = vrot.slane %v2089, %v2093
    %v2096 = vpack.i.b16 %v2078, %v2078
    %v2098 = vlaneseq
    %v2099 = vshrl.u32 %v2098, 7
    %v2100 = vsub.s32 0, %v2099
    %v2101 = vrot.slane %v2096, %v2100
    %v2103 = vpack.i.b16 %v2079, %v2079
    %v2105 = vlaneseq
    %v2106 = vshrl.u32 %v2105, 7
    %v2107 = vsub.s32 0, %v2106
    %v2108 = vrot.slane %v2103, %v2107
    %v2110 = vpack.i.b16 %v2080, %v2080
    %v2112 = vlaneseq
    %v2113 = vshrl.u32 %v2112, 7
    %v2114 = vsub.s32 0, %v2113
    %v2115 = vrot.slane %v2110, %v2114
    %v2116 = vadd.bf16 %v2044, %v2087
    %v2117 = vadd.bf16 %v2045, %v2094
    %v2118 = vadd.bf16 %v2046, %v2101
    %v2119 = vadd.bf16 %v2047, %v2108
    %v2120 = vadd.bf16 %v2048, %v2115
    %v2121 = vmax.bf16 %v2116, 0
    %v2122 = vmax.bf16 %v2117, 0
    %v2123 = vmax.bf16 %v2118, 0
    %v2124 = vmax.bf16 %v2119, 0
    %v2125 = vmax.bf16 %v2120, 0
    %v2126 = vld [vmem:[#allocation10] sm:$0xf]
    %v2127 = vld [vmem:[#allocation10 + $0x4] sm:$0xf]
    %v2128 = vld [vmem:[#allocation10 + $0x8] sm:$0xf]
    %v2129 = vld [vmem:[#allocation10 + $0xc] sm:$0xf]
    %v2130 = vld [vmem:[#allocation10 + $0x10] sm:$0xf]
    %v2131 = vld [vmem:[#allocation10 + $0x14] sm:$0xf]
    %v2132 = vld [vmem:[#allocation10 + $0x18] sm:$0xf]
    %v2133 = vld [vmem:[#allocation10 + $0x1c] sm:$0xf]
    %v2134 = vld [vmem:[#allocation10 + $0x20] sm:$0xf]
    %v2135 = vld [vmem:[#allocation10 + $0x24] sm:$0xf]
    %v2136 = vld [vmem:[#allocation10 + $0x28] sm:$0xf]
    %v2137 = vld [vmem:[#allocation10 + $0x2c] sm:$0xf]
    %v2138 = vld [vmem:[#allocation10 + $0x30] sm:$0xf]
    %v2139 = vld [vmem:[#allocation10 + $0x34] sm:$0xf]
    %v2140 = vld [vmem:[#allocation10 + $0x38] sm:$0xf]
    %v2141 = vld [vmem:[#allocation10 + $0x3c] sm:$0xf]
    %v2142 = vld [vmem:[#allocation10 + $0x40] sm:$0xf]
    %v2143 = vld [vmem:[#allocation10 + $0x44] sm:$0xf]
    %v2144 = vld [vmem:[#allocation10 + $0x48] sm:$0xf]
    %v2145 = vld [vmem:[#allocation10 + $0x4c] sm:$0xf]
    %v2146 = vld [vmem:[#allocation10 + $0x50] sm:$0xf]
    %v2147 = vld [vmem:[#allocation10 + $0x54] sm:$0xf]
    %v2148 = vld [vmem:[#allocation10 + $0x58] sm:$0xf]
    %v2149 = vld [vmem:[#allocation10 + $0x5c] sm:$0xf]
    %v2150 = vld [vmem:[#allocation10 + $0x60] sm:$0xf]
    %v2151 = vld [vmem:[#allocation10 + $0x64] sm:$0xf]
    %v2152 = vld [vmem:[#allocation10 + $0x68] sm:$0xf]
    %v2153 = vld [vmem:[#allocation10 + $0x6c] sm:$0xf]
    %v2154 = vld [vmem:[#allocation10 + $0x70] sm:$0xf]
    %v2155 = vld [vmem:[#allocation10 + $0x74] sm:$0xf]
    %v2156 = vld [vmem:[#allocation10 + $0x78] sm:$0xf]
    %v2157 = vld [vmem:[#allocation10 + $0x7c] sm:$0xf]
    %v2158 = vld [vmem:[#allocation10 + $0x80] sm:$0xf]
    %v2159 = vld [vmem:[#allocation10 + $0x84] sm:$0xf]
    %v2160 = vld [vmem:[#allocation10 + $0x88] sm:$0xf]
    %v2161 = vld [vmem:[#allocation10 + $0x8c] sm:$0xf]
    %v2162 = vld [vmem:[#allocation10 + $0x90] sm:$0xf]
    %v2163 = vld [vmem:[#allocation10 + $0x94] sm:$0xf]
    %v2164 = vld [vmem:[#allocation10 + $0x98] sm:$0xf]
    %v2165 = vld [vmem:[#allocation10 + $0x9c] sm:$0xf]
    %v2166 = vld [vmem:[#allocation10 + $0xa0] sm:$0xf]
    %v2167 = vld [vmem:[#allocation10 + $0xa4] sm:$0xf]
    %v2168 = vld [vmem:[#allocation10 + $0xa8] sm:$0xf]
    %v2169 = vld [vmem:[#allocation10 + $0xac] sm:$0xf]
    %v2170 = vld [vmem:[#allocation10 + $0xb0] sm:$0xf]
    %v2171 = vld [vmem:[#allocation10 + $0xb4] sm:$0xf]
    %v2172 = vld [vmem:[#allocation10 + $0xb8] sm:$0xf]
    %v2173 = vld [vmem:[#allocation10 + $0xbc] sm:$0xf]
    %v2174 = vld [vmem:[#allocation10 + $0xc0] sm:$0xf]
    %v2175 = vld [vmem:[#allocation10 + $0xc4] sm:$0xf]
    %v2176 = vld [vmem:[#allocation10 + $0xc8] sm:$0xf]
    %v2177 = vld [vmem:[#allocation10 + $0xcc] sm:$0xf]
    %v2178 = vld [vmem:[#allocation10 + $0xd0] sm:$0xf]
    %v2179 = vld [vmem:[#allocation10 + $0xd4] sm:$0xf]
    %v2180 = vld [vmem:[#allocation10 + $0xd8] sm:$0xf]
    %v2181 = vld [vmem:[#allocation10 + $0xdc] sm:$0xf]
    %v2182 = vld [vmem:[#allocation10 + $0xe0] sm:$0xf]
    %v2183 = vld [vmem:[#allocation10 + $0xe4] sm:$0xf]
    %v2184 = vld [vmem:[#allocation10 + $0xe8] sm:$0xf]
    %v2185 = vld [vmem:[#allocation10 + $0xec] sm:$0xf]
    %v2186 = vld [vmem:[#allocation10 + $0xf0] sm:$0xf]
    %v2187 = vld [vmem:[#allocation10 + $0xf4] sm:$0xf]
    %v2188 = vld [vmem:[#allocation10 + $0xf8] sm:$0xf]
    %v2189 = vld [vmem:[#allocation10 + $0xfc] sm:$0xf]
    %v2190 = vld [vmem:[#allocation10 + $0x100] sm:$0xf]
    %v2191 = vld [vmem:[#allocation10 + $0x104] sm:$0xf]
    %v2192 = vld [vmem:[#allocation10 + $0x108] sm:$0xf]
    %v2193 = vld [vmem:[#allocation10 + $0x10c] sm:$0xf]
    %v2194 = vld [vmem:[#allocation10 + $0x110] sm:$0xf]
    %v2195 = vld [vmem:[#allocation10 + $0x114] sm:$0xf]
    %v2196 = vld [vmem:[#allocation10 + $0x118] sm:$0xf]
    %v2197 = vld [vmem:[#allocation10 + $0x11c] sm:$0xf]
    %v2198 = vld [vmem:[#allocation10 + $0x120] sm:$0xf]
    %v2199 = vld [vmem:[#allocation10 + $0x124] sm:$0xf]
    %v2200 = vld [vmem:[#allocation10 + $0x128] sm:$0xf]
    %v2201 = vld [vmem:[#allocation10 + $0x12c] sm:$0xf]
    %v2202 = vld [vmem:[#allocation10 + $0x130] sm:$0xf]
    %v2203 = vld [vmem:[#allocation10 + $0x134] sm:$0xf]
    %v2204 = vld [vmem:[#allocation10 + $0x138] sm:$0xf]
    %v2205 = vld [vmem:[#allocation10 + $0x13c] sm:$0xf]
    %v2206 = vld [vmem:[%s6] sm:$0x1]
    %v2208 = vlaneseq
    %v2209 = vshrl.u32 %v2208, 7
    %v2210 = vsub.s32 0, %v2209
    %v2211 = vrot.slane %v2206, %v2210
    %v2293 = vunpack.c.l.b16 %v2126
    %v2294 = vunpack.c.l.b16 %v2127
    %v2295 = vunpack.c.l.b16 %v2128
    %v2296 = vunpack.c.l.b16 %v2129
    %v2297 = vunpack.c.l.b16 %v2130
    %v2298 = vunpack.c.l.b16 %v2131
    %v2299 = vunpack.c.l.b16 %v2132
    %v2300 = vunpack.c.l.b16 %v2133
    %v2301 = vunpack.c.l.b16 %v2134
    %v2302 = vunpack.c.l.b16 %v2135
    %v2303 = vunpack.c.l.b16 %v2136
    %v2304 = vunpack.c.l.b16 %v2137
    %v2305 = vunpack.c.l.b16 %v2138
    %v2306 = vunpack.c.l.b16 %v2139
    %v2307 = vunpack.c.l.b16 %v2140
    %v2308 = vunpack.c.l.b16 %v2141
    %v2309 = vunpack.c.l.b16 %v2142
    %v2310 = vunpack.c.l.b16 %v2143
    %v2311 = vunpack.c.l.b16 %v2144
    %v2312 = vunpack.c.l.b16 %v2145
    %v2313 = vunpack.c.l.b16 %v2146
    %v2314 = vunpack.c.l.b16 %v2147
    %v2315 = vunpack.c.l.b16 %v2148
    %v2316 = vunpack.c.l.b16 %v2149
    %v2317 = vunpack.c.l.b16 %v2150
    %v2318 = vunpack.c.l.b16 %v2151
    %v2319 = vunpack.c.l.b16 %v2152
    %v2320 = vunpack.c.l.b16 %v2153
    %v2321 = vunpack.c.l.b16 %v2154
    %v2322 = vunpack.c.l.b16 %v2155
    %v2323 = vunpack.c.l.b16 %v2156
    %v2324 = vunpack.c.l.b16 %v2157
    %v2325 = vunpack.c.l.b16 %v2158
    %v2326 = vunpack.c.l.b16 %v2159
    %v2327 = vunpack.c.l.b16 %v2160
    %v2328 = vunpack.c.l.b16 %v2161
    %v2329 = vunpack.c.l.b16 %v2162
    %v2330 = vunpack.c.l.b16 %v2163
    %v2331 = vunpack.c.l.b16 %v2164
    %v2332 = vunpack.c.l.b16 %v2165
    %v2333 = vunpack.c.l.b16 %v2166
    %v2334 = vunpack.c.l.b16 %v2167
    %v2335 = vunpack.c.l.b16 %v2168
    %v2336 = vunpack.c.l.b16 %v2169
    %v2337 = vunpack.c.l.b16 %v2170
    %v2338 = vunpack.c.l.b16 %v2171
    %v2339 = vunpack.c.l.b16 %v2172
    %v2340 = vunpack.c.l.b16 %v2173
    %v2341 = vunpack.c.l.b16 %v2174
    %v2342 = vunpack.c.l.b16 %v2175
    %v2343 = vunpack.c.l.b16 %v2176
    %v2344 = vunpack.c.l.b16 %v2177
    %v2345 = vunpack.c.l.b16 %v2178
    %v2346 = vunpack.c.l.b16 %v2179
    %v2347 = vunpack.c.l.b16 %v2180
    %v2348 = vunpack.c.l.b16 %v2181
    %v2349 = vunpack.c.l.b16 %v2182
    %v2350 = vunpack.c.l.b16 %v2183
    %v2351 = vunpack.c.l.b16 %v2184
    %v2352 = vunpack.c.l.b16 %v2185
    %v2353 = vunpack.c.l.b16 %v2186
    %v2354 = vunpack.c.l.b16 %v2187
    %v2355 = vunpack.c.l.b16 %v2188
    %v2356 = vunpack.c.l.b16 %v2189
    %v2357 = vunpack.c.l.b16 %v2190
    %v2358 = vunpack.c.l.b16 %v2191
    %v2359 = vunpack.c.l.b16 %v2192
    %v2360 = vunpack.c.l.b16 %v2193
    %v2361 = vunpack.c.l.b16 %v2194
    %v2362 = vunpack.c.l.b16 %v2195
    %v2363 = vunpack.c.l.b16 %v2196
    %v2364 = vunpack.c.l.b16 %v2197
    %v2365 = vunpack.c.l.b16 %v2198
    %v2366 = vunpack.c.l.b16 %v2199
    %v2367 = vunpack.c.l.b16 %v2200
    %v2368 = vunpack.c.l.b16 %v2201
    %v2369 = vunpack.c.l.b16 %v2202
    %v2370 = vunpack.c.l.b16 %v2203
    %v2371 = vunpack.c.l.b16 %v2204
    %v2372 = vunpack.c.l.b16 %v2205
    %v2373 = vpack.c.b16 %v2294, %v2293
    %v2374 = vpack.c.b16 %v2296, %v2295
    %v2375 = vpack.c.b16 %v2298, %v2297
    %v2376 = vpack.c.b16 %v2300, %v2299
    %v2377 = vpack.c.b16 %v2302, %v2301
    %v2378 = vpack.c.b16 %v2304, %v2303
    %v2379 = vpack.c.b16 %v2306, %v2305
    %v2380 = vpack.c.b16 %v2308, %v2307
    %v2381 = vpack.c.b16 %v2310, %v2309
    %v2382 = vpack.c.b16 %v2312, %v2311
    %v2383 = vpack.c.b16 %v2314, %v2313
    %v2384 = vpack.c.b16 %v2316, %v2315
    %v2385 = vpack.c.b16 %v2318, %v2317
    %v2386 = vpack.c.b16 %v2320, %v2319
    %v2387 = vpack.c.b16 %v2322, %v2321
    %v2388 = vpack.c.b16 %v2324, %v2323
    %v2389 = vpack.c.b16 %v2326, %v2325
    %v2390 = vpack.c.b16 %v2328, %v2327
    %v2391 = vpack.c.b16 %v2330, %v2329
    %v2392 = vpack.c.b16 %v2332, %v2331
    %v2393 = vpack.c.b16 %v2334, %v2333
    %v2394 = vpack.c.b16 %v2336, %v2335
    %v2395 = vpack.c.b16 %v2338, %v2337
    %v2396 = vpack.c.b16 %v2340, %v2339
    %v2397 = vpack.c.b16 %v2342, %v2341
    %v2398 = vpack.c.b16 %v2344, %v2343
    %v2399 = vpack.c.b16 %v2346, %v2345
    %v2400 = vpack.c.b16 %v2348, %v2347
    %v2401 = vpack.c.b16 %v2350, %v2349
    %v2402 = vpack.c.b16 %v2352, %v2351
    %v2403 = vpack.c.b16 %v2354, %v2353
    %v2404 = vpack.c.b16 %v2356, %v2355
    %v2405 = vpack.c.b16 %v2358, %v2357
    %v2406 = vpack.c.b16 %v2360, %v2359
    %v2407 = vpack.c.b16 %v2362, %v2361
    %v2408 = vpack.c.b16 %v2364, %v2363
    %v2409 = vpack.c.b16 %v2366, %v2365
    %v2410 = vpack.c.b16 %v2368, %v2367
    %v2411 = vpack.c.b16 %v2370, %v2369
    %v2412 = vpack.c.b16 %v2372, %v2371
    %2453 = vmatprep.subr.bf16.mxu0 0
    %2454 = vmatpush1.bf16.msra.mxu0 %v2380
    %2455 = vmatprep.subr.bf16.mxu0 0
    %2456 = vmatpush1.bf16.msra.mxu0 %v2379
    %2457 = vmatprep.subr.bf16.mxu0 0
    %2458 = vmatpush1.bf16.msra.mxu0 %v2378
    %2459 = vmatprep.subr.bf16.mxu0 0
    %2460 = vmatpush1.bf16.msra.mxu0 %v2377
    %2461 = vmatprep.subr.bf16.mxu0 0
    %2462 = vmatpush1.bf16.msra.mxu0 %v2376
    %2463 = vmatprep.subr.bf16.mxu0 0
    %2464 = vmatpush1.bf16.msra.mxu0 %v2375
    %2465 = vmatprep.subr.bf16.mxu0 0
    %2466 = vmatpush1.bf16.msra.mxu0 %v2374
    %2467 = vmatprep.subr.bf16.mxu0 0
    %2468 = vmatpush1.bf16.msra.mxu0 %v2373
    %2469 = vmatprep.subr.bf16.mxu0 0
    %2470 = vmatpush2.bf16.msra.mxu0 %v2388
    %2471 = vmatprep.subr.bf16.mxu0 0
    %2472 = vmatpush2.bf16.msra.mxu0 %v2387
    %2473 = vmatprep.subr.bf16.mxu0 0
    %2474 = vmatpush2.bf16.msra.mxu0 %v2386
    %2475 = vmatprep.subr.bf16.mxu0 0
    %2476 = vmatpush2.bf16.msra.mxu0 %v2385
    %2477 = vmatprep.subr.bf16.mxu0 0
    %2478 = vmatpush2.bf16.msra.mxu0 %v2384
    %2479 = vmatprep.subr.bf16.mxu0 0
    %2480 = vmatpush2.bf16.msra.mxu0 %v2383
    %2481 = vmatprep.subr.bf16.mxu0 0
    %2482 = vmatpush2.bf16.msra.mxu0 %v2382
    %2483 = vmatprep.subr.bf16.mxu0 0
    %2484 = vmatpush2.bf16.msra.mxu0 %v2381
    %2485 = vmatprep.mubr.bf16.mxu0 %v2122
    %2486 = vmatmul.mubr.bf16.gmra.mxu0 %v2121
    %v2487 = vpop.f32.mrf.mxu0
    %v2488 = vadd.f32 %v2211, %v2487
    %v2489 = vpop.f32.mrf.mxu0
    %v2490 = vpop.f32.mrf.mxu0
    %v2491 = vpop.f32.mrf.mxu0
    %2492 = vdwg.mxu0
    %2493 = vmatprep.subr.bf16.mxu0 0
    %2494 = vmatpush1.bf16.msra.mxu0 %v2396
    %2495 = vmatprep.subr.bf16.mxu0 0
    %2496 = vmatpush1.bf16.msra.mxu0 %v2395
    %2497 = vmatprep.subr.bf16.mxu0 0
    %2498 = vmatpush1.bf16.msra.mxu0 %v2394
    %2499 = vmatprep.subr.bf16.mxu0 0
    %2500 = vmatpush1.bf16.msra.mxu0 %v2393
    %2501 = vmatprep.subr.bf16.mxu0 0
    %2502 = vmatpush1.bf16.msra.mxu0 %v2392
    %2503 = vmatprep.subr.bf16.mxu0 0
    %2504 = vmatpush1.bf16.msra.mxu0 %v2391
    %2505 = vmatprep.subr.bf16.mxu0 0
    %2506 = vmatpush1.bf16.msra.mxu0 %v2390
    %2507 = vmatprep.subr.bf16.mxu0 0
    %2508 = vmatpush1.bf16.msra.mxu0 %v2389
    %2509 = vmatprep.subr.bf16.mxu0 0
    %2510 = vmatpush2.bf16.msra.mxu0 %v2404
    %2511 = vmatprep.subr.bf16.mxu0 0
    %2512 = vmatpush2.bf16.msra.mxu0 %v2403
    %2513 = vmatprep.subr.bf16.mxu0 0
    %2514 = vmatpush2.bf16.msra.mxu0 %v2402
    %2515 = vmatprep.subr.bf16.mxu0 0
    %2516 = vmatpush2.bf16.msra.mxu0 %v2401
    %2517 = vmatprep.subr.bf16.mxu0 0
    %2518 = vmatpush2.bf16.msra.mxu0 %v2400
    %2519 = vmatprep.subr.bf16.mxu0 0
    %2520 = vmatpush2.bf16.msra.mxu0 %v2399
    %2521 = vmatprep.subr.bf16.mxu0 0
    %2522 = vmatpush2.bf16.msra.mxu0 %v2398
    %2523 = vmatprep.subr.bf16.mxu0 0
    %2524 = vmatpush2.bf16.msra.mxu0 %v2397
    %2525 = vmatprep.mubr.bf16.mxu0 %v2124
    %2526 = vmatmul.mubr.bf16.gmra.mxu0 %v2123
    %v2527 = vpop.f32.mrf.mxu0
    %v2528 = vadd.f32 %v2488, %v2527
    %v2529 = vpop.f32.mrf.mxu0
    %v2530 = vpop.f32.mrf.mxu0
    %v2531 = vpop.f32.mrf.mxu0
    %2532 = vdwg.mxu0
    %2533 = vmatprep.subr.bf16.mxu0 0
    %2534 = vmatpush1.bf16.msra.mxu0 %v2412
    %2535 = vmatprep.subr.bf16.mxu0 0
    %2536 = vmatpush1.bf16.msra.mxu0 %v2411
    %2537 = vmatprep.subr.bf16.mxu0 0
    %2538 = vmatpush1.bf16.msra.mxu0 %v2410
    %2539 = vmatprep.subr.bf16.mxu0 0
    %2540 = vmatpush1.bf16.msra.mxu0 %v2409
    %2541 = vmatprep.subr.bf16.mxu0 0
    %2542 = vmatpush1.bf16.msra.mxu0 %v2408
    %2543 = vmatprep.subr.bf16.mxu0 0
    %2544 = vmatpush1.bf16.msra.mxu0 %v2407
    %2545 = vmatprep.subr.bf16.mxu0 0
    %2546 = vmatpush1.bf16.msra.mxu0 %v2406
    %2547 = vmatprep.subr.bf16.mxu0 0
    %2548 = vmatpush1.bf16.msra.mxu0 %v2405
    %2549 = vmatprep.subr.bf16.mxu0 0
    %2550 = vmatpush2.bf16.msra.mxu0 0
    %2551 = vmatprep.subr.bf16.mxu0 0
    %2552 = vmatpush2.bf16.msra.mxu0 0
    %2553 = vmatprep.subr.bf16.mxu0 0
    %2554 = vmatpush2.bf16.msra.mxu0 0
    %2555 = vmatprep.subr.bf16.mxu0 0
    %2556 = vmatpush2.bf16.msra.mxu0 0
    %2557 = vmatprep.subr.bf16.mxu0 0
    %2558 = vmatpush2.bf16.msra.mxu0 0
    %2559 = vmatprep.subr.bf16.mxu0 0
    %2560 = vmatpush2.bf16.msra.mxu0 0
    %2561 = vmatprep.subr.bf16.mxu0 0
    %2562 = vmatpush2.bf16.msra.mxu0 0
    %2563 = vmatprep.subr.bf16.mxu0 0
    %2564 = vmatpush2.bf16.msra.mxu0 0
    %2565 = vmatprep.mubr.bf16.mxu0 0
    %2566 = vmatmul.mubr.bf16.gmra.mxu0 %v2125
    %v2567 = vpop.f32.mrf.mxu0
    %v2568 = vadd.f32 %v2528, %v2567
    %v2569 = vpop.f32.mrf.mxu0
    %v2570 = vpop.f32.mrf.mxu0
    %v2571 = vpop.f32.mrf.mxu0
    %2572 = vdwg.mxu0
    %2573 = vst [vmem:[#allocation11] sm:$0xff] %v2568
    // Predicated region
    $region50: #{tpu_custom_call.1} parent=1 // pred_check
      _
    $region51: #{tpu_custom_call.1} parent=1 // pred_check_branch
      %2575 = sbr.rel (0) target = $region53
    $region52: #{tpu_custom_call.1} parent=1 // pred_region
      %s2577 = ssub.s32 128, 128
      %2578 = vsyncadd [#allocation4], %s2577
      %s2580 = sshll.u32 [#allocation11], 4
      %s2581 = int_to_ptr.vmem [resolvable:$true] %s2580
      %2583 = dma.vmem_to_hbm [thread:$0]  %s2581, 128, %s7, [#allocation4]
    $region53: #{tpu_custom_call.1} parent=1 // pred_fallthru
      _
    // Predicated region
    $region54: #{tpu_custom_call.1} parent=1 // pred_check
      _
    $region55: #{tpu_custom_call.1} parent=1 // pred_check_branch
      %2585 = sbr.rel (0) target = $region57
    $region56: #{tpu_custom_call.1} parent=1 // pred_region
      %2586 = dma.done [#allocation4], 128
    $region57: #{tpu_custom_call.1} parent=1 // pred_fallthru
      _
    %2587 = vsyncpa [#allocation3], 1
    %2588 = vsyncpa [#allocation6], 1
    %2589 = vsyncpa [#allocation9], 1
    %2590 = vsyncpa [#allocation4], 1

// kernel: tpu_custom_call.1
$region0: #{tpu_custom_call.1}
  #allocation0 [shape = 'u32[]', space=smem, size = 0x4, offset = 0x4, fixed_abs, tag = 'smem constant byte address 0x4 - core index']
  #allocation1 [shape = 'u32[144,128]{1,0:T(1,128)}', space=vmem, size = 0x12000, scoped, tag = 'internal scratch']
  %s0 = inlined_call_operand.hbm [shape: f32[8,40], index: 0, kind: input, shape index: {}]
  %s1 = inlined_call_operand.hbm [shape: bf16[40,640], index: 1, kind: input, shape index: {}]
  %s2 = inlined_call_operand.hbm [shape: f32[1,640], index: 2, kind: input, shape index: {}]
  %s3 = inlined_call_operand.hbm [shape: bf16[640,640], index: 3, kind: input, shape index: {}]
  %s4 = inlined_call_operand.vmem [shape: f32[1,640], index: 4, kind: input, shape index: {}]
  %s5 = inlined_call_operand.hbm [shape: bf16[640,128], index: 5, kind: input, shape index: {}]
  %s6 = inlined_call_operand.vmem [shape: f32[1,128], index: 6, kind: input, shape index: {}]
  %s7 = inlined_call_operand.hbm [shape: f32[8,128], index: 7, kind: output, shape index: {}]
  %s8 = sld [smem:[#allocation0]]
  $region58: #{tpu_custom_call.1} parent=0
    _
  %s10 = ssub.s32 1, %s8
  %s11 = scalar_select 0, %s10, %s8
  $region1: #{tpu_custom_call.1} parent=0
    #allocation2 [shape = 'u8[4096]{0}', space=vmem, size = 0x1000, scoped, tag = 'input window, operand 0, single buffered']
    #allocation3 [shape = 's32[1]{0}', space=sflag, size = 0x4, scoped, tag = 'scoped memory for tpu_custom_call.1']
    #allocation4 [shape = 's32[1]{0}', space=sflag, size = 0x4, scoped, tag = 'scoped memory for tpu_custom_call.1']
    #allocation5 [shape = 'u8[51200]{0}', space=vmem, size = 0xc800, scoped, tag = 'input window, operand 1, single buffered']
    #allocation6 [shape = 's32[1]{0}', space=sflag, size = 0x4, scoped, tag = 'scoped memory for tpu_custom_call.1']
    #allocation7 [shape = 'u8[2560]{0}', space=vmem, size = 0xc00, scoped, tag = 'input window, operand 2, single buffered']
    #allocation8 [shape = 'u8[819200]{0}', space=vmem, size = 0xc8000, scoped, tag = 'input window, operand 3, single buffered']
    #allocation9 [shape = 's32[1]{0}', space=sflag, size = 0x4, scoped, tag = 'scoped memory for tpu_custom_call.1']
    #allocation10 [shape = 'u8[163840]{0}', space=vmem, size = 0x28000, scoped, tag = 'input window, operand 5, single buffered']
    #allocation11 [shape = 'u8[4096]{0}', space=vmem, size = 0x1000, scoped, tag = 'output window, operand 0, single buffered']
    %12 = vsyncpa [#allocation3], 0
    %13 = vsyncpa [#allocation6], 0
    %14 = vsyncpa [#allocation9], 0
    %15 = vsyncpa [#allocation4], 0
    // Predicated region
    $region2: #{tpu_custom_call.1} parent=1 // pred_check
      _
    $region3: #{tpu_custom_call.1} parent=1 // pred_check_branch
      %17 = sbr.rel (0) target = $region5
    $region4: #{tpu_custom_call.1} parent=1 // pred_region
      %s19 = ssub.s32 128, 128
      %20 = vsyncadd [#allocation3], %s19
      %s22 = sshll.u32 [#allocation2], 4
      %s23 = int_to_ptr.vmem [resolvable:$true] %s22
      %25 = dma.hbm_to_vmem [thread:$0]  %s0, 128, %s23, [#allocation3]
    $region5: #{tpu_custom_call.1} parent=1 // pred_fallthru
      _
    // Predicated region
    $region6: #{tpu_custom_call.1} parent=1 // pred_check
      _
    $region7: #{tpu_custom_call.1} parent=1 // pred_check_branch
      %27 = sbr.rel (0) target = $region9
    $region8: #{tpu_custom_call.1} parent=1 // pred_region
      %s29 = ssub.s32 1600, 1600
      %30 = vsyncadd [#allocation6], %s29
      %s31 = sshll.u32 [#allocation5], 4
      %s32 = int_to_ptr.vmem [resolvable:$true] %s31
      %37 = dma.hbm_to_vmem [thread:$0]  %s1, 1600, %s32, [#allocation6], 320, 320, 20
    $region9: #{tpu_custom_call.1} parent=1 // pred_fallthru
      _
    // Predicated region
    $region10: #{tpu_custom_call.1} parent=1 // pred_check
      _
    $region11: #{tpu_custom_call.1} parent=1 // pred_check_branch
      %39 = sbr.rel (0) target = $region13
    $region12: #{tpu_custom_call.1} parent=1 // pred_region
      %s41 = ssub.s32 80, 80
      %42 = vsyncadd [#allocation6], %s41
      %s44 = sshll.u32 [#allocation7], 4
      %s45 = int_to_ptr.vmem [resolvable:$true] %s44
      %47 = dma.hbm_to_vmem [thread:$0]  %s2, 80, %s45, [#allocation6]
    $region13: #{tpu_custom_call.1} parent=1 // pred_fallthru
      _
    // Predicated region
    $region14: #{tpu_custom_call.1} parent=1 // pred_check
      _
    $region15: #{tpu_custom_call.1} parent=1 // pred_check_branch
      %49 = sbr.rel (0) target = $region17
    $region16: #{tpu_custom_call.1} parent=1 // pred_region
      %s51 = ssub.s32 25600, 25600
      %52 = vsyncadd [#allocation9], %s51
      %s53 = sshll.u32 [#allocation8], 4
      %s54 = int_to_ptr.vmem [resolvable:$true] %s53
      %59 = dma.hbm_to_vmem [thread:$0]  %s3, 25600, %s54, [#allocation9], 320, 320, 20
    $region17: #{tpu_custom_call.1} parent=1 // pred_fallthru
      _
    // Predicated region
    $region18: #{tpu_custom_call.1} parent=1 // pred_check
      _
    $region19: #{tpu_custom_call.1} parent=1 // pred_check_branch
      %61 = sbr.rel (0) target = $region21
    $region20: #{tpu_custom_call.1} parent=1 // pred_region
      _
    $region21: #{tpu_custom_call.1} parent=1 // pred_fallthru
      _
    // Predicated region
    $region22: #{tpu_custom_call.1} parent=1 // pred_check
      _
    $region23: #{tpu_custom_call.1} parent=1 // pred_check_branch
      %63 = sbr.rel (0) target = $region25
    $region24: #{tpu_custom_call.1} parent=1 // pred_region
      %s65 = ssub.s32 5120, 5120
      %66 = vsyncadd [#allocation9], %s65
      %s67 = sshll.u32 [#allocation10], 4
      %s68 = int_to_ptr.vmem [resolvable:$true] %s67
      %73 = dma.hbm_to_vmem [thread:$0]  %s5, 5120, %s68, [#allocation9], 64, 64, 4
    $region25: #{tpu_custom_call.1} parent=1 // pred_fallthru
      _
    // Predicated region
    $region26: #{tpu_custom_call.1} parent=1 // pred_check
      _
    $region27: #{tpu_custom_call.1} parent=1 // pred_check_branch
      %75 = sbr.rel (0) target = $region29
    $region28: #{tpu_custom_call.1} parent=1 // pred_region
      _
    $region29: #{tpu_custom_call.1} parent=1 // pred_fallthru
      _
    // Predicated region
    $region30: #{tpu_custom_call.1} parent=1 // pred_check
      _
    $region31: #{tpu_custom_call.1} parent=1 // pred_check_branch
      %77 = sbr.rel (0) target = $region33
    $region32: #{tpu_custom_call.1} parent=1 // pred_region
      %78 = dma.done [#allocation3], 128
    $region33: #{tpu_custom_call.1} parent=1 // pred_fallthru
      _
    // Predicated region
    $region34: #{tpu_custom_call.1} parent=1 // pred_check
      _
    $region35: #{tpu_custom_call.1} parent=1 // pred_check_branch
      %80 = sbr.rel (0) target = $region37
    $region36: #{tpu_custom_call.1} parent=1 // pred_region
      %81 = dma.done [#allocation6], 1600
    $region37: #{tpu_custom_call.1} parent=1 // pred_fallthru
      _
    // Predicated region
    $region38: #{tpu_custom_call.1} parent=1 // pred_check
      _
    $region39: #{tpu_custom_call.1} parent=1 // pred_check_branch
      %83 = sbr.rel (0) target = $region41
    $region40: #{tpu_custom_call.1} parent=1 // pred_region
      %84 = dma.done [#allocation6], 80
    $region41: #{tpu_custom_call.1} parent=1 // pred_fallthru
      _
    // Predicated region
    $region42: #{tpu_custom_call.1} parent=1 // pred_check
      _
    $region43: #{tpu_custom_call.1} parent=1 // pred_check_branch
      %86 = sbr.rel (0) target = $region45
    $region44: #{tpu_custom_call.1} parent=1 // pred_region
      %87 = dma.done [#allocation9], 25600
    $region45: #{tpu_custom_call.1} parent=1 // pred_fallthru
      _
    // Predicated region
    $region46: #{tpu_custom_call.1} parent=1 // pred_check
      _
    $region47: #{tpu_custom_call.1} parent=1 // pred_check_branch
      %89 = sbr.rel (0) target = $region49
    $region48: #{tpu_custom_call.1} parent=1 // pred_region
      %90 = dma.done [#allocation9], 5120
    $region49: #{tpu_custom_call.1} parent=1 // pred_fallthru
      _
    %v92 = vld [vmem:[#allocation2] sm:$0xff]
    %v93 = vpack.c.bf16 %v92, %v92
    %v94 = vld [vmem:[#allocation5] sm:$0xff]
    %v95 = vld [vmem:[#allocation5 + $0x8] sm:$0xff]
    %v96 = vld [vmem:[#allocation5 + $0x10] sm:$0xf]
    %v97 = vld [vmem:[#allocation5 + $0x14] sm:$0xff]
    %v98 = vld [vmem:[#allocation5 + $0x1c] sm:$0xff]
    %v99 = vld [vmem:[#allocation5 + $0x24] sm:$0xf]
    %v100 = vld [vmem:[#allocation5 + $0x28] sm:$0xff]
    %v101 = vld [vmem:[#allocation5 + $0x30] sm:$0xff]
    %v102 = vld [vmem:[#allocation5 + $0x38] sm:$0xf]
    %v103 = vld [vmem:[#allocation5 + $0x3c] sm:$0xff]
    %v104 = vld [vmem:[#allocation5 + $0x44] sm:$0xff]
    %v105 = vld [vmem:[#allocation5 + $0x4c] sm:$0xf]
    %v106 = vld [vmem:[#allocation5 + $0x50] sm:$0xff]
    %v107 = vld [vmem:[#allocation5 + $0x58] sm:$0xff]
    %v108 = vld [vmem:[#allocation5 + $0x60] sm:$0xf]
    %v124 = vunpack.c.l.b16 %v94
    %v125 = vunpack.c.h.b16 %v94
    %v126 = vunpack.c.l.b16 %v95
    %v127 = vunpack.c.h.b16 %v95
    %v128 = vunpack.c.l.b16 %v96
    %v129 = vunpack.c.l.b16 %v97
    %v130 = vunpack.c.h.b16 %v97
    %v131 = vunpack.c.l.b16 %v98
    %v132 = vunpack.c.h.b16 %v98
    %v133 = vunpack.c.l.b16 %v99
    %v134 = vunpack.c.l.b16 %v100
    %v135 = vunpack.c.h.b16 %v100
    %v136 = vunpack.c.l.b16 %v101
    %v137 = vunpack.c.h.b16 %v101
    %v138 = vunpack.c.l.b16 %v102
    %v139 = vunpack.c.l.b16 %v103
    %v140 = vunpack.c.h.b16 %v103
    %v141 = vunpack.c.l.b16 %v104
    %v142 = vunpack.c.h.b16 %v104
    %v143 = vunpack.c.l.b16 %v105
    %v144 = vunpack.c.l.b16 %v106
    %v145 = vunpack.c.h.b16 %v106
    %v146 = vunpack.c.l.b16 %v107
    %v147 = vunpack.c.h.b16 %v107
    %v148 = vunpack.c.l.b16 %v108
    %v149 = vpack.c.b16 %v129, %v124
    %v150 = vpack.c.b16 %v130, %v125
    %v151 = vpack.c.b16 %v131, %v126
    %v152 = vpack.c.b16 %v132, %v127
    %v153 = vpack.c.b16 %v133, %v128
    %v154 = vpack.c.b16 %v139, %v134
    %v155 = vpack.c.b16 %v140, %v135
    %v156 = vpack.c.b16 %v141, %v136
    %v157 = vpack.c.b16 %v142, %v137
    %v158 = vpack.c.b16 %v143, %v138
    %v159 = vpack.c.b16 %v144, %v144
    %v160 = vpack.c.b16 %v145, %v145
    %v161 = vpack.c.b16 %v146, %v146
    %v162 = vpack.c.b16 %v147, %v147
    %v163 = vpack.c.b16 %v148, %v148
    %vm174 = vcmask 326656
    %v176 = vsel %vm174, %v93, 0
    %vm178 = vcmask 1043456
    %v180 = vsel %vm178, %v159, 0
    %v183 = vsel %vm178, %v160, 0
    %v186 = vsel %vm178, %v161, 0
    %v189 = vsel %vm178, %v162, 0
    %v192 = vsel %vm178, %v163, 0
    %194 = vmatprep.subr.bf16.mxu0 0
    %195 = vmatpush1.bf16.msra.mxu0 0
    %196 = vmatprep.subr.bf16.mxu0 0
    %197 = vmatpush1.bf16.msra.mxu0 0
    %198 = vmatprep.subr.bf16.mxu0 0
    %199 = vmatpush1.bf16.msra.mxu0 0
    %200 = vmatprep.subr.bf16.mxu0 0
    %201 = vmatpush1.bf16.msra.mxu0 0
    %202 = vmatprep.subr.bf16.mxu0 0
    %203 = vmatpush1.bf16.msra.mxu0 0
    %204 = vmatprep.subr.bf16.mxu0 %v183
    %205 = vmatpush1.bf16.msra.mxu0 %v180
    %206 = vmatprep.subr.bf16.mxu0 %v155
    %207 = vmatpush1.bf16.msra.mxu0 %v154
    %208 = vmatprep.subr.bf16.mxu0 %v150
    %209 = vmatpush1.bf16.msra.mxu0 %v149
    %210 = vmatprep.subr.bf16.mxu0 0
    %211 = vmatpush2.bf16.msra.mxu0 0
    %212 = vmatprep.subr.bf16.mxu0 0
    %213 = vmatpush2.bf16.msra.mxu0 0
    %214 = vmatprep.subr.bf16.mxu0 0
    %215 = vmatpush2.bf16.msra.mxu0 0
    %216 = vmatprep.subr.bf16.mxu0 0
    %217 = vmatpush2.bf16.msra.mxu0 0
    %218 = vmatprep.subr.bf16.mxu0 0
    %219 = vmatpush2.bf16.msra.mxu0 0
    %220 = vmatprep.subr.bf16.mxu0 0
    %221 = vmatpush2.bf16.msra.mxu0 0
    %222 = vmatprep.subr.bf16.mxu0 0
    %223 = vmatpush2.bf16.msra.mxu0 0
    %224 = vmatprep.subr.bf16.mxu0 0
    %225 = vmatpush2.bf16.msra.mxu0 0
    %226 = vmatprep.mubr.bf16.mxu0 0
    %227 = vmatmul.mubr.bf16.gmra.mxu0 %v176
    %v228 = vpop.f32.mrf.mxu0
    %v229 = vadd.f32 0.0, %v228
    %v230 = vpop.f32.mrf.mxu0
    %v231 = vadd.f32 0.0, %v230
    %v232 = vpop.f32.mrf.mxu0
    %v233 = vpop.f32.mrf.mxu0
    %234 = vdwg.mxu0
    %235 = vmatprep.subr.bf16.mxu0 0
    %236 = vmatpush1.bf16.msra.mxu0 0
    %237 = vmatprep.subr.bf16.mxu0 0
    %238 = vmatpush1.bf16.msra.mxu0 0
    %239 = vmatprep.subr.bf16.mxu0 0
    %240 = vmatpush1.bf16.msra.mxu0 0
    %241 = vmatprep.subr.bf16.mxu0 0
    %242 = vmatpush1.bf16.msra.mxu0 0
    %243 = vmatprep.subr.bf16.mxu0 0
    %244 = vmatpush1.bf16.msra.mxu0 0
    %245 = vmatprep.subr.bf16.mxu0 %v189
    %246 = vmatpush1.bf16.msra.mxu0 %v186
    %247 = vmatprep.subr.bf16.mxu0 %v157
    %248 = vmatpush1.bf16.msra.mxu0 %v156
    %249 = vmatprep.subr.bf16.mxu0 %v152
    %250 = vmatpush1.bf16.msra.mxu0 %v151
    %251 = vmatprep.subr.bf16.mxu0 0
    %252 = vmatpush2.bf16.msra.mxu0 0
    %253 = vmatprep.subr.bf16.mxu0 0
    %254 = vmatpush2.bf16.msra.mxu0 0
    %255 = vmatprep.subr.bf16.mxu0 0
    %256 = vmatpush2.bf16.msra.mxu0 0
    %257 = vmatprep.subr.bf16.mxu0 0
    %258 = vmatpush2.bf16.msra.mxu0 0
    %259 = vmatprep.subr.bf16.mxu0 0
    %260 = vmatpush2.bf16.msra.mxu0 0
    %261 = vmatprep.subr.bf16.mxu0 0
    %262 = vmatpush2.bf16.msra.mxu0 0
    %263 = vmatprep.subr.bf16.mxu0 0
    %264 = vmatpush2.bf16.msra.mxu0 0
    %265 = vmatprep.subr.bf16.mxu0 0
    %266 = vmatpush2.bf16.msra.mxu0 0
    %267 = vmatprep.mubr.bf16.mxu0 0
    %268 = vmatmul.mubr.bf16.gmra.mxu0 %v176
    %v269 = vpop.f32.mrf.mxu0
    %v270 = vadd.f32 0.0, %v269
    %v271 = vpop.f32.mrf.mxu0
    %v272 = vadd.f32 0.0, %v271
    %v273 = vpop.f32.mrf.mxu0
    %v274 = vpop.f32.mrf.mxu0
    %275 = vdwg.mxu0
    %276 = vmatprep.subr.bf16.mxu0 0
    %277 = vmatpush1.bf16.msra.mxu0 0
    %278 = vmatprep.subr.bf16.mxu0 0
    %279 = vmatpush1.bf16.msra.mxu0 0
    %280 = vmatprep.subr.bf16.mxu0 0
    %281 = vmatpush1.bf16.msra.mxu0 0
    %282 = vmatprep.subr.bf16.mxu0 0
    %283 = vmatpush1.bf16.msra.mxu0 0
    %284 = vmatprep.subr.bf16.mxu0 0
    %285 = vmatpush1.bf16.msra.mxu0 0
    %286 = vmatprep.subr.bf16.mxu0 0
    %287 = vmatpush1.bf16.msra.mxu0 %v192
    %288 = vmatprep.subr.bf16.mxu0 0
    %289 = vmatpush1.bf16.msra.mxu0 %v158
    %290 = vmatprep.subr.bf16.mxu0 0
    %291 = vmatpush1.bf16.msra.mxu0 %v153
    %292 = vmatprep.subr.bf16.mxu0 0
    %293 = vmatpush2.bf16.msra.mxu0 0
    %294 = vmatprep.subr.bf16.mxu0 0
    %295 = vmatpush2.bf16.msra.mxu0 0
    %296 = vmatprep.subr.bf16.mxu0 0
    %297 = vmatpush2.bf16.msra.mxu0 0
    %298 = vmatprep.subr.bf16.mxu0 0
    %299 = vmatpush2.bf16.msra.mxu0 0
    %300 = vmatprep.subr.bf16.mxu0 0
    %301 = vmatpush2.bf16.msra.mxu0 0
    %302 = vmatprep.subr.bf16.mxu0 0
    %303 = vmatpush2.bf16.msra.mxu0 0
    %304 = vmatprep.subr.bf16.mxu0 0
    %305 = vmatpush2.bf16.msra.mxu0 0
    %306 = vmatprep.subr.bf16.mxu0 0
    %307 = vmatpush2.bf16.msra.mxu0 0
    %308 = vmatprep.mubr.bf16.mxu0 0
    %309 = vmatmul.mubr.bf16.gmra.mxu0 %v176
    %v310 = vpop.f32.mrf.mxu0
    %v311 = vadd.f32 0.0, %v310
    %v312 = vpop.f32.mrf.mxu0
    %v313 = vpop.f32.mrf.mxu0
    %v314 = vpop.f32.mrf.mxu0
    %315 = vdwg.mxu0
    %v316 = vpack.c.bf16 %v229, %v229
    %v317 = vpack.c.bf16 %v231, %v231
    %v318 = vpack.c.bf16 %v270, %v270
    %v319 = vpack.c.bf16 %v272, %v272
    %v320 = vpack.c.bf16 %v311, %v311
    %v321 = vld [vmem:[#allocation7] sm:$0x1f]
    %v323 = vlaneseq
    %v324 = vshrl.u32 %v323, 7
    %v325 = vsub.s32 0, %v324
    %v326 = vrot.slane %v321, %v325
    %v327 = vlaneseq
    %v328 = vshrl.u32 %v327, 7
    %v329 = vsub.s32 1, %v328
    %v330 = vrot.slane %v321, %v329
    %v331 = vlaneseq
    %v332 = vshrl.u32 %v331, 7
    %v333 = vsub.s32 2, %v332
    %v334 = vrot.slane %v321, %v333
    %v335 = vlaneseq
    %v336 = vshrl.u32 %v335, 7
    %v337 = vsub.s32 3, %v336
    %v338 = vrot.slane %v321, %v337
    %v339 = vlaneseq
    %v340 = vshrl.u32 %v339, 7
    %v341 = vsub.s32 4, %v340
    %v342 = vrot.slane %v321, %v341
    %v348 = vpack.c.bf16 %v326, %v326
    %v349 = vpack.c.bf16 %v330, %v330
    %v350 = vpack.c.bf16 %v334, %v334
    %v351 = vpack.c.bf16 %v338, %v338
    %v352 = vpack.c.bf16 %v342, %v342
    %v354 = vpack.i.b16 %v348, %v348
    %v356 = vlaneseq
    %v357 = vshrl.u32 %v356, 7
    %v358 = vsub.s32 0, %v357
    %v359 = vrot.slane %v354, %v358
    %v361 = vpack.i.b16 %v349, %v349
    %v363 = vlaneseq
    %v364 = vshrl.u32 %v363, 7
    %v365 = vsub.s32 0, %v364
    %v366 = vrot.slane %v361, %v365
    %v368 = vpack.i.b16 %v350, %v350
    %v370 = vlaneseq
    %v371 = vshrl.u32 %v370, 7
    %v372 = vsub.s32 0, %v371
    %v373 = vrot.slane %v368, %v372
    %v375 = vpack.i.b16 %v351, %v351
    %v377 = vlaneseq
    %v378 = vshrl.u32 %v377, 7
    %v379 = vsub.s32 0, %v378
    %v380 = vrot.slane %v375, %v379
    %v382 = vpack.i.b16 %v352, %v352
    %v384 = vlaneseq
    %v385 = vshrl.u32 %v384, 7
    %v386 = vsub.s32 0, %v385
    %v387 = vrot.slane %v382, %v386
    %v388 = vadd.bf16 %v316, %v359
    %v389 = vadd.bf16 %v317, %v366
    %v390 = vadd.bf16 %v318, %v373
    %v391 = vadd.bf16 %v319, %v380
    %v392 = vadd.bf16 %v320, %v387
    %v393 = vmax.bf16 %v388, 0
    %v394 = vmax.bf16 %v389, 0
    %v395 = vmax.bf16 %v390, 0
    %v396 = vmax.bf16 %v391, 0
    %v397 = vmax.bf16 %v392, 0
    %v398 = vld [vmem:[#allocation8] sm:$0xff]
    %v399 = vld [vmem:[#allocation8 + $0x8] sm:$0xff]
    %v400 = vld [vmem:[#allocation8 + $0x10] sm:$0xf]
    %v401 = vld [vmem:[#allocation8 + $0x14] sm:$0xff]
    %v402 = vld [vmem:[#allocation8 + $0x1c] sm:$0xff]
    %v403 = vld [vmem:[#allocation8 + $0x24] sm:$0xf]
    %v404 = vld [vmem:[#allocation8 + $0x28] sm:$0xff]
    %v405 = vld [vmem:[#allocation8 + $0x30] sm:$0xff]
    %v406 = vld [vmem:[#allocation8 + $0x38] sm:$0xf]
    %v407 = vld [vmem:[#allocation8 + $0x3c] sm:$0xff]
    %v408 = vld [vmem:[#allocation8 + $0x44] sm:$0xff]
    %v409 = vld [vmem:[#allocation8 + $0x4c] sm:$0xf]
    %v410 = vld [vmem:[#allocation8 + $0x50] sm:$0xff]
    %v411 = vld [vmem:[#allocation8 + $0x58] sm:$0xff]
    %v412 = vld [vmem:[#allocation8 + $0x60] sm:$0xf]
    %v413 = vld [vmem:[#allocation8 + $0x64] sm:$0xff]
    %v414 = vld [vmem:[#allocation8 + $0x6c] sm:$0xff]
    %v415 = vld [vmem:[#allocation8 + $0x74] sm:$0xf]
    %v416 = vld [vmem:[#allocation8 + $0x78] sm:$0xff]
    %v417 = vld [vmem:[#allocation8 + $0x80] sm:$0xff]
    %v418 = vld [vmem:[#allocation8 + $0x88] sm:$0xf]
    %v419 = vld [vmem:[#allocation8 + $0x8c] sm:$0xff]
    %v420 = vld [vmem:[#allocation8 + $0x94] sm:$0xff]
    %v421 = vld [vmem:[#allocation8 + $0x9c] sm:$0xf]
    %v422 = vld [vmem:[#allocation8 + $0xa0] sm:$0xff]
    %v423 = vld [vmem:[#allocation8 + $0xa8] sm:$0xff]
    %v424 = vld [vmem:[#allocation8 + $0xb0] sm:$0xf]
    %v425 = vld [vmem:[#allocation8 + $0xb4] sm:$0xff]
    %v426 = vld [vmem:[#allocation8 + $0xbc] sm:$0xff]
    %v427 = vld [vmem:[#allocation8 + $0xc4] sm:$0xf]
    %v428 = vld [vmem:[#allocation8 + $0xc8] sm:$0xff]
    %v429 = vld [vmem:[#allocation8 + $0xd0] sm:$0xff]
    %v430 = vld [vmem:[#allocation8 + $0xd8] sm:$0xf]
    %v431 = vld [vmem:[#allocation8 + $0xdc] sm:$0xff]
    %v432 = vld [vmem:[#allocation8 + $0xe4] sm:$0xff]
    %v433 = vld [vmem:[#allocation8 + $0xec] sm:$0xf]
    %v434 = vld [vmem:[#allocation8 + $0xf0] sm:$0xff]
    %v435 = vld [vmem:[#allocation8 + $0xf8] sm:$0xff]
    %v436 = vld [vmem:[#allocation8 + $0x100] sm:$0xf]
    %v437 = vld [vmem:[#allocation8 + $0x104] sm:$0xff]
    %v438 = vld [vmem:[#allocation8 + $0x10c] sm:$0xff]
    %v439 = vld [vmem:[#allocation8 + $0x114] sm:$0xf]
    %v440 = vld [vmem:[#allocation8 + $0x118] sm:$0xff]
    %v441 = vld [vmem:[#allocation8 + $0x120] sm:$0xff]
    %v442 = vld [vmem:[#allocation8 + $0x128] sm:$0xf]
    %v443 = vld [vmem:[#allocation8 + $0x12c] sm:$0xff]
    %v444 = vld [vmem:[#allocation8 + $0x134] sm:$0xff]
    %v445 = vld [vmem:[#allocation8 + $0x13c] sm:$0xf]
    %v446 = vld [vmem:[#allocation8 + $0x140] sm:$0xff]
    %v447 = vld [vmem:[#allocation8 + $0x148] sm:$0xff]
    %v448 = vld [vmem:[#allocation8 + $0x150] sm:$0xf]
    %v449 = vld [vmem:[#allocation8 + $0x154] sm:$0xff]
    %v450 = vld [vmem:[#allocation8 + $0x15c] sm:$0xff]
    %v451 = vld [vmem:[#allocation8 + $0x164] sm:$0xf]
    %v452 = vld [vmem:[#allocation8 + $0x168] sm:$0xff]
    %v453 = vld [vmem:[#allocation8 + $0x170] sm:$0xff]
    %v454 = vld [vmem:[#allocation8 + $0x178] sm:$0xf]
    %v455 = vld [vmem:[#allocation8 + $0x17c] sm:$0xff]
    %v456 = vld [vmem:[#allocation8 + $0x184] sm:$0xff]
    %v457 = vld [vmem:[#allocation8 + $0x18c] sm:$0xf]
    %v458 = vld [vmem:[#allocation8 + $0x190] sm:$0xff]
    %v459 = vld [vmem:[#allocation8 + $0x198] sm:$0xff]
    %v460 = vld [vmem:[#allocation8 + $0x1a0] sm:$0xf]
    %v461 = vld [vmem:[#allocation8 + $0x1a4] sm:$0xff]
    %v462 = vld [vmem:[#allocation8 + $0x1ac] sm:$0xff]
    %v463 = vld [vmem:[#allocation8 + $0x1b4] sm:$0xf]
    %v464 = vld [vmem:[#allocation8 + $0x1b8] sm:$0xff]
    %v465 = vld [vmem:[#allocation8 + $0x1c0] sm:$0xff]
    %v466 = vld [vmem:[#allocation8 + $0x1c8] sm:$0xf]
    %v467 = vld [vmem:[#allocation8 + $0x1cc] sm:$0xff]
    %v468 = vld [vmem:[#allocation8 + $0x1d4] sm:$0xff]
    %v469 = vld [vmem:[#allocation8 + $0x1dc] sm:$0xf]
    %v470 = vld [vmem:[#allocation8 + $0x1e0] sm:$0xff]
    %v471 = vld [vmem:[#allocation8 + $0x1e8] sm:$0xff]
    %v472 = vld [vmem:[#allocation8 + $0x1f0] sm:$0xf]
    %v473 = vld [vmem:[#allocation8 + $0x1f4] sm:$0xff]
    %v474 = vld [vmem:[#allocation8 + $0x1fc] sm:$0xff]
    %v475 = vld [vmem:[#allocation8 + $0x204] sm:$0xf]
    %v476 = vld [vmem:[#allocation8 + $0x208] sm:$0xff]
    %v477 = vld [vmem:[#allocation8 + $0x210] sm:$0xff]
    %v478 = vld [vmem:[#allocation8 + $0x218] sm:$0xf]
    %v479 = vld [vmem:[#allocation8 + $0x21c] sm:$0xff]
    %v480 = vld [vmem:[#allocation8 + $0x224] sm:$0xff]
    %v481 = vld [vmem:[#allocation8 + $0x22c] sm:$0xf]
    %v482 = vld [vmem:[#allocation8 + $0x230] sm:$0xff]
    %v483 = vld [vmem:[#allocation8 + $0x238] sm:$0xff]
    %v484 = vld [vmem:[#allocation8 + $0x240] sm:$0xf]
    %v485 = vld [vmem:[#allocation8 + $0x244] sm:$0xff]
    %v486 = vld [vmem:[#allocation8 + $0x24c] sm:$0xff]
    %v487 = vld [vmem:[#allocation8 + $0x254] sm:$0xf]
    %v488 = vld [vmem:[#allocation8 + $0x258] sm:$0xff]
    %v489 = vld [vmem:[#allocation8 + $0x260] sm:$0xff]
    %v490 = vld [vmem:[#allocation8 + $0x268] sm:$0xf]
    %v491 = vld [vmem:[#allocation8 + $0x26c] sm:$0xff]
    %v492 = vld [vmem:[#allocation8 + $0x274] sm:$0xff]
    %v493 = vld [vmem:[#allocation8 + $0x27c] sm:$0xf]
    %v494 = vld [vmem:[#allocation8 + $0x280] sm:$0xff]
    %v495 = vld [vmem:[#allocation8 + $0x288] sm:$0xff]
    %v496 = vld [vmem:[#allocation8 + $0x290] sm:$0xf]
    %v497 = vld [vmem:[#allocation8 + $0x294] sm:$0xff]
    %v498 = vld [vmem:[#allocation8 + $0x29c] sm:$0xff]
    %v499 = vld [vmem:[#allocation8 + $0x2a4] sm:$0xf]
    %v500 = vld [vmem:[#allocation8 + $0x2a8] sm:$0xff]
    %v501 = vld [vmem:[#allocation8 + $0x2b0] sm:$0xff]
    %v502 = vld [vmem:[#allocation8 + $0x2b8] sm:$0xf]
    %v503 = vld [vmem:[#allocation8 + $0x2bc] sm:$0xff]
    %v504 = vld [vmem:[#allocation8 + $0x2c4] sm:$0xff]
    %v505 = vld [vmem:[#allocation8 + $0x2cc] sm:$0xf]
    %v506 = vld [vmem:[#allocation8 + $0x2d0] sm:$0xff]
    %v507 = vld [vmem:[#allocation8 + $0x2d8] sm:$0xff]
    %v508 = vld [vmem:[#allocation8 + $0x2e0] sm:$0xf]
    %v509 = vld [vmem:[#allocation8 + $0x2e4] sm:$0xff]
    %v510 = vld [vmem:[#allocation8 + $0x2ec] sm:$0xff]
    %v511 = vld [vmem:[#allocation8 + $0x2f4] sm:$0xf]
    %v512 = vld [vmem:[#allocation8 + $0x2f8] sm:$0xff]
    %v513 = vld [vmem:[#allocation8 + $0x300] sm:$0xff]
    %v514 = vld [vmem:[#allocation8 + $0x308] sm:$0xf]
    %v515 = vld [vmem:[#allocation8 + $0x30c] sm:$0xff]
    %v516 = vld [vmem:[#allocation8 + $0x314] sm:$0xff]
    %v517 = vld [vmem:[#allocation8 + $0x31c] sm:$0xf]
    %v518 = vld [vmem:[#allocation8 + $0x320] sm:$0xff]
    %v519 = vld [vmem:[#allocation8 + $0x328] sm:$0xff]
    %v520 = vld [vmem:[#allocation8 + $0x330] sm:$0xf]
    %v521 = vld [vmem:[#allocation8 + $0x334] sm:$0xff]
    %v522 = vld [vmem:[#allocation8 + $0x33c] sm:$0xff]
    %v523 = vld [vmem:[#allocation8 + $0x344] sm:$0xf]
    %v524 = vld [vmem:[#allocation8 + $0x348] sm:$0xff]
    %v525 = vld [vmem:[#allocation8 + $0x350] sm:$0xff]
    %v526 = vld [vmem:[#allocation8 + $0x358] sm:$0xf]
    %v527 = vld [vmem:[#allocation8 + $0x35c] sm:$0xff]
    %v528 = vld [vmem:[#allocation8 + $0x364] sm:$0xff]
    %v529 = vld [vmem:[#allocation8 + $0x36c] sm:$0xf]
    %v530 = vld [vmem:[#allocation8 + $0x370] sm:$0xff]
    %v531 = vld [vmem:[#allocation8 + $0x378] sm:$0xff]
    %v532 = vld [vmem:[#allocation8 + $0x380] sm:$0xf]
    %v533 = vld [vmem:[#allocation8 + $0x384] sm:$0xff]
    %v534 = vld [vmem:[#allocation8 + $0x38c] sm:$0xff]
    %v535 = vld [vmem:[#allocation8 + $0x394] sm:$0xf]
    %v536 = vld [vmem:[#allocation8 + $0x398] sm:$0xff]
    %v537 = vld [vmem:[#allocation8 + $0x3a0] sm:$0xff]
    %v538 = vld [vmem:[#allocation8 + $0x3a8] sm:$0xf]
    %v539 = vld [vmem:[#allocation8 + $0x3ac] sm:$0xff]
    %v540 = vld [vmem:[#allocation8 + $0x3b4] sm:$0xff]
    %v541 = vld [vmem:[#allocation8 + $0x3bc] sm:$0xf]
    %v542 = vld [vmem:[#allocation8 + $0x3c0] sm:$0xff]
    %v543 = vld [vmem:[#allocation8 + $0x3c8] sm:$0xff]
    %v544 = vld [vmem:[#allocation8 + $0x3d0] sm:$0xf]
    %v545 = vld [vmem:[#allocation8 + $0x3d4] sm:$0xff]
    %v546 = vld [vmem:[#allocation8 + $0x3dc] sm:$0xff]
    %v547 = vld [vmem:[#allocation8 + $0x3e4] sm:$0xf]
    %v548 = vld [vmem:[#allocation8 + $0x3e8] sm:$0xff]
    %v549 = vld [vmem:[#allocation8 + $0x3f0] sm:$0xff]
    %v550 = vld [vmem:[#allocation8 + $0x3f8] sm:$0xf]
    %v551 = vld [vmem:[#allocation8 + $0x3fc] sm:$0xff]
    %v552 = vld [vmem:[#allocation8 + $0x404] sm:$0xff]
    %v553 = vld [vmem:[#allocation8 + $0x40c] sm:$0xf]
    %v554 = vld [vmem:[#allocation8 + $0x410] sm:$0xff]
    %v555 = vld [vmem:[#allocation8 + $0x418] sm:$0xff]
    %v556 = vld [vmem:[#allocation8 + $0x420] sm:$0xf]
    %v557 = vld [vmem:[#allocation8 + $0x424] sm:$0xff]
    %v558 = vld [vmem:[#allocation8 + $0x42c] sm:$0xff]
    %v559 = vld [vmem:[#allocation8 + $0x434] sm:$0xf]
    %v560 = vld [vmem:[#allocation8 + $0x438] sm:$0xff]
    %v561 = vld [vmem:[#allocation8 + $0x440] sm:$0xff]
    %v562 = vld [vmem:[#allocation8 + $0x448] sm:$0xf]
    %v563 = vld [vmem:[#allocation8 + $0x44c] sm:$0xff]
    %v564 = vld [vmem:[#allocation8 + $0x454] sm:$0xff]
    %v565 = vld [vmem:[#allocation8 + $0x45c] sm:$0xf]
    %v566 = vld [vmem:[#allocation8 + $0x460] sm:$0xff]
    %v567 = vld [vmem:[#allocation8 + $0x468] sm:$0xff]
    %v568 = vld [vmem:[#allocation8 + $0x470] sm:$0xf]
    %v569 = vld [vmem:[#allocation8 + $0x474] sm:$0xff]
    %v570 = vld [vmem:[#allocation8 + $0x47c] sm:$0xff]
    %v571 = vld [vmem:[#allocation8 + $0x484] sm:$0xf]
    %v572 = vld [vmem:[#allocation8 + $0x488] sm:$0xff]
    %v573 = vld [vmem:[#allocation8 + $0x490] sm:$0xff]
    %v574 = vld [vmem:[#allocation8 + $0x498] sm:$0xf]
    %v575 = vld [vmem:[#allocation8 + $0x49c] sm:$0xff]
    %v576 = vld [vmem:[#allocation8 + $0x4a4] sm:$0xff]
    %v577 = vld [vmem:[#allocation8 + $0x4ac] sm:$0xf]
    %v578 = vld [vmem:[#allocation8 + $0x4b0] sm:$0xff]
    %v579 = vld [vmem:[#allocation8 + $0x4b8] sm:$0xff]
    %v580 = vld [vmem:[#allocation8 + $0x4c0] sm:$0xf]
    %v581 = vld [vmem:[#allocation8 + $0x4c4] sm:$0xff]
    %v582 = vld [vmem:[#allocation8 + $0x4cc] sm:$0xff]
    %v583 = vld [vmem:[#allocation8 + $0x4d4] sm:$0xf]
    %v584 = vld [vmem:[#allocation8 + $0x4d8] sm:$0xff]
    %v585 = vld [vmem:[#allocation8 + $0x4e0] sm:$0xff]
    %v586 = vld [vmem:[#allocation8 + $0x4e8] sm:$0xf]
    %v587 = vld [vmem:[#allocation8 + $0x4ec] sm:$0xff]
    %v588 = vld [vmem:[#allocation8 + $0x4f4] sm:$0xff]
    %v589 = vld [vmem:[#allocation8 + $0x4fc] sm:$0xf]
    %v590 = vld [vmem:[#allocation8 + $0x500] sm:$0xff]
    %v591 = vld [vmem:[#allocation8 + $0x508] sm:$0xff]
    %v592 = vld [vmem:[#allocation8 + $0x510] sm:$0xf]
    %v593 = vld [vmem:[#allocation8 + $0x514] sm:$0xff]
    %v594 = vld [vmem:[#allocation8 + $0x51c] sm:$0xff]
    %v595 = vld [vmem:[#allocation8 + $0x524] sm:$0xf]
    %v596 = vld [vmem:[#allocation8 + $0x528] sm:$0xff]
    %v597 = vld [vmem:[#allocation8 + $0x530] sm:$0xff]
    %v598 = vld [vmem:[#allocation8 + $0x538] sm:$0xf]
    %v599 = vld [vmem:[#allocation8 + $0x53c] sm:$0xff]
    %v600 = vld [vmem:[#allocation8 + $0x544] sm:$0xff]
    %v601 = vld [vmem:[#allocation8 + $0x54c] sm:$0xf]
    %v602 = vld [vmem:[#allocation8 + $0x550] sm:$0xff]
    %v603 = vld [vmem:[#allocation8 + $0x558] sm:$0xff]
    %v604 = vld [vmem:[#allocation8 + $0x560] sm:$0xf]
    %v605 = vld [vmem:[#allocation8 + $0x564] sm:$0xff]
    %v606 = vld [vmem:[#allocation8 + $0x56c] sm:$0xff]
    %v607 = vld [vmem:[#allocation8 + $0x574] sm:$0xf]
    %v608 = vld [vmem:[#allocation8 + $0x578] sm:$0xff]
    %v609 = vld [vmem:[#allocation8 + $0x580] sm:$0xff]
    %v610 = vld [vmem:[#allocation8 + $0x588] sm:$0xf]
    %v611 = vld [vmem:[#allocation8 + $0x58c] sm:$0xff]
    %v612 = vld [vmem:[#allocation8 + $0x594] sm:$0xff]
    %v613 = vld [vmem:[#allocation8 + $0x59c] sm:$0xf]
    %v614 = vld [vmem:[#allocation8 + $0x5a0] sm:$0xff]
    %v615 = vld [vmem:[#allocation8 + $0x5a8] sm:$0xff]
    %v616 = vld [vmem:[#allocation8 + $0x5b0] sm:$0xf]
    %v617 = vld [vmem:[#allocation8 + $0x5b4] sm:$0xff]
    %v618 = vld [vmem:[#allocation8 + $0x5bc] sm:$0xff]
    %v619 = vld [vmem:[#allocation8 + $0x5c4] sm:$0xf]
    %v620 = vld [vmem:[#allocation8 + $0x5c8] sm:$0xff]
    %v621 = vld [vmem:[#allocation8 + $0x5d0] sm:$0xff]
    %v622 = vld [vmem:[#allocation8 + $0x5d8] sm:$0xf]
    %v623 = vld [vmem:[#allocation8 + $0x5dc] sm:$0xff]
    %v624 = vld [vmem:[#allocation8 + $0x5e4] sm:$0xff]
    %v625 = vld [vmem:[#allocation8 + $0x5ec] sm:$0xf]
    %v626 = vld [vmem:[#allocation8 + $0x5f0] sm:$0xff]
    %v627 = vld [vmem:[#allocation8 + $0x5f8] sm:$0xff]
    %v628 = vld [vmem:[#allocation8 + $0x600] sm:$0xf]
    %v629 = vld [vmem:[#allocation8 + $0x604] sm:$0xff]
    %v630 = vld [vmem:[#allocation8 + $0x60c] sm:$0xff]
    %v631 = vld [vmem:[#allocation8 + $0x614] sm:$0xf]
    %v632 = vld [vmem:[#allocation8 + $0x618] sm:$0xff]
    %v633 = vld [vmem:[#allocation8 + $0x620] sm:$0xff]
    %v634 = vld [vmem:[#allocation8 + $0x628] sm:$0xf]
    %v635 = vld [vmem:[#allocation8 + $0x62c] sm:$0xff]
    %v636 = vld [vmem:[#allocation8 + $0x634] sm:$0xff]
    %v637 = vld [vmem:[#allocation8 + $0x63c] sm:$0xf]
    %v878 = vunpack.c.l.b16 %v398
    %v879 = vunpack.c.h.b16 %v398
    %v880 = vunpack.c.l.b16 %v399
    %v881 = vunpack.c.h.b16 %v399
    %v882 = vunpack.c.l.b16 %v400
    %v883 = vunpack.c.l.b16 %v401
    %v884 = vunpack.c.h.b16 %v401
    %v885 = vunpack.c.l.b16 %v402
    %v886 = vunpack.c.h.b16 %v402
    %v887 = vunpack.c.l.b16 %v403
    %v888 = vunpack.c.l.b16 %v404
    %v889 = vunpack.c.h.b16 %v404
    %v890 = vunpack.c.l.b16 %v405
    %v891 = vunpack.c.h.b16 %v405
    %v892 = vunpack.c.l.b16 %v406
    %v893 = vunpack.c.l.b16 %v407
    %v894 = vunpack.c.h.b16 %v407
    %v895 = vunpack.c.l.b16 %v408
    %v896 = vunpack.c.h.b16 %v408
    %v897 = vunpack.c.l.b16 %v409
    %v898 = vunpack.c.l.b16 %v410
    %v899 = vunpack.c.h.b16 %v410
    %v900 = vunpack.c.l.b16 %v411
    %v901 = vunpack.c.h.b16 %v411
    %v902 = vunpack.c.l.b16 %v412
    %v903 = vunpack.c.l.b16 %v413
    %v904 = vunpack.c.h.b16 %v413
    %v905 = vunpack.c.l.b16 %v414
    %v906 = vunpack.c.h.b16 %v414
    %v907 = vunpack.c.l.b16 %v415
    %v908 = vunpack.c.l.b16 %v416
    %v909 = vunpack.c.h.b16 %v416
    %v910 = vunpack.c.l.b16 %v417
    %v911 = vunpack.c.h.b16 %v417
    %v912 = vunpack.c.l.b16 %v418
    %v913 = vunpack.c.l.b16 %v419
    %v914 = vunpack.c.h.b16 %v419
    %v915 = vunpack.c.l.b16 %v420
    %v916 = vunpack.c.h.b16 %v420
    %v917 = vunpack.c.l.b16 %v421
    %v918 = vunpack.c.l.b16 %v422
    %v919 = vunpack.c.h.b16 %v422
    %v920 = vunpack.c.l.b16 %v423
    %v921 = vunpack.c.h.b16 %v423
    %v922 = vunpack.c.l.b16 %v424
    %v923 = vunpack.c.l.b16 %v425
    %v924 = vunpack.c.h.b16 %v425
    %v925 = vunpack.c.l.b16 %v426
    %v926 = vunpack.c.h.b16 %v426
    %v927 = vunpack.c.l.b16 %v427
    %v928 = vunpack.c.l.b16 %v428
    %v929 = vunpack.c.h.b16 %v428
    %v930 = vunpack.c.l.b16 %v429
    %v931 = vunpack.c.h.b16 %v429
    %v932 = vunpack.c.l.b16 %v430
    %v933 = vunpack.c.l.b16 %v431
    %v934 = vunpack.c.h.b16 %v431
    %v935 = vunpack.c.l.b16 %v432
    %v936 = vunpack.c.h.b16 %v432
    %v937 = vunpack.c.l.b16 %v433
    %v938 = vunpack.c.l.b16 %v434
    %v939 = vunpack.c.h.b16 %v434
    %v940 = vunpack.c.l.b16 %v435
    %v941 = vunpack.c.h.b16 %v435
    %v942 = vunpack.c.l.b16 %v436
    %v943 = vunpack.c.l.b16 %v437
    %v944 = vunpack.c.h.b16 %v437
    %v945 = vunpack.c.l.b16 %v438
    %v946 = vunpack.c.h.b16 %v438
    %v947 = vunpack.c.l.b16 %v439
    %v948 = vunpack.c.l.b16 %v440
    %v949 = vunpack.c.h.b16 %v440
    %v950 = vunpack.c.l.b16 %v441
    %v951 = vunpack.c.h.b16 %v441
    %v952 = vunpack.c.l.b16 %v442
    %v953 = vunpack.c.l.b16 %v443
    %v954 = vunpack.c.h.b16 %v443
    %v955 = vunpack.c.l.b16 %v444
    %v956 = vunpack.c.h.b16 %v444
    %v957 = vunpack.c.l.b16 %v445
    %v958 = vunpack.c.l.b16 %v446
    %v959 = vunpack.c.h.b16 %v446
    %v960 = vunpack.c.l.b16 %v447
    %v961 = vunpack.c.h.b16 %v447
    %v962 = vunpack.c.l.b16 %v448
    %v963 = vunpack.c.l.b16 %v449
    %v964 = vunpack.c.h.b16 %v449
    %v965 = vunpack.c.l.b16 %v450
    %v966 = vunpack.c.h.b16 %v450
    %v967 = vunpack.c.l.b16 %v451
    %v968 = vunpack.c.l.b16 %v452
    %v969 = vunpack.c.h.b16 %v452
    %v970 = vunpack.c.l.b16 %v453
    %v971 = vunpack.c.h.b16 %v453
    %v972 = vunpack.c.l.b16 %v454
    %v973 = vunpack.c.l.b16 %v455
    %v974 = vunpack.c.h.b16 %v455
    %v975 = vunpack.c.l.b16 %v456
    %v976 = vunpack.c.h.b16 %v456
    %v977 = vunpack.c.l.b16 %v457
    %v978 = vunpack.c.l.b16 %v458
    %v979 = vunpack.c.h.b16 %v458
    %v980 = vunpack.c.l.b16 %v459
    %v981 = vunpack.c.h.b16 %v459
    %v982 = vunpack.c.l.b16 %v460
    %v983 = vunpack.c.l.b16 %v461
    %v984 = vunpack.c.h.b16 %v461
    %v985 = vunpack.c.l.b16 %v462
    %v986 = vunpack.c.h.b16 %v462
    %v987 = vunpack.c.l.b16 %v463
    %v988 = vunpack.c.l.b16 %v464
    %v989 = vunpack.c.h.b16 %v464
    %v990 = vunpack.c.l.b16 %v465
    %v991 = vunpack.c.h.b16 %v465
    %v992 = vunpack.c.l.b16 %v466
    %v993 = vunpack.c.l.b16 %v467
    %v994 = vunpack.c.h.b16 %v467
    %v995 = vunpack.c.l.b16 %v468
    %v996 = vunpack.c.h.b16 %v468
    %v997 = vunpack.c.l.b16 %v469
    %v998 = vunpack.c.l.b16 %v470
    %v999 = vunpack.c.h.b16 %v470
    %v1000 = vunpack.c.l.b16 %v471
    %v1001 = vunpack.c.h.b16 %v471
    %v1002 = vunpack.c.l.b16 %v472
    %v1003 = vunpack.c.l.b16 %v473
    %v1004 = vunpack.c.h.b16 %v473
    %v1005 = vunpack.c.l.b16 %v474
    %v1006 = vunpack.c.h.b16 %v474
    %v1007 = vunpack.c.l.b16 %v475
    %v1008 = vunpack.c.l.b16 %v476
    %v1009 = vunpack.c.h.b16 %v476
    %v1010 = vunpack.c.l.b16 %v477
    %v1011 = vunpack.c.h.b16 %v477
    %v1012 = vunpack.c.l.b16 %v478
    %v1013 = vunpack.c.l.b16 %v479
    %v1014 = vunpack.c.h.b16 %v479
    %v1015 = vunpack.c.l.b16 %v480
    %v1016 = vunpack.c.h.b16 %v480
    %v1017 = vunpack.c.l.b16 %v481
    %v1018 = vunpack.c.l.b16 %v482
    %v1019 = vunpack.c.h.b16 %v482
    %v1020 = vunpack.c.l.b16 %v483
    %v1021 = vunpack.c.h.b16 %v483
    %v1022 = vunpack.c.l.b16 %v484
    %v1023 = vunpack.c.l.b16 %v485
    %v1024 = vunpack.c.h.b16 %v485
    %v1025 = vunpack.c.l.b16 %v486
    %v1026 = vunpack.c.h.b16 %v486
    %v1027 = vunpack.c.l.b16 %v487
    %v1028 = vunpack.c.l.b16 %v488
    %v1029 = vunpack.c.h.b16 %v488
    %v1030 = vunpack.c.l.b16 %v489
    %v1031 = vunpack.c.h.b16 %v489
    %v1032 = vunpack.c.l.b16 %v490
    %v1033 = vunpack.c.l.b16 %v491
    %v1034 = vunpack.c.h.b16 %v491
    %v1035 = vunpack.c.l.b16 %v492
    %v1036 = vunpack.c.h.b16 %v492
    %v1037 = vunpack.c.l.b16 %v493
    %v1038 = vunpack.c.l.b16 %v494
    %v1039 = vunpack.c.h.b16 %v494
    %v1040 = vunpack.c.l.b16 %v495
    %v1041 = vunpack.c.h.b16 %v495
    %v1042 = vunpack.c.l.b16 %v496
    %v1043 = vunpack.c.l.b16 %v497
    %v1044 = vunpack.c.h.b16 %v497
    %v1045 = vunpack.c.l.b16 %v498
    %v1046 = vunpack.c.h.b16 %v498
    %v1047 = vunpack.c.l.b16 %v499
    %v1048 = vunpack.c.l.b16 %v500
    %v1049 = vunpack.c.h.b16 %v500
    %v1050 = vunpack.c.l.b16 %v501
    %v1051 = vunpack.c.h.b16 %v501
    %v1052 = vunpack.c.l.b16 %v502
    %v1053 = vunpack.c.l.b16 %v503
    %v1054 = vunpack.c.h.b16 %v503
    %v1055 = vunpack.c.l.b16 %v504
    %v1056 = vunpack.c.h.b16 %v504
    %v1057 = vunpack.c.l.b16 %v505
    %v1058 = vunpack.c.l.b16 %v506
    %v1059 = vunpack.c.h.b16 %v506
    %v1060 = vunpack.c.l.b16 %v507
    %v1061 = vunpack.c.h.b16 %v507
    %v1062 = vunpack.c.l.b16 %v508
    %v1063 = vunpack.c.l.b16 %v509
    %v1064 = vunpack.c.h.b16 %v509
    %v1065 = vunpack.c.l.b16 %v510
    %v1066 = vunpack.c.h.b16 %v510
    %v1067 = vunpack.c.l.b16 %v511
    %v1068 = vunpack.c.l.b16 %v512
    %v1069 = vunpack.c.h.b16 %v512
    %v1070 = vunpack.c.l.b16 %v513
    %v1071 = vunpack.c.h.b16 %v513
    %v1072 = vunpack.c.l.b16 %v514
    %v1073 = vunpack.c.l.b16 %v515
    %v1074 = vunpack.c.h.b16 %v515
    %v1075 = vunpack.c.l.b16 %v516
    %v1076 = vunpack.c.h.b16 %v516
    %v1077 = vunpack.c.l.b16 %v517
    %v1078 = vunpack.c.l.b16 %v518
    %v1079 = vunpack.c.h.b16 %v518
    %v1080 = vunpack.c.l.b16 %v519
    %v1081 = vunpack.c.h.b16 %v519
    %v1082 = vunpack.c.l.b16 %v520
    %v1083 = vunpack.c.l.b16 %v521
    %v1084 = vunpack.c.h.b16 %v521
    %v1085 = vunpack.c.l.b16 %v522
    %v1086 = vunpack.c.h.b16 %v522
    %v1087 = vunpack.c.l.b16 %v523
    %v1088 = vunpack.c.l.b16 %v524
    %v1089 = vunpack.c.h.b16 %v524
    %v1090 = vunpack.c.l.b16 %v525
    %v1091 = vunpack.c.h.b16 %v525
    %v1092 = vunpack.c.l.b16 %v526
    %v1093 = vunpack.c.l.b16 %v527
    %v1094 = vunpack.c.h.b16 %v527
    %v1095 = vunpack.c.l.b16 %v528
    %v1096 = vunpack.c.h.b16 %v528
    %v1097 = vunpack.c.l.b16 %v529
    %v1098 = vunpack.c.l.b16 %v530
    %v1099 = vunpack.c.h.b16 %v530
    %v1100 = vunpack.c.l.b16 %v531
    %v1101 = vunpack.c.h.b16 %v531
    %v1102 = vunpack.c.l.b16 %v532
    %v1103 = vunpack.c.l.b16 %v533
    %v1104 = vunpack.c.h.b16 %v533
    %v1105 = vunpack.c.l.b16 %v534
    %v1106 = vunpack.c.h.b16 %v534
    %v1107 = vunpack.c.l.b16 %v535
    %v1108 = vunpack.c.l.b16 %v536
    %v1109 = vunpack.c.h.b16 %v536
    %v1110 = vunpack.c.l.b16 %v537
    %v1111 = vunpack.c.h.b16 %v537
    %v1112 = vunpack.c.l.b16 %v538
    %v1113 = vunpack.c.l.b16 %v539
    %v1114 = vunpack.c.h.b16 %v539
    %v1115 = vunpack.c.l.b16 %v540
    %v1116 = vunpack.c.h.b16 %v540
    %v1117 = vunpack.c.l.b16 %v541
    %v1118 = vunpack.c.l.b16 %v542
    %v1119 = vunpack.c.h.b16 %v542
    %v1120 = vunpack.c.l.b16 %v543
    %v1121 = vunpack.c.h.b16 %v543
    %v1122 = vunpack.c.l.b16 %v544
    %v1123 = vunpack.c.l.b16 %v545
    %v1124 = vunpack.c.h.b16 %v545
    %v1125 = vunpack.c.l.b16 %v546
    %v1126 = vunpack.c.h.b16 %v546
    %v1127 = vunpack.c.l.b16 %v547
    %v1128 = vunpack.c.l.b16 %v548
    %v1129 = vunpack.c.h.b16 %v548
    %v1130 = vunpack.c.l.b16 %v549
    %v1131 = vunpack.c.h.b16 %v549
    %v1132 = vunpack.c.l.b16 %v550
    %v1133 = vunpack.c.l.b16 %v551
    %v1134 = vunpack.c.h.b16 %v551
    %v1135 = vunpack.c.l.b16 %v552
    %v1136 = vunpack.c.h.b16 %v552
    %v1137 = vunpack.c.l.b16 %v553
    %v1138 = vunpack.c.l.b16 %v554
    %v1139 = vunpack.c.h.b16 %v554
    %v1140 = vunpack.c.l.b16 %v555
    %v1141 = vunpack.c.h.b16 %v555
    %v1142 = vunpack.c.l.b16 %v556
    %v1143 = vunpack.c.l.b16 %v557
    %v1144 = vunpack.c.h.b16 %v557
    %v1145 = vunpack.c.l.b16 %v558
    %v1146 = vunpack.c.h.b16 %v558
    %v1147 = vunpack.c.l.b16 %v559
    %v1148 = vunpack.c.l.b16 %v560
    %v1149 = vunpack.c.h.b16 %v560
    %v1150 = vunpack.c.l.b16 %v561
    %v1151 = vunpack.c.h.b16 %v561
    %v1152 = vunpack.c.l.b16 %v562
    %v1153 = vunpack.c.l.b16 %v563
    %v1154 = vunpack.c.h.b16 %v563
    %v1155 = vunpack.c.l.b16 %v564
    %v1156 = vunpack.c.h.b16 %v564
    %v1157 = vunpack.c.l.b16 %v565
    %v1158 = vunpack.c.l.b16 %v566
    %v1159 = vunpack.c.h.b16 %v566
    %v1160 = vunpack.c.l.b16 %v567
    %v1161 = vunpack.c.h.b16 %v567
    %v1162 = vunpack.c.l.b16 %v568
    %v1163 = vunpack.c.l.b16 %v569
    %v1164 = vunpack.c.h.b16 %v569
    %v1165 = vunpack.c.l.b16 %v570
    %v1166 = vunpack.c.h.b16 %v570
    %v1167 = vunpack.c.l.b16 %v571
    %v1168 = vunpack.c.l.b16 %v572
    %v1169 = vunpack.c.h.b16 %v572
    %v1170 = vunpack.c.l.b16 %v573
    %v1171 = vunpack.c.h.b16 %v573
    %v1172 = vunpack.c.l.b16 %v574
    %v1173 = vunpack.c.l.b16 %v575
    %v1174 = vunpack.c.h.b16 %v575
    %v1175 = vunpack.c.l.b16 %v576
    %v1176 = vunpack.c.h.b16 %v576
    %v1177 = vunpack.c.l.b16 %v577
    %v1178 = vunpack.c.l.b16 %v578
    %v1179 = vunpack.c.h.b16 %v578
    %v1180 = vunpack.c.l.b16 %v579
    %v1181 = vunpack.c.h.b16 %v579
    %v1182 = vunpack.c.l.b16 %v580
    %v1183 = vunpack.c.l.b16 %v581
    %v1184 = vunpack.c.h.b16 %v581
    %v1185 = vunpack.c.l.b16 %v582
    %v1186 = vunpack.c.h.b16 %v582
    %v1187 = vunpack.c.l.b16 %v583
    %v1188 = vunpack.c.l.b16 %v584
    %v1189 = vunpack.c.h.b16 %v584
    %v1190 = vunpack.c.l.b16 %v585
    %v1191 = vunpack.c.h.b16 %v585
    %v1192 = vunpack.c.l.b16 %v586
    %v1193 = vunpack.c.l.b16 %v587
    %v1194 = vunpack.c.h.b16 %v587
    %v1195 = vunpack.c.l.b16 %v588
    %v1196 = vunpack.c.h.b16 %v588
    %v1197 = vunpack.c.l.b16 %v589
    %v1198 = vunpack.c.l.b16 %v590
    %v1199 = vunpack.c.h.b16 %v590
    %v1200 = vunpack.c.l.b16 %v591
    %v1201 = vunpack.c.h.b16 %v591
    %v1202 = vunpack.c.l.b16 %v592
    %v1203 = vunpack.c.l.b16 %v593
    %v1204 = vunpack.c.h.b16 %v593
    %v1205 = vunpack.c.l.b16 %v594
    %v1206 = vunpack.c.h.b16 %v594
    %v1207 = vunpack.c.l.b16 %v595
    %v1208 = vunpack.c.l.b16 %v596
    %v1209 = vunpack.c.h.b16 %v596
    %v1210 = vunpack.c.l.b16 %v597
    %v1211 = vunpack.c.h.b16 %v597
    %v1212 = vunpack.c.l.b16 %v598
    %v1213 = vunpack.c.l.b16 %v599
    %v1214 = vunpack.c.h.b16 %v599
    %v1215 = vunpack.c.l.b16 %v600
    %v1216 = vunpack.c.h.b16 %v600
    %v1217 = vunpack.c.l.b16 %v601
    %v1218 = vunpack.c.l.b16 %v602
    %v1219 = vunpack.c.h.b16 %v602
    %v1220 = vunpack.c.l.b16 %v603
    %v1221 = vunpack.c.h.b16 %v603
    %v1222 = vunpack.c.l.b16 %v604
    %v1223 = vunpack.c.l.b16 %v605
    %v1224 = vunpack.c.h.b16 %v605
    %v1225 = vunpack.c.l.b16 %v606
    %v1226 = vunpack.c.h.b16 %v606
    %v1227 = vunpack.c.l.b16 %v607
    %v1228 = vunpack.c.l.b16 %v608
    %v1229 = vunpack.c.h.b16 %v608
    %v1230 = vunpack.c.l.b16 %v609
    %v1231 = vunpack.c.h.b16 %v609
    %v1232 = vunpack.c.l.b16 %v610
    %v1233 = vunpack.c.l.b16 %v611
    %v1234 = vunpack.c.h.b16 %v611
    %v1235 = vunpack.c.l.b16 %v612
    %v1236 = vunpack.c.h.b16 %v612
    %v1237 = vunpack.c.l.b16 %v613
    %v1238 = vunpack.c.l.b16 %v614
    %v1239 = vunpack.c.h.b16 %v614
    %v1240 = vunpack.c.l.b16 %v615
    %v1241 = vunpack.c.h.b16 %v615
    %v1242 = vunpack.c.l.b16 %v616
    %v1243 = vunpack.c.l.b16 %v617
    %v1244 = vunpack.c.h.b16 %v617
    %v1245 = vunpack.c.l.b16 %v618
    %v1246 = vunpack.c.h.b16 %v618
    %v1247 = vunpack.c.l.b16 %v619
    %v1248 = vunpack.c.l.b16 %v620
    %v1249 = vunpack.c.h.b16 %v620
    %v1250 = vunpack.c.l.b16 %v621
    %v1251 = vunpack.c.h.b16 %v621
    %v1252 = vunpack.c.l.b16 %v622
    %v1253 = vunpack.c.l.b16 %v623
    %v1254 = vunpack.c.h.b16 %v623
    %v1255 = vunpack.c.l.b16 %v624
    %v1256 = vunpack.c.h.b16 %v624
    %v1257 = vunpack.c.l.b16 %v625
    %v1258 = vunpack.c.l.b16 %v626
    %v1259 = vunpack.c.h.b16 %v626
    %v1260 = vunpack.c.l.b16 %v627
    %v1261 = vunpack.c.h.b16 %v627
    %v1262 = vunpack.c.l.b16 %v628
    %v1263 = vunpack.c.l.b16 %v629
    %v1264 = vunpack.c.h.b16 %v629
    %v1265 = vunpack.c.l.b16 %v630
    %v1266 = vunpack.c.h.b16 %v630
    %v1267 = vunpack.c.l.b16 %v631
    %v1268 = vunpack.c.l.b16 %v632
    %v1269 = vunpack.c.h.b16 %v632
    %v1270 = vunpack.c.l.b16 %v633
    %v1271 = vunpack.c.h.b16 %v633
    %v1272 = vunpack.c.l.b16 %v634
    %v1273 = vunpack.c.l.b16 %v635
    %v1274 = vunpack.c.h.b16 %v635
    %v1275 = vunpack.c.l.b16 %v636
    %v1276 = vunpack.c.h.b16 %v636
    %v1277 = vunpack.c.l.b16 %v637
    %v1278 = vpack.c.b16 %v883, %v878
    %v1279 = vpack.c.b16 %v884, %v879
    %v1280 = vpack.c.b16 %v885, %v880
    %v1281 = vpack.c.b16 %v886, %v881
    %v1282 = vpack.c.b16 %v887, %v882
    %v1283 = vpack.c.b16 %v893, %v888
    %v1284 = vpack.c.b16 %v894, %v889
    %v1285 = vpack.c.b16 %v895, %v890
    %v1286 = vpack.c.b16 %v896, %v891
    %v1287 = vpack.c.b16 %v897, %v892
    %v1288 = vpack.c.b16 %v903, %v898
    %v1289 = vpack.c.b16 %v904, %v899
    %v1290 = vpack.c.b16 %v905, %v900
    %v1291 = vpack.c.b16 %v906, %v901
    %v1292 = vpack.c.b16 %v907, %v902
    %v1293 = vpack.c.b16 %v913, %v908
    %v1294 = vpack.c.b16 %v914, %v909
    %v1295 = vpack.c.b16 %v915, %v910
    %v1296 = vpack.c.b16 %v916, %v911
    %v1297 = vpack.c.b16 %v917, %v912
    %v1298 = vpack.c.b16 %v923, %v918
    %v1299 = vpack.c.b16 %v924, %v919
    %v1300 = vpack.c.b16 %v925, %v920
    %v1301 = vpack.c.b16 %v926, %v921
    %v1302 = vpack.c.b16 %v927, %v922
    %v1303 = vpack.c.b16 %v933, %v928
    %v1304 = vpack.c.b16 %v934, %v929
    %v1305 = vpack.c.b16 %v935, %v930
    %v1306 = vpack.c.b16 %v936, %v931
    %v1307 = vpack.c.b16 %v937, %v932
    %v1308 = vpack.c.b16 %v943, %v938
    %v1309 = vpack.c.b16 %v944, %v939
    %v1310 = vpack.c.b16 %v945, %v940
    %v1311 = vpack.c.b16 %v946, %v941
    %v1312 = vpack.c.b16 %v947, %v942
    %v1313 = vpack.c.b16 %v953, %v948
    %v1314 = vpack.c.b16 %v954, %v949
    %v1315 = vpack.c.b16 %v955, %v950
    %v1316 = vpack.c.b16 %v956, %v951
    %v1317 = vpack.c.b16 %v957, %v952
    %v1318 = vpack.c.b16 %v963, %v958
    %v1319 = vpack.c.b16 %v964, %v959
    %v1320 = vpack.c.b16 %v965, %v960
    %v1321 = vpack.c.b16 %v966, %v961
    %v1322 = vpack.c.b16 %v967, %v962
    %v1323 = vpack.c.b16 %v973, %v968
    %v1324 = vpack.c.b16 %v974, %v969
    %v1325 = vpack.c.b16 %v975, %v970
    %v1326 = vpack.c.b16 %v976, %v971
    %v1327 = vpack.c.b16 %v977, %v972
    %v1328 = vpack.c.b16 %v983, %v978
    %v1329 = vpack.c.b16 %v984, %v979
    %v1330 = vpack.c.b16 %v985, %v980
    %v1331 = vpack.c.b16 %v986, %v981
    %v1332 = vpack.c.b16 %v987, %v982
    %v1333 = vpack.c.b16 %v993, %v988
    %v1334 = vpack.c.b16 %v994, %v989
    %v1335 = vpack.c.b16 %v995, %v990
    %v1336 = vpack.c.b16 %v996, %v991
    %v1337 = vpack.c.b16 %v997, %v992
    %v1338 = vpack.c.b16 %v1003, %v998
    %v1339 = vpack.c.b16 %v1004, %v999
    %v1340 = vpack.c.b16 %v1005, %v1000
    %v1341 = vpack.c.b16 %v1006, %v1001
    %v1342 = vpack.c.b16 %v1007, %v1002
    %v1343 = vpack.c.b16 %v1013, %v1008
    %v1344 = vpack.c.b16 %v1014, %v1009
    %v1345 = vpack.c.b16 %v1015, %v1010
    %v1346 = vpack.c.b16 %v1016, %v1011
    %v1347 = vpack.c.b16 %v1017, %v1012
    %v1348 = vpack.c.b16 %v1023, %v1018
    %v1349 = vpack.c.b16 %v1024, %v1019
    %v1350 = vpack.c.b16 %v1025, %v1020
    %v1351 = vpack.c.b16 %v1026, %v1021
    %v1352 = vpack.c.b16 %v1027, %v1022
    %v1353 = vpack.c.b16 %v1033, %v1028
    %v1354 = vpack.c.b16 %v1034, %v1029
    %v1355 = vpack.c.b16 %v1035, %v1030
    %v1356 = vpack.c.b16 %v1036, %v1031
    %v1357 = vpack.c.b16 %v1037, %v1032
    %v1358 = vpack.c.b16 %v1043, %v1038
    %v1359 = vpack.c.b16 %v1044, %v1039
    %v1360 = vpack.c.b16 %v1045, %v1040
    %v1361 = vpack.c.b16 %v1046, %v1041
    %v1362 = vpack.c.b16 %v1047, %v1042
    %v1363 = vpack.c.b16 %v1053, %v1048
    %v1364 = vpack.c.b16 %v1054, %v1049
    %v1365 = vpack.c.b16 %v1055, %v1050
    %v1366 = vpack.c.b16 %v1056, %v1051
    %v1367 = vpack.c.b16 %v1057, %v1052
    %v1368 = vpack.c.b16 %v1063, %v1058
    %v1369 = vpack.c.b16 %v1064, %v1059
    %v1370 = vpack.c.b16 %v1065, %v1060
    %v1371 = vpack.c.b16 %v1066, %v1061
    %v1372 = vpack.c.b16 %v1067, %v1062
    %v1373 = vpack.c.b16 %v1073, %v1068
    %v1374 = vpack.c.b16 %v1074, %v1069
    %v1375 = vpack.c.b16 %v1075, %v1070
    %v1376 = vpack.c.b16 %v1076, %v1071
    %v1377 = vpack.c.b16 %v1077, %v1072
    %v1378 = vpack.c.b16 %v1083, %v1078
    %v1379 = vpack.c.b16 %v1084, %v1079
    %v1380 = vpack.c.b16 %v1085, %v1080
    %v1381 = vpack.c.b16 %v1086, %v1081
    %v1382 = vpack.c.b16 %v1087, %v1082
    %v1383 = vpack.c.b16 %v1093, %v1088
    %v1384 = vpack.c.b16 %v1094, %v1089
    %v1385 = vpack.c.b16 %v1095, %v1090
    %v1386 = vpack.c.b16 %v1096, %v1091
    %v1387 = vpack.c.b16 %v1097, %v1092
    %v1388 = vpack.c.b16 %v1103, %v1098
    %v1389 = vpack.c.b16 %v1104, %v1099
    %v1390 = vpack.c.b16 %v1105, %v1100
    %v1391 = vpack.c.b16 %v1106, %v1101
    %v1392 = vpack.c.b16 %v1107, %v1102
    %v1393 = vpack.c.b16 %v1113, %v1108
    %v1394 = vpack.c.b16 %v1114, %v1109
    %v1395 = vpack.c.b16 %v1115, %v1110
    %v1396 = vpack.c.b16 %v1116, %v1111
    %v1397 = vpack.c.b16 %v1117, %v1112
    %v1398 = vpack.c.b16 %v1123, %v1118
    %v1399 = vpack.c.b16 %v1124, %v1119
    %v1400 = vpack.c.b16 %v1125, %v1120
    %v1401 = vpack.c.b16 %v1126, %v1121
    %v1402 = vpack.c.b16 %v1127, %v1122
    %v1403 = vpack.c.b16 %v1133, %v1128
    %v1404 = vpack.c.b16 %v1134, %v1129
    %v1405 = vpack.c.b16 %v1135, %v1130
    %v1406 = vpack.c.b16 %v1136, %v1131
    %v1407 = vpack.c.b16 %v1137, %v1132
    %v1408 = vpack.c.b16 %v1143, %v1138
    %v1409 = vpack.c.b16 %v1144, %v1139
    %v1410 = vpack.c.b16 %v1145, %v1140
    %v1411 = vpack.c.b16 %v1146, %v1141
    %v1412 = vpack.c.b16 %v1147, %v1142
    %v1413 = vpack.c.b16 %v1153, %v1148
    %v1414 = vpack.c.b16 %v1154, %v1149
    %v1415 = vpack.c.b16 %v1155, %v1150
    %v1416 = vpack.c.b16 %v1156, %v1151
    %v1417 = vpack.c.b16 %v1157, %v1152
    %v1418 = vpack.c.b16 %v1163, %v1158
    %v1419 = vpack.c.b16 %v1164, %v1159
    %v1420 = vpack.c.b16 %v1165, %v1160
    %v1421 = vpack.c.b16 %v1166, %v1161
    %v1422 = vpack.c.b16 %v1167, %v1162
    %v1423 = vpack.c.b16 %v1173, %v1168
    %v1424 = vpack.c.b16 %v1174, %v1169
    %v1425 = vpack.c.b16 %v1175, %v1170
    %v1426 = vpack.c.b16 %v1176, %v1171
    %v1427 = vpack.c.b16 %v1177, %v1172
    %v1428 = vpack.c.b16 %v1183, %v1178
    %v1429 = vpack.c.b16 %v1184, %v1179
    %v1430 = vpack.c.b16 %v1185, %v1180
    %v1431 = vpack.c.b16 %v1186, %v1181
    %v1432 = vpack.c.b16 %v1187, %v1182
    %v1433 = vpack.c.b16 %v1193, %v1188
    %v1434 = vpack.c.b16 %v1194, %v1189
    %v1435 = vpack.c.b16 %v1195, %v1190
    %v1436 = vpack.c.b16 %v1196, %v1191
    %v1437 = vpack.c.b16 %v1197, %v1192
    %v1438 = vpack.c.b16 %v1203, %v1198
    %v1439 = vpack.c.b16 %v1204, %v1199
    %v1440 = vpack.c.b16 %v1205, %v1200
    %v1441 = vpack.c.b16 %v1206, %v1201
    %v1442 = vpack.c.b16 %v1207, %v1202
    %v1443 = vpack.c.b16 %v1213, %v1208
    %v1444 = vpack.c.b16 %v1214, %v1209
    %v1445 = vpack.c.b16 %v1215, %v1210
    %v1446 = vpack.c.b16 %v1216, %v1211
    %v1447 = vpack.c.b16 %v1217, %v1212
    %v1448 = vpack.c.b16 %v1223, %v1218
    %v1449 = vpack.c.b16 %v1224, %v1219
    %v1450 = vpack.c.b16 %v1225, %v1220
    %v1451 = vpack.c.b16 %v1226, %v1221
    %v1452 = vpack.c.b16 %v1227, %v1222
    %v1453 = vpack.c.b16 %v1233, %v1228
    %v1454 = vpack.c.b16 %v1234, %v1229
    %v1455 = vpack.c.b16 %v1235, %v1230
    %v1456 = vpack.c.b16 %v1236, %v1231
    %v1457 = vpack.c.b16 %v1237, %v1232
    %v1458 = vpack.c.b16 %v1243, %v1238
    %v1459 = vpack.c.b16 %v1244, %v1239
    %v1460 = vpack.c.b16 %v1245, %v1240
    %v1461 = vpack.c.b16 %v1246, %v1241
    %v1462 = vpack.c.b16 %v1247, %v1242
    %v1463 = vpack.c.b16 %v1253, %v1248
    %v1464 = vpack.c.b16 %v1254, %v1249
    %v1465 = vpack.c.b16 %v1255, %v1250
    %v1466 = vpack.c.b16 %v1256, %v1251
    %v1467 = vpack.c.b16 %v1257, %v1252
    %v1468 = vpack.c.b16 %v1263, %v1258
    %v1469 = vpack.c.b16 %v1264, %v1259
    %v1470 = vpack.c.b16 %v1265, %v1260
    %v1471 = vpack.c.b16 %v1266, %v1261
    %v1472 = vpack.c.b16 %v1267, %v1262
    %v1473 = vpack.c.b16 %v1273, %v1268
    %v1474 = vpack.c.b16 %v1274, %v1269
    %v1475 = vpack.c.b16 %v1275, %v1270
    %v1476 = vpack.c.b16 %v1276, %v1271
    %v1477 = vpack.c.b16 %v1277, %v1272
    %1678 = vmatprep.subr.bf16.mxu0 %v1314
    %1679 = vmatpush1.bf16.msra.mxu0 %v1313
    %1680 = vmatprep.subr.bf16.mxu0 %v1309
    %1681 = vmatpush1.bf16.msra.mxu0 %v1308
    %1682 = vmatprep.subr.bf16.mxu0 %v1304
    %1683 = vmatpush1.bf16.msra.mxu0 %v1303
    %1684 = vmatprep.subr.bf16.mxu0 %v1299
    %1685 = vmatpush1.bf16.msra.mxu0 %v1298
    %1686 = vmatprep.subr.bf16.mxu0 %v1294
    %1687 = vmatpush1.bf16.msra.mxu0 %v1293
    %1688 = vmatprep.subr.bf16.mxu0 %v1289
    %1689 = vmatpush1.bf16.msra.mxu0 %v1288
    %1690 = vmatprep.subr.bf16.mxu0 %v1284
    %1691 = vmatpush1.bf16.msra.mxu0 %v1283
    %1692 = vmatprep.subr.bf16.mxu0 %v1279
    %1693 = vmatpush1.bf16.msra.mxu0 %v1278
    %1694 = vmatprep.subr.bf16.mxu0 %v1354
    %1695 = vmatpush2.bf16.msra.mxu0 %v1353
    %1696 = vmatprep.subr.bf16.mxu0 %v1349
    %1697 = vmatpush2.bf16.msra.mxu0 %v1348
    %1698 = vmatprep.subr.bf16.mxu0 %v1344
    %1699 = vmatpush2.bf16.msra.mxu0 %v1343
    %1700 = vmatprep.subr.bf16.mxu0 %v1339
    %1701 = vmatpush2.bf16.msra.mxu0 %v1338
    %1702 = vmatprep.subr.bf16.mxu0 %v1334
    %1703 = vmatpush2.bf16.msra.mxu0 %v1333
    %1704 = vmatprep.subr.bf16.mxu0 %v1329
    %1705 = vmatpush2.bf16.msra.mxu0 %v1328
    %1706 = vmatprep.subr.bf16.mxu0 %v1324
    %1707 = vmatpush2.bf16.msra.mxu0 %v1323
    %1708 = vmatprep.subr.bf16.mxu0 %v1319
    %1709 = vmatpush2.bf16.msra.mxu0 %v1318
    %1710 = vmatprep.mubr.bf16.mxu0 %v394
    %1711 = vmatmul.mubr.bf16.gmra.mxu0 %v393
    %v1712 = vpop.f32.mrf.mxu0
    %v1713 = vadd.f32 0.0, %v1712
    %v1714 = vpop.f32.mrf.mxu0
    %v1715 = vadd.f32 0.0, %v1714
    %v1716 = vpop.f32.mrf.mxu0
    %v1717 = vpop.f32.mrf.mxu0
    %1718 = vdwg.mxu0
    %1719 = vmatprep.subr.bf16.mxu0 %v1394
    %1720 = vmatpush1.bf16.msra.mxu0 %v1393
    %1721 = vmatprep.subr.bf16.mxu0 %v1389
    %1722 = vmatpush1.bf16.msra.mxu0 %v1388
    %1723 = vmatprep.subr.bf16.mxu0 %v1384
    %1724 = vmatpush1.bf16.msra.mxu0 %v1383
    %1725 = vmatprep.subr.bf16.mxu0 %v1379
    %1726 = vmatpush1.bf16.msra.mxu0 %v1378
    %1727 = vmatprep.subr.bf16.mxu0 %v1374
    %1728 = vmatpush1.bf16.msra.mxu0 %v1373
    %1729 = vmatprep.subr.bf16.mxu0 %v1369
    %1730 = vmatpush1.bf16.msra.mxu0 %v1368
    %1731 = vmatprep.subr.bf16.mxu0 %v1364
    %1732 = vmatpush1.bf16.msra.mxu0 %v1363
    %1733 = vmatprep.subr.bf16.mxu0 %v1359
    %1734 = vmatpush1.bf16.msra.mxu0 %v1358
    %1735 = vmatprep.subr.bf16.mxu0 %v1434
    %1736 = vmatpush2.bf16.msra.mxu0 %v1433
    %1737 = vmatprep.subr.bf16.mxu0 %v1429
    %1738 = vmatpush2.bf16.msra.mxu0 %v1428
    %1739 = vmatprep.subr.bf16.mxu0 %v1424
    %1740 = vmatpush2.bf16.msra.mxu0 %v1423
    %1741 = vmatprep.subr.bf16.mxu0 %v1419
    %1742 = vmatpush2.bf16.msra.mxu0 %v1418
    %1743 = vmatprep.subr.bf16.mxu0 %v1414
    %1744 = vmatpush2.bf16.msra.mxu0 %v1413
    %1745 = vmatprep.subr.bf16.mxu0 %v1409
    %1746 = vmatpush2.bf16.msra.mxu0 %v1408
    %1747 = vmatprep.subr.bf16.mxu0 %v1404
    %1748 = vmatpush2.bf16.msra.mxu0 %v1403
    %1749 = vmatprep.subr.bf16.mxu0 %v1399
    %1750 = vmatpush2.bf16.msra.mxu0 %v1398
    %1751 = vmatprep.mubr.bf16.mxu0 %v396
    %1752 = vmatmul.mubr.bf16.gmra.mxu0 %v395
    %v1753 = vpop.f32.mrf.mxu0
    %v1754 = vadd.f32 %v1713, %v1753
    %v1755 = vpop.f32.mrf.mxu0
    %v1756 = vadd.f32 %v1715, %v1755
    %v1757 = vpop.f32.mrf.mxu0
    %v1758 = vpop.f32.mrf.mxu0
    %1759 = vdwg.mxu0
    %1760 = vmatprep.subr.bf16.mxu0 %v1474
    %1761 = vmatpush1.bf16.msra.mxu0 %v1473
    %1762 = vmatprep.subr.bf16.mxu0 %v1469
    %1763 = vmatpush1.bf16.msra.mxu0 %v1468
    %1764 = vmatprep.subr.bf16.mxu0 %v1464
    %1765 = vmatpush1.bf16.msra.mxu0 %v1463
    %1766 = vmatprep.subr.bf16.mxu0 %v1459
    %1767 = vmatpush1.bf16.msra.mxu0 %v1458
    %1768 = vmatprep.subr.bf16.mxu0 %v1454
    %1769 = vmatpush1.bf16.msra.mxu0 %v1453
    %1770 = vmatprep.subr.bf16.mxu0 %v1449
    %1771 = vmatpush1.bf16.msra.mxu0 %v1448
    %1772 = vmatprep.subr.bf16.mxu0 %v1444
    %1773 = vmatpush1.bf16.msra.mxu0 %v1443
    %1774 = vmatprep.subr.bf16.mxu0 %v1439
    %1775 = vmatpush1.bf16.msra.mxu0 %v1438
    %1776 = vmatprep.subr.bf16.mxu0 0
    %1777 = vmatpush2.bf16.msra.mxu0 0
    %1778 = vmatprep.subr.bf16.mxu0 0
    %1779 = vmatpush2.bf16.msra.mxu0 0
    %1780 = vmatprep.subr.bf16.mxu0 0
    %1781 = vmatpush2.bf16.msra.mxu0 0
    %1782 = vmatprep.subr.bf16.mxu0 0
    %1783 = vmatpush2.bf16.msra.mxu0 0
    %1784 = vmatprep.subr.bf16.mxu0 0
    %1785 = vmatpush2.bf16.msra.mxu0 0
    %1786 = vmatprep.subr.bf16.mxu0 0
    %1787 = vmatpush2.bf16.msra.mxu0 0
    %1788 = vmatprep.subr.bf16.mxu0 0
    %1789 = vmatpush2.bf16.msra.mxu0 0
    %1790 = vmatprep.subr.bf16.mxu0 0
    %1791 = vmatpush2.bf16.msra.mxu0 0
    %1792 = vmatprep.mubr.bf16.mxu0 0
    %1793 = vmatmul.mubr.bf16.gmra.mxu0 %v397
    %v1794 = vpop.f32.mrf.mxu0
    %v1795 = vadd.f32 %v1754, %v1794
    %v1796 = vpop.f32.mrf.mxu0
    %v1797 = vadd.f32 %v1756, %v1796
    %v1798 = vpop.f32.mrf.mxu0
    %v1799 = vpop.f32.mrf.mxu0
    %1800 = vdwg.mxu0
    %1801 = vmatprep.subr.bf16.mxu0 %v1316
    %1802 = vmatpush1.bf16.msra.mxu0 %v1315
    %1803 = vmatprep.subr.bf16.mxu0 %v1311
    %1804 = vmatpush1.bf16.msra.mxu0 %v1310
    %1805 = vmatprep.subr.bf16.mxu0 %v1306
    %1806 = vmatpush1.bf16.msra.mxu0 %v1305
    %1807 = vmatprep.subr.bf16.mxu0 %v1301
    %1808 = vmatpush1.bf16.msra.mxu0 %v1300
    %1809 = vmatprep.subr.bf16.mxu0 %v1296
    %1810 = vmatpush1.bf16.msra.mxu0 %v1295
    %1811 = vmatprep.subr.bf16.mxu0 %v1291
    %1812 = vmatpush1.bf16.msra.mxu0 %v1290
    %1813 = vmatprep.subr.bf16.mxu0 %v1286
    %1814 = vmatpush1.bf16.msra.mxu0 %v1285
    %1815 = vmatprep.subr.bf16.mxu0 %v1281
    %1816 = vmatpush1.bf16.msra.mxu0 %v1280
    %1817 = vmatprep.subr.bf16.mxu0 %v1356
    %1818 = vmatpush2.bf16.msra.mxu0 %v1355
    %1819 = vmatprep.subr.bf16.mxu0 %v1351
    %1820 = vmatpush2.bf16.msra.mxu0 %v1350
    %1821 = vmatprep.subr.bf16.mxu0 %v1346
    %1822 = vmatpush2.bf16.msra.mxu0 %v1345
    %1823 = vmatprep.subr.bf16.mxu0 %v1341
    %1824 = vmatpush2.bf16.msra.mxu0 %v1340
    %1825 = vmatprep.subr.bf16.mxu0 %v1336
    %1826 = vmatpush2.bf16.msra.mxu0 %v1335
    %1827 = vmatprep.subr.bf16.mxu0 %v1331
    %1828 = vmatpush2.bf16.msra.mxu0 %v1330
    %1829 = vmatprep.subr.bf16.mxu0 %v1326
    %1830 = vmatpush2.bf16.msra.mxu0 %v1325
    %1831 = vmatprep.subr.bf16.mxu0 %v1321
    %1832 = vmatpush2.bf16.msra.mxu0 %v1320
    %1833 = vmatprep.mubr.bf16.mxu0 %v394
    %1834 = vmatmul.mubr.bf16.gmra.mxu0 %v393
    %v1835 = vpop.f32.mrf.mxu0
    %v1836 = vadd.f32 0.0, %v1835
    %v1837 = vpop.f32.mrf.mxu0
    %v1838 = vadd.f32 0.0, %v1837
    %v1839 = vpop.f32.mrf.mxu0
    %v1840 = vpop.f32.mrf.mxu0
    %1841 = vdwg.mxu0
    %1842 = vmatprep.subr.bf16.mxu0 %v1396
    %1843 = vmatpush1.bf16.msra.mxu0 %v1395
    %1844 = vmatprep.subr.bf16.mxu0 %v1391
    %1845 = vmatpush1.bf16.msra.mxu0 %v1390
    %1846 = vmatprep.subr.bf16.mxu0 %v1386
    %1847 = vmatpush1.bf16.msra.mxu0 %v1385
    %1848 = vmatprep.subr.bf16.mxu0 %v1381
    %1849 = vmatpush1.bf16.msra.mxu0 %v1380
    %1850 = vmatprep.subr.bf16.mxu0 %v1376
    %1851 = vmatpush1.bf16.msra.mxu0 %v1375
    %1852 = vmatprep.subr.bf16.mxu0 %v1371
    %1853 = vmatpush1.bf16.msra.mxu0 %v1370
    %1854 = vmatprep.subr.bf16.mxu0 %v1366
    %1855 = vmatpush1.bf16.msra.mxu0 %v1365
    %1856 = vmatprep.subr.bf16.mxu0 %v1361
    %1857 = vmatpush1.bf16.msra.mxu0 %v1360
    %1858 = vmatprep.subr.bf16.mxu0 %v1436
    %1859 = vmatpush2.bf16.msra.mxu0 %v1435
    %1860 = vmatprep.subr.bf16.mxu0 %v1431
    %1861 = vmatpush2.bf16.msra.mxu0 %v1430
    %1862 = vmatprep.subr.bf16.mxu0 %v1426
    %1863 = vmatpush2.bf16.msra.mxu0 %v1425
    %1864 = vmatprep.subr.bf16.mxu0 %v1421
    %1865 = vmatpush2.bf16.msra.mxu0 %v1420
    %1866 = vmatprep.subr.bf16.mxu0 %v1416
    %1867 = vmatpush2.bf16.msra.mxu0 %v1415
    %1868 = vmatprep.subr.bf16.mxu0 %v1411
    %1869 = vmatpush2.bf16.msra.mxu0 %v1410
    %1870 = vmatprep.subr.bf16.mxu0 %v1406
    %1871 = vmatpush2.bf16.msra.mxu0 %v1405
    %1872 = vmatprep.subr.bf16.mxu0 %v1401
    %1873 = vmatpush2.bf16.msra.mxu0 %v1400
    %1874 = vmatprep.mubr.bf16.mxu0 %v396
    %1875 = vmatmul.mubr.bf16.gmra.mxu0 %v395
    %v1876 = vpop.f32.mrf.mxu0
    %v1877 = vadd.f32 %v1836, %v1876
    %v1878 = vpop.f32.mrf.mxu0
    %v1879 = vadd.f32 %v1838, %v1878
    %v1880 = vpop.f32.mrf.mxu0
    %v1881 = vpop.f32.mrf.mxu0
    %1882 = vdwg.mxu0
    %1883 = vmatprep.subr.bf16.mxu0 %v1476
    %1884 = vmatpush1.bf16.msra.mxu0 %v1475
    %1885 = vmatprep.subr.bf16.mxu0 %v1471
    %1886 = vmatpush1.bf16.msra.mxu0 %v1470
    %1887 = vmatprep.subr.bf16.mxu0 %v1466
    %1888 = vmatpush1.bf16.msra.mxu0 %v1465
    %1889 = vmatprep.subr.bf16.mxu0 %v1461
    %1890 = vmatpush1.bf16.msra.mxu0 %v1460
    %1891 = vmatprep.subr.bf16.mxu0 %v1456
    %1892 = vmatpush1.bf16.msra.mxu0 %v1455
    %1893 = vmatprep.subr.bf16.mxu0 %v1451
    %1894 = vmatpush1.bf16.msra.mxu0 %v1450
    %1895 = vmatprep.subr.bf16.mxu0 %v1446
    %1896 = vmatpush1.bf16.msra.mxu0 %v1445
    %1897 = vmatprep.subr.bf16.mxu0 %v1441
    %1898 = vmatpush1.bf16.msra.mxu0 %v1440
    %1899 = vmatprep.subr.bf16.mxu0 0
    %1900 = vmatpush2.bf16.msra.mxu0 0
    %1901 = vmatprep.subr.bf16.mxu0 0
    %1902 = vmatpush2.bf16.msra.mxu0 0
    %1903 = vmatprep.subr.bf16.mxu0 0
    %1904 = vmatpush2.bf16.msra.mxu0 0
    %1905 = vmatprep.subr.bf16.mxu0 0
    %1906 = vmatpush2.bf16.msra.mxu0 0
    %1907 = vmatprep.subr.bf16.mxu0 0
    %1908 = vmatpush2.bf16.msra.mxu0 0
    %1909 = vmatprep.subr.bf16.mxu0 0
    %1910 = vmatpush2.bf16.msra.mxu0 0
    %1911 = vmatprep.subr.bf16.mxu0 0
    %1912 = vmatpush2.bf16.msra.mxu0 0
    %1913 = vmatprep.subr.bf16.mxu0 0
    %1914 = vmatpush2.bf16.msra.mxu0 0
    %1915 = vmatprep.mubr.bf16.mxu0 0
    %1916 = vmatmul.mubr.bf16.gmra.mxu0 %v397
    %v1917 = vpop.f32.mrf.mxu0
    %v1918 = vadd.f32 %v1877, %v1917
    %v1919 = vpop.f32.mrf.mxu0
    %v1920 = vadd.f32 %v1879, %v1919
    %v1921 = vpop.f32.mrf.mxu0
    %v1922 = vpop.f32.mrf.mxu0
    %1923 = vdwg.mxu0
    %1924 = vmatprep.subr.bf16.mxu0 0
    %1925 = vmatpush1.bf16.msra.mxu0 %v1317
    %1926 = vmatprep.subr.bf16.mxu0 0
    %1927 = vmatpush1.bf16.msra.mxu0 %v1312
    %1928 = vmatprep.subr.bf16.mxu0 0
    %1929 = vmatpush1.bf16.msra.mxu0 %v1307
    %1930 = vmatprep.subr.bf16.mxu0 0
    %1931 = vmatpush1.bf16.msra.mxu0 %v1302
    %1932 = vmatprep.subr.bf16.mxu0 0
    %1933 = vmatpush1.bf16.msra.mxu0 %v1297
    %1934 = vmatprep.subr.bf16.mxu0 0
    %1935 = vmatpush1.bf16.msra.mxu0 %v1292
    %1936 = vmatprep.subr.bf16.mxu0 0
    %1937 = vmatpush1.bf16.msra.mxu0 %v1287
    %1938 = vmatprep.subr.bf16.mxu0 0
    %1939 = vmatpush1.bf16.msra.mxu0 %v1282
    %1940 = vmatprep.subr.bf16.mxu0 0
    %1941 = vmatpush2.bf16.msra.mxu0 %v1357
    %1942 = vmatprep.subr.bf16.mxu0 0
    %1943 = vmatpush2.bf16.msra.mxu0 %v1352
    %1944 = vmatprep.subr.bf16.mxu0 0
    %1945 = vmatpush2.bf16.msra.mxu0 %v1347
    %1946 = vmatprep.subr.bf16.mxu0 0
    %1947 = vmatpush2.bf16.msra.mxu0 %v1342
    %1948 = vmatprep.subr.bf16.mxu0 0
    %1949 = vmatpush2.bf16.msra.mxu0 %v1337
    %1950 = vmatprep.subr.bf16.mxu0 0
    %1951 = vmatpush2.bf16.msra.mxu0 %v1332
    %1952 = vmatprep.subr.bf16.mxu0 0
    %1953 = vmatpush2.bf16.msra.mxu0 %v1327
    %1954 = vmatprep.subr.bf16.mxu0 0
    %1955 = vmatpush2.bf16.msra.mxu0 %v1322
    %1956 = vmatprep.mubr.bf16.mxu0 %v394
    %1957 = vmatmul.mubr.bf16.gmra.mxu0 %v393
    %v1958 = vpop.f32.mrf.mxu0
    %v1959 = vadd.f32 0.0, %v1958
    %v1960 = vpop.f32.mrf.mxu0
    %v1961 = vpop.f32.mrf.mxu0
    %v1962 = vpop.f32.mrf.mxu0
    %1963 = vdwg.mxu0
    %1964 = vmatprep.subr.bf16.mxu0 0
    %1965 = vmatpush1.bf16.msra.mxu0 %v1397
    %1966 = vmatprep.subr.bf16.mxu0 0
    %1967 = vmatpush1.bf16.msra.mxu0 %v1392
    %1968 = vmatprep.subr.bf16.mxu0 0
    %1969 = vmatpush1.bf16.msra.mxu0 %v1387
    %1970 = vmatprep.subr.bf16.mxu0 0
    %1971 = vmatpush1.bf16.msra.mxu0 %v1382
    %1972 = vmatprep.subr.bf16.mxu0 0
    %1973 = vmatpush1.bf16.msra.mxu0 %v1377
    %1974 = vmatprep.subr.bf16.mxu0 0
    %1975 = vmatpush1.bf16.msra.mxu0 %v1372
    %1976 = vmatprep.subr.bf16.mxu0 0
    %1977 = vmatpush1.bf16.msra.mxu0 %v1367
    %1978 = vmatprep.subr.bf16.mxu0 0
    %1979 = vmatpush1.bf16.msra.mxu0 %v1362
    %1980 = vmatprep.subr.bf16.mxu0 0
    %1981 = vmatpush2.bf16.msra.mxu0 %v1437
    %1982 = vmatprep.subr.bf16.mxu0 0
    %1983 = vmatpush2.bf16.msra.mxu0 %v1432
    %1984 = vmatprep.subr.bf16.mxu0 0
    %1985 = vmatpush2.bf16.msra.mxu0 %v1427
    %1986 = vmatprep.subr.bf16.mxu0 0
    %1987 = vmatpush2.bf16.msra.mxu0 %v1422
    %1988 = vmatprep.subr.bf16.mxu0 0
    %1989 = vmatpush2.bf16.msra.mxu0 %v1417
    %1990 = vmatprep.subr.bf16.mxu0 0
    %1991 = vmatpush2.bf16.msra.mxu0 %v1412
    %1992 = vmatprep.subr.bf16.mxu0 0
    %1993 = vmatpush2.bf16.msra.mxu0 %v1407
    %1994 = vmatprep.subr.bf16.mxu0 0
    %1995 = vmatpush2.bf16.msra.mxu0 %v1402
    %1996 = vmatprep.mubr.bf16.mxu0 %v396
    %1997 = vmatmul.mubr.bf16.gmra.mxu0 %v395
    %v1998 = vpop.f32.mrf.mxu0
    %v1999 = vadd.f32 %v1959, %v1998
    %v2000 = vpop.f32.mrf.mxu0
    %v2001 = vpop.f32.mrf.mxu0
    %v2002 = vpop.f32.mrf.mxu0
    %2003 = vdwg.mxu0
    %2004 = vmatprep.subr.bf16.mxu0 0
    %2005 = vmatpush1.bf16.msra.mxu0 %v1477
    %2006 = vmatprep.subr.bf16.mxu0 0
    %2007 = vmatpush1.bf16.msra.mxu0 %v1472
    %2008 = vmatprep.subr.bf16.mxu0 0
    %2009 = vmatpush1.bf16.msra.mxu0 %v1467
    %2010 = vmatprep.subr.bf16.mxu0 0
    %2011 = vmatpush1.bf16.msra.mxu0 %v1462
    %2012 = vmatprep.subr.bf16.mxu0 0
    %2013 = vmatpush1.bf16.msra.mxu0 %v1457
    %2014 = vmatprep.subr.bf16.mxu0 0
    %2015 = vmatpush1.bf16.msra.mxu0 %v1452
    %2016 = vmatprep.subr.bf16.mxu0 0
    %2017 = vmatpush1.bf16.msra.mxu0 %v1447
    %2018 = vmatprep.subr.bf16.mxu0 0
    %2019 = vmatpush1.bf16.msra.mxu0 %v1442
    %2020 = vmatprep.subr.bf16.mxu0 0
    %2021 = vmatpush2.bf16.msra.mxu0 0
    %2022 = vmatprep.subr.bf16.mxu0 0
    %2023 = vmatpush2.bf16.msra.mxu0 0
    %2024 = vmatprep.subr.bf16.mxu0 0
    %2025 = vmatpush2.bf16.msra.mxu0 0
    %2026 = vmatprep.subr.bf16.mxu0 0
    %2027 = vmatpush2.bf16.msra.mxu0 0
    %2028 = vmatprep.subr.bf16.mxu0 0
    %2029 = vmatpush2.bf16.msra.mxu0 0
    %2030 = vmatprep.subr.bf16.mxu0 0
    %2031 = vmatpush2.bf16.msra.mxu0 0
    %2032 = vmatprep.subr.bf16.mxu0 0
    %2033 = vmatpush2.bf16.msra.mxu0 0
    %2034 = vmatprep.subr.bf16.mxu0 0
    %2035 = vmatpush2.bf16.msra.mxu0 0
    %2036 = vmatprep.mubr.bf16.mxu0 0
    %2037 = vmatmul.mubr.bf16.gmra.mxu0 %v397
    %v2038 = vpop.f32.mrf.mxu0
    %v2039 = vadd.f32 %v1999, %v2038
    %v2040 = vpop.f32.mrf.mxu0
    %v2041 = vpop.f32.mrf.mxu0
    %v2042 = vpop.f32.mrf.mxu0
    %2043 = vdwg.mxu0
    %v2044 = vpack.c.bf16 %v1795, %v1795
    %v2045 = vpack.c.bf16 %v1797, %v1797
    %v2046 = vpack.c.bf16 %v1918, %v1918
    %v2047 = vpack.c.bf16 %v1920, %v1920
    %v2048 = vpack.c.bf16 %v2039, %v2039
    %v2049 = vld [vmem:[%s4] sm:$0x1f]
    %v2051 = vlaneseq
    %v2052 = vshrl.u32 %v2051, 7
    %v2053 = vsub.s32 0, %v2052
    %v2054 = vrot.slane %v2049, %v2053
    %v2055 = vlaneseq
    %v2056 = vshrl.u32 %v2055, 7
    %v2057 = vsub.s32 1, %v2056
    %v2058 = vrot.slane %v2049, %v2057
    %v2059 = vlaneseq
    %v2060 = vshrl.u32 %v2059, 7
    %v2061 = vsub.s32 2, %v2060
    %v2062 = vrot.slane %v2049, %v2061
    %v2063 = vlaneseq
    %v2064 = vshrl.u32 %v2063, 7
    %v2065 = vsub.s32 3, %v2064
    %v2066 = vrot.slane %v2049, %v2065
    %v2067 = vlaneseq
    %v2068 = vshrl.u32 %v2067, 7
    %v2069 = vsub.s32 4, %v2068
    %v2070 = vrot.slane %v2049, %v2069
    %v2076 = vpack.c.bf16 %v2054, %v2054
    %v2077 = vpack.c.bf16 %v2058, %v2058
    %v2078 = vpack.c.bf16 %v2062, %v2062
    %v2079 = vpack.c.bf16 %v2066, %v2066
    %v2080 = vpack.c.bf16 %v2070, %v2070
    %v2082 = vpack.i.b16 %v2076, %v2076
    %v2084 = vlaneseq
    %v2085 = vshrl.u32 %v2084, 7
    %v2086 = vsub.s32 0, %v2085
    %v2087 = vrot.slane %v2082, %v2086
    %v2089 = vpack.i.b16 %v2077, %v2077
    %v2091 = vlaneseq
    %v2092 = vshrl.u32 %v2091, 7
    %v2093 = vsub.s32 0, %v2092
    %v2094 = vrot.slane %v2089, %v2093
    %v2096 = vpack.i.b16 %v2078, %v2078
    %v2098 = vlaneseq
    %v2099 = vshrl.u32 %v2098, 7
    %v2100 = vsub.s32 0, %v2099
    %v2101 = vrot.slane %v2096, %v2100
    %v2103 = vpack.i.b16 %v2079, %v2079
    %v2105 = vlaneseq
    %v2106 = vshrl.u32 %v2105, 7
    %v2107 = vsub.s32 0, %v2106
    %v2108 = vrot.slane %v2103, %v2107
    %v2110 = vpack.i.b16 %v2080, %v2080
    %v2112 = vlaneseq
    %v2113 = vshrl.u32 %v2112, 7
    %v2114 = vsub.s32 0, %v2113
    %v2115 = vrot.slane %v2110, %v2114
    %v2116 = vadd.bf16 %v2044, %v2087
    %v2117 = vadd.bf16 %v2045, %v2094
    %v2118 = vadd.bf16 %v2046, %v2101
    %v2119 = vadd.bf16 %v2047, %v2108
    %v2120 = vadd.bf16 %v2048, %v2115
    %v2121 = vmax.bf16 %v2116, 0
    %v2122 = vmax.bf16 %v2117, 0
    %v2123 = vmax.bf16 %v2118, 0
    %v2124 = vmax.bf16 %v2119, 0
    %v2125 = vmax.bf16 %v2120, 0
    %v2126 = vld [vmem:[#allocation10] sm:$0xf]
    %v2127 = vld [vmem:[#allocation10 + $0x4] sm:$0xf]
    %v2128 = vld [vmem:[#allocation10 + $0x8] sm:$0xf]
    %v2129 = vld [vmem:[#allocation10 + $0xc] sm:$0xf]
    %v2130 = vld [vmem:[#allocation10 + $0x10] sm:$0xf]
    %v2131 = vld [vmem:[#allocation10 + $0x14] sm:$0xf]
    %v2132 = vld [vmem:[#allocation10 + $0x18] sm:$0xf]
    %v2133 = vld [vmem:[#allocation10 + $0x1c] sm:$0xf]
    %v2134 = vld [vmem:[#allocation10 + $0x20] sm:$0xf]
    %v2135 = vld [vmem:[#allocation10 + $0x24] sm:$0xf]
    %v2136 = vld [vmem:[#allocation10 + $0x28] sm:$0xf]
    %v2137 = vld [vmem:[#allocation10 + $0x2c] sm:$0xf]
    %v2138 = vld [vmem:[#allocation10 + $0x30] sm:$0xf]
    %v2139 = vld [vmem:[#allocation10 + $0x34] sm:$0xf]
    %v2140 = vld [vmem:[#allocation10 + $0x38] sm:$0xf]
    %v2141 = vld [vmem:[#allocation10 + $0x3c] sm:$0xf]
    %v2142 = vld [vmem:[#allocation10 + $0x40] sm:$0xf]
    %v2143 = vld [vmem:[#allocation10 + $0x44] sm:$0xf]
    %v2144 = vld [vmem:[#allocation10 + $0x48] sm:$0xf]
    %v2145 = vld [vmem:[#allocation10 + $0x4c] sm:$0xf]
    %v2146 = vld [vmem:[#allocation10 + $0x50] sm:$0xf]
    %v2147 = vld [vmem:[#allocation10 + $0x54] sm:$0xf]
    %v2148 = vld [vmem:[#allocation10 + $0x58] sm:$0xf]
    %v2149 = vld [vmem:[#allocation10 + $0x5c] sm:$0xf]
    %v2150 = vld [vmem:[#allocation10 + $0x60] sm:$0xf]
    %v2151 = vld [vmem:[#allocation10 + $0x64] sm:$0xf]
    %v2152 = vld [vmem:[#allocation10 + $0x68] sm:$0xf]
    %v2153 = vld [vmem:[#allocation10 + $0x6c] sm:$0xf]
    %v2154 = vld [vmem:[#allocation10 + $0x70] sm:$0xf]
    %v2155 = vld [vmem:[#allocation10 + $0x74] sm:$0xf]
    %v2156 = vld [vmem:[#allocation10 + $0x78] sm:$0xf]
    %v2157 = vld [vmem:[#allocation10 + $0x7c] sm:$0xf]
    %v2158 = vld [vmem:[#allocation10 + $0x80] sm:$0xf]
    %v2159 = vld [vmem:[#allocation10 + $0x84] sm:$0xf]
    %v2160 = vld [vmem:[#allocation10 + $0x88] sm:$0xf]
    %v2161 = vld [vmem:[#allocation10 + $0x8c] sm:$0xf]
    %v2162 = vld [vmem:[#allocation10 + $0x90] sm:$0xf]
    %v2163 = vld [vmem:[#allocation10 + $0x94] sm:$0xf]
    %v2164 = vld [vmem:[#allocation10 + $0x98] sm:$0xf]
    %v2165 = vld [vmem:[#allocation10 + $0x9c] sm:$0xf]
    %v2166 = vld [vmem:[#allocation10 + $0xa0] sm:$0xf]
    %v2167 = vld [vmem:[#allocation10 + $0xa4] sm:$0xf]
    %v2168 = vld [vmem:[#allocation10 + $0xa8] sm:$0xf]
    %v2169 = vld [vmem:[#allocation10 + $0xac] sm:$0xf]
    %v2170 = vld [vmem:[#allocation10 + $0xb0] sm:$0xf]
    %v2171 = vld [vmem:[#allocation10 + $0xb4] sm:$0xf]
    %v2172 = vld [vmem:[#allocation10 + $0xb8] sm:$0xf]
    %v2173 = vld [vmem:[#allocation10 + $0xbc] sm:$0xf]
    %v2174 = vld [vmem:[#allocation10 + $0xc0] sm:$0xf]
    %v2175 = vld [vmem:[#allocation10 + $0xc4] sm:$0xf]
    %v2176 = vld [vmem:[#allocation10 + $0xc8] sm:$0xf]
    %v2177 = vld [vmem:[#allocation10 + $0xcc] sm:$0xf]
    %v2178 = vld [vmem:[#allocation10 + $0xd0] sm:$0xf]
    %v2179 = vld [vmem:[#allocation10 + $0xd4] sm:$0xf]
    %v2180 = vld [vmem:[#allocation10 + $0xd8] sm:$0xf]
    %v2181 = vld [vmem:[#allocation10 + $0xdc] sm:$0xf]
    %v2182 = vld [vmem:[#allocation10 + $0xe0] sm:$0xf]
    %v2183 = vld [vmem:[#allocation10 + $0xe4] sm:$0xf]
    %v2184 = vld [vmem:[#allocation10 + $0xe8] sm:$0xf]
    %v2185 = vld [vmem:[#allocation10 + $0xec] sm:$0xf]
    %v2186 = vld [vmem:[#allocation10 + $0xf0] sm:$0xf]
    %v2187 = vld [vmem:[#allocation10 + $0xf4] sm:$0xf]
    %v2188 = vld [vmem:[#allocation10 + $0xf8] sm:$0xf]
    %v2189 = vld [vmem:[#allocation10 + $0xfc] sm:$0xf]
    %v2190 = vld [vmem:[#allocation10 + $0x100] sm:$0xf]
    %v2191 = vld [vmem:[#allocation10 + $0x104] sm:$0xf]
    %v2192 = vld [vmem:[#allocation10 + $0x108] sm:$0xf]
    %v2193 = vld [vmem:[#allocation10 + $0x10c] sm:$0xf]
    %v2194 = vld [vmem:[#allocation10 + $0x110] sm:$0xf]
    %v2195 = vld [vmem:[#allocation10 + $0x114] sm:$0xf]
    %v2196 = vld [vmem:[#allocation10 + $0x118] sm:$0xf]
    %v2197 = vld [vmem:[#allocation10 + $0x11c] sm:$0xf]
    %v2198 = vld [vmem:[#allocation10 + $0x120] sm:$0xf]
    %v2199 = vld [vmem:[#allocation10 + $0x124] sm:$0xf]
    %v2200 = vld [vmem:[#allocation10 + $0x128] sm:$0xf]
    %v2201 = vld [vmem:[#allocation10 + $0x12c] sm:$0xf]
    %v2202 = vld [vmem:[#allocation10 + $0x130] sm:$0xf]
    %v2203 = vld [vmem:[#allocation10 + $0x134] sm:$0xf]
    %v2204 = vld [vmem:[#allocation10 + $0x138] sm:$0xf]
    %v2205 = vld [vmem:[#allocation10 + $0x13c] sm:$0xf]
    %v2206 = vld [vmem:[%s6] sm:$0x1]
    %v2208 = vlaneseq
    %v2209 = vshrl.u32 %v2208, 7
    %v2210 = vsub.s32 0, %v2209
    %v2211 = vrot.slane %v2206, %v2210
    %v2293 = vunpack.c.l.b16 %v2126
    %v2294 = vunpack.c.l.b16 %v2127
    %v2295 = vunpack.c.l.b16 %v2128
    %v2296 = vunpack.c.l.b16 %v2129
    %v2297 = vunpack.c.l.b16 %v2130
    %v2298 = vunpack.c.l.b16 %v2131
    %v2299 = vunpack.c.l.b16 %v2132
    %v2300 = vunpack.c.l.b16 %v2133
    %v2301 = vunpack.c.l.b16 %v2134
    %v2302 = vunpack.c.l.b16 %v2135
    %v2303 = vunpack.c.l.b16 %v2136
    %v2304 = vunpack.c.l.b16 %v2137
    %v2305 = vunpack.c.l.b16 %v2138
    %v2306 = vunpack.c.l.b16 %v2139
    %v2307 = vunpack.c.l.b16 %v2140
    %v2308 = vunpack.c.l.b16 %v2141
    %v2309 = vunpack.c.l.b16 %v2142
    %v2310 = vunpack.c.l.b16 %v2143
    %v2311 = vunpack.c.l.b16 %v2144
    %v2312 = vunpack.c.l.b16 %v2145
    %v2313 = vunpack.c.l.b16 %v2146
    %v2314 = vunpack.c.l.b16 %v2147
    %v2315 = vunpack.c.l.b16 %v2148
    %v2316 = vunpack.c.l.b16 %v2149
    %v2317 = vunpack.c.l.b16 %v2150
    %v2318 = vunpack.c.l.b16 %v2151
    %v2319 = vunpack.c.l.b16 %v2152
    %v2320 = vunpack.c.l.b16 %v2153
    %v2321 = vunpack.c.l.b16 %v2154
    %v2322 = vunpack.c.l.b16 %v2155
    %v2323 = vunpack.c.l.b16 %v2156
    %v2324 = vunpack.c.l.b16 %v2157
    %v2325 = vunpack.c.l.b16 %v2158
    %v2326 = vunpack.c.l.b16 %v2159
    %v2327 = vunpack.c.l.b16 %v2160
    %v2328 = vunpack.c.l.b16 %v2161
    %v2329 = vunpack.c.l.b16 %v2162
    %v2330 = vunpack.c.l.b16 %v2163
    %v2331 = vunpack.c.l.b16 %v2164
    %v2332 = vunpack.c.l.b16 %v2165
    %v2333 = vunpack.c.l.b16 %v2166
    %v2334 = vunpack.c.l.b16 %v2167
    %v2335 = vunpack.c.l.b16 %v2168
    %v2336 = vunpack.c.l.b16 %v2169
    %v2337 = vunpack.c.l.b16 %v2170
    %v2338 = vunpack.c.l.b16 %v2171
    %v2339 = vunpack.c.l.b16 %v2172
    %v2340 = vunpack.c.l.b16 %v2173
    %v2341 = vunpack.c.l.b16 %v2174
    %v2342 = vunpack.c.l.b16 %v2175
    %v2343 = vunpack.c.l.b16 %v2176
    %v2344 = vunpack.c.l.b16 %v2177
    %v2345 = vunpack.c.l.b16 %v2178
    %v2346 = vunpack.c.l.b16 %v2179
    %v2347 = vunpack.c.l.b16 %v2180
    %v2348 = vunpack.c.l.b16 %v2181
    %v2349 = vunpack.c.l.b16 %v2182
    %v2350 = vunpack.c.l.b16 %v2183
    %v2351 = vunpack.c.l.b16 %v2184
    %v2352 = vunpack.c.l.b16 %v2185
    %v2353 = vunpack.c.l.b16 %v2186
    %v2354 = vunpack.c.l.b16 %v2187
    %v2355 = vunpack.c.l.b16 %v2188
    %v2356 = vunpack.c.l.b16 %v2189
    %v2357 = vunpack.c.l.b16 %v2190
    %v2358 = vunpack.c.l.b16 %v2191
    %v2359 = vunpack.c.l.b16 %v2192
    %v2360 = vunpack.c.l.b16 %v2193
    %v2361 = vunpack.c.l.b16 %v2194
    %v2362 = vunpack.c.l.b16 %v2195
    %v2363 = vunpack.c.l.b16 %v2196
    %v2364 = vunpack.c.l.b16 %v2197
    %v2365 = vunpack.c.l.b16 %v2198
    %v2366 = vunpack.c.l.b16 %v2199
    %v2367 = vunpack.c.l.b16 %v2200
    %v2368 = vunpack.c.l.b16 %v2201
    %v2369 = vunpack.c.l.b16 %v2202
    %v2370 = vunpack.c.l.b16 %v2203
    %v2371 = vunpack.c.l.b16 %v2204
    %v2372 = vunpack.c.l.b16 %v2205
    %v2373 = vpack.c.b16 %v2294, %v2293
    %v2374 = vpack.c.b16 %v2296, %v2295
    %v2375 = vpack.c.b16 %v2298, %v2297
    %v2376 = vpack.c.b16 %v2300, %v2299
    %v2377 = vpack.c.b16 %v2302, %v2301
    %v2378 = vpack.c.b16 %v2304, %v2303
    %v2379 = vpack.c.b16 %v2306, %v2305
    %v2380 = vpack.c.b16 %v2308, %v2307
    %v2381 = vpack.c.b16 %v2310, %v2309
    %v2382 = vpack.c.b16 %v2312, %v2311
    %v2383 = vpack.c.b16 %v2314, %v2313
    %v2384 = vpack.c.b16 %v2316, %v2315
    %v2385 = vpack.c.b16 %v2318, %v2317
    %v2386 = vpack.c.b16 %v2320, %v2319
    %v2387 = vpack.c.b16 %v2322, %v2321
    %v2388 = vpack.c.b16 %v2324, %v2323
    %v2389 = vpack.c.b16 %v2326, %v2325
    %v2390 = vpack.c.b16 %v2328, %v2327
    %v2391 = vpack.c.b16 %v2330, %v2329
    %v2392 = vpack.c.b16 %v2332, %v2331
    %v2393 = vpack.c.b16 %v2334, %v2333
    %v2394 = vpack.c.b16 %v2336, %v2335
    %v2395 = vpack.c.b16 %v2338, %v2337
    %v2396 = vpack.c.b16 %v2340, %v2339
    %v2397 = vpack.c.b16 %v2342, %v2341
    %v2398 = vpack.c.b16 %v2344, %v2343
    %v2399 = vpack.c.b16 %v2346, %v2345
    %v2400 = vpack.c.b16 %v2348, %v2347
    %v2401 = vpack.c.b16 %v2350, %v2349
    %v2402 = vpack.c.b16 %v2352, %v2351
    %v2403 = vpack.c.b16 %v2354, %v2353
    %v2404 = vpack.c.b16 %v2356, %v2355
    %v2405 = vpack.c.b16 %v2358, %v2357
    %v2406 = vpack.c.b16 %v2360, %v2359
    %v2407 = vpack.c.b16 %v2362, %v2361
    %v2408 = vpack.c.b16 %v2364, %v2363
    %v2409 = vpack.c.b16 %v2366, %v2365
    %v2410 = vpack.c.b16 %v2368, %v2367
    %v2411 = vpack.c.b16 %v2370, %v2369
    %v2412 = vpack.c.b16 %v2372, %v2371
    %2453 = vmatprep.subr.bf16.mxu0 0
    %2454 = vmatpush1.bf16.msra.mxu0 %v2380
    %2455 = vmatprep.subr.bf16.mxu0 0
    %2456 = vmatpush1.bf16.msra.mxu0 %v2379
    %2457 = vmatprep.subr.bf16.mxu0 0
    %2458 = vmatpush1.bf16.msra.mxu0 %v2378
    %2459 = vmatprep.subr.bf16.mxu0 0
    %2460 = vmatpush1.bf16.msra.mxu0 %v2377
    %2461 = vmatprep.subr.bf16.mxu0 0
    %2462 = vmatpush1.bf16.msra.mxu0 %v2376
    %2463 = vmatprep.subr.bf16.mxu0 0
    %2464 = vmatpush1.bf16.msra.mxu0 %v2375
    %2465 = vmatprep.subr.bf16.mxu0 0
    %2466 = vmatpush1.bf16.msra.mxu0 %v2374
    %2467 = vmatprep.subr.bf16.mxu0 0
    %2468 = vmatpush1.bf16.msra.mxu0 %v2373
    %2469 = vmatprep.subr.bf16.mxu0 0
    %2470 = vmatpush2.bf16.msra.mxu0 %v2388
    %2471 = vmatprep.subr.bf16.mxu0 0
    %2472 = vmatpush2.bf16.msra.mxu0 %v2387
    %2473 = vmatprep.subr.bf16.mxu0 0
    %2474 = vmatpush2.bf16.msra.mxu0 %v2386
    %2475 = vmatprep.subr.bf16.mxu0 0
    %2476 = vmatpush2.bf16.msra.mxu0 %v2385
    %2477 = vmatprep.subr.bf16.mxu0 0
    %2478 = vmatpush2.bf16.msra.mxu0 %v2384
    %2479 = vmatprep.subr.bf16.mxu0 0
    %2480 = vmatpush2.bf16.msra.mxu0 %v2383
    %2481 = vmatprep.subr.bf16.mxu0 0
    %2482 = vmatpush2.bf16.msra.mxu0 %v2382
    %2483 = vmatprep.subr.bf16.mxu0 0
    %2484 = vmatpush2.bf16.msra.mxu0 %v2381
    %2485 = vmatprep.mubr.bf16.mxu0 %v2122
    %2486 = vmatmul.mubr.bf16.gmra.mxu0 %v2121
    %v2487 = vpop.f32.mrf.mxu0
    %v2488 = vadd.f32 %v2211, %v2487
    %v2489 = vpop.f32.mrf.mxu0
    %v2490 = vpop.f32.mrf.mxu0
    %v2491 = vpop.f32.mrf.mxu0
    %2492 = vdwg.mxu0
    %2493 = vmatprep.subr.bf16.mxu0 0
    %2494 = vmatpush1.bf16.msra.mxu0 %v2396
    %2495 = vmatprep.subr.bf16.mxu0 0
    %2496 = vmatpush1.bf16.msra.mxu0 %v2395
    %2497 = vmatprep.subr.bf16.mxu0 0
    %2498 = vmatpush1.bf16.msra.mxu0 %v2394
    %2499 = vmatprep.subr.bf16.mxu0 0
    %2500 = vmatpush1.bf16.msra.mxu0 %v2393
    %2501 = vmatprep.subr.bf16.mxu0 0
    %2502 = vmatpush1.bf16.msra.mxu0 %v2392
    %2503 = vmatprep.subr.bf16.mxu0 0
    %2504 = vmatpush1.bf16.msra.mxu0 %v2391
    %2505 = vmatprep.subr.bf16.mxu0 0
    %2506 = vmatpush1.bf16.msra.mxu0 %v2390
    %2507 = vmatprep.subr.bf16.mxu0 0
    %2508 = vmatpush1.bf16.msra.mxu0 %v2389
    %2509 = vmatprep.subr.bf16.mxu0 0
    %2510 = vmatpush2.bf16.msra.mxu0 %v2404
    %2511 = vmatprep.subr.bf16.mxu0 0
    %2512 = vmatpush2.bf16.msra.mxu0 %v2403
    %2513 = vmatprep.subr.bf16.mxu0 0
    %2514 = vmatpush2.bf16.msra.mxu0 %v2402
    %2515 = vmatprep.subr.bf16.mxu0 0
    %2516 = vmatpush2.bf16.msra.mxu0 %v2401
    %2517 = vmatprep.subr.bf16.mxu0 0
    %2518 = vmatpush2.bf16.msra.mxu0 %v2400
    %2519 = vmatprep.subr.bf16.mxu0 0
    %2520 = vmatpush2.bf16.msra.mxu0 %v2399
    %2521 = vmatprep.subr.bf16.mxu0 0
    %2522 = vmatpush2.bf16.msra.mxu0 %v2398
    %2523 = vmatprep.subr.bf16.mxu0 0
    %2524 = vmatpush2.bf16.msra.mxu0 %v2397
    %2525 = vmatprep.mubr.bf16.mxu0 %v2124
    %2526 = vmatmul.mubr.bf16.gmra.mxu0 %v2123
    %v2527 = vpop.f32.mrf.mxu0
    %v2528 = vadd.f32 %v2488, %v2527
    %v2529 = vpop.f32.mrf.mxu0
    %v2530 = vpop.f32.mrf.mxu0
    %v2531 = vpop.f32.mrf.mxu0
    %2532 = vdwg.mxu0
    %2533 = vmatprep.subr.bf16.mxu0 0
    %2534 = vmatpush1.bf16.msra.mxu0 %v2412
    %2535 = vmatprep.subr.bf16.mxu0 0
    %2536 = vmatpush1.bf16.msra.mxu0 %v2411
    %2537 = vmatprep.subr.bf16.mxu0 0
    %2538 = vmatpush1.bf16.msra.mxu0 %v2410
    %2539 = vmatprep.subr.bf16.mxu0 0
    %2540 = vmatpush1.bf16.msra.mxu0 %v2409
    %2541 = vmatprep.subr.bf16.mxu0 0
    %2542 = vmatpush1.bf16.msra.mxu0 %v2408
    %2543 = vmatprep.subr.bf16.mxu0 0
    %2544 = vmatpush1.bf16.msra.mxu0 %v2407
    %2545 = vmatprep.subr.bf16.mxu0 0
    %2546 = vmatpush1.bf16.msra.mxu0 %v2406
    %2547 = vmatprep.subr.bf16.mxu0 0
    %2548 = vmatpush1.bf16.msra.mxu0 %v2405
    %2549 = vmatprep.subr.bf16.mxu0 0
    %2550 = vmatpush2.bf16.msra.mxu0 0
    %2551 = vmatprep.subr.bf16.mxu0 0
    %2552 = vmatpush2.bf16.msra.mxu0 0
    %2553 = vmatprep.subr.bf16.mxu0 0
    %2554 = vmatpush2.bf16.msra.mxu0 0
    %2555 = vmatprep.subr.bf16.mxu0 0
    %2556 = vmatpush2.bf16.msra.mxu0 0
    %2557 = vmatprep.subr.bf16.mxu0 0
    %2558 = vmatpush2.bf16.msra.mxu0 0
    %2559 = vmatprep.subr.bf16.mxu0 0
    %2560 = vmatpush2.bf16.msra.mxu0 0
    %2561 = vmatprep.subr.bf16.mxu0 0
    %2562 = vmatpush2.bf16.msra.mxu0 0
    %2563 = vmatprep.subr.bf16.mxu0 0
    %2564 = vmatpush2.bf16.msra.mxu0 0
    %2565 = vmatprep.mubr.bf16.mxu0 0
    %2566 = vmatmul.mubr.bf16.gmra.mxu0 %v2125
    %v2567 = vpop.f32.mrf.mxu0
    %v2568 = vadd.f32 %v2528, %v2567
    %v2569 = vpop.f32.mrf.mxu0
    %v2570 = vpop.f32.mrf.mxu0
    %v2571 = vpop.f32.mrf.mxu0
    %2572 = vdwg.mxu0
    %2573 = vst [vmem:[#allocation11] sm:$0xff] %v2568
    // Predicated region
    $region50: #{tpu_custom_call.1} parent=1 // pred_check
      _
    $region51: #{tpu_custom_call.1} parent=1 // pred_check_branch
      %2575 = sbr.rel (0) target = $region53
    $region52: #{tpu_custom_call.1} parent=1 // pred_region
      %s2577 = ssub.s32 128, 128
      %2578 = vsyncadd [#allocation4], %s2577
      %s2580 = sshll.u32 [#allocation11], 4
      %s2581 = int_to_ptr.vmem [resolvable:$true] %s2580
      %2583 = dma.vmem_to_hbm [thread:$0]  %s2581, 128, %s7, [#allocation4]
    $region53: #{tpu_custom_call.1} parent=1 // pred_fallthru
      _
    // Predicated region
    $region54: #{tpu_custom_call.1} parent=1 // pred_check
      _
    $region55: #{tpu_custom_call.1} parent=1 // pred_check_branch
      %2585 = sbr.rel (0) target = $region57
    $region56: #{tpu_custom_call.1} parent=1 // pred_region
      %2586 = dma.done [#allocation4], 128
    $region57: #{tpu_custom_call.1} parent=1 // pred_fallthru
      _
    %2587 = vsyncpa [#allocation3], 1
    %2588 = vsyncpa [#allocation6], 1
    %2589 = vsyncpa [#allocation9], 1
    %2590 = vsyncpa [#allocation4], 1

</llo_original>
